<compile_context>
chip_gen: v6e
topology: v6e:2x2x1
jax: 0.10.0
libtpu: 0.0.40
codegen_flags: <defaults>
</compile_context>

<pallas_src>
import functools
import math

import jax
import jax.numpy as jnp
from jax.experimental import pallas as pl
from jax.experimental.pallas import tpu as pltpu

LN_EPS = 1e-5
MASK_VALUE = -1e9                      # python float literal (never a captured jnp const)
SQRT_2_OVER_PI = math.sqrt(2.0 / math.pi)
VMEM_LIMIT_BYTES = 56 * 1024 * 1024    # headroom under v7x's 64 MiB; raise on v5e/v6e


# ----------------------------- in-kernel helpers -----------------------------
def _layernorm(x, g, b, eps):
    mean = jnp.mean(x, axis=-1, keepdims=True)
    var = jnp.mean(jnp.square(x - mean), axis=-1, keepdims=True)
    return (x - mean) * jax.lax.rsqrt(var + eps) * g + b


def _gelu_new(x):
    # GPT-Neo "gelu_new" (tanh approximation); f32 VPU/EUP math.
    return 0.5 * x * (1.0 + jnp.tanh(SQRT_2_OVER_PI * (x + 0.044715 * x * x * x)))


# --------------------------- attention (flash-style) --------------------------
def attn_block_kernel(hq_ref, hkv_ref, mask_ref, ln1g_ref, ln1b_ref,
                      wq_ref, wkv_ref, wout_ref, bout_ref, o_ref,
                      q_scr, m_scr, l_scr, acc_scr, *, num_heads, eps):
    """ln_1 -> Q / KV proj -> online-softmax causal attention -> out proj -> +res.

    Grid = (batch, q_tiles, kv_tiles); one program handles one (batch, q_tile)
    pair for one kv tile.  m/l/acc scratch carries the online softmax state
    across the kv axis.
    """
    q_tile, H = hq_ref.shape
    kv_tile = hkv_ref.shape[0]
    d_head = H // num_heads

    qi = pl.program_id(1)
    ki = pl.program_id(2)
    n_kv = pl.num_programs(2)
    q_start = qi * q_tile
    k_start = ki * kv_tile

    @pl.when(ki == 0)
    def _init():
        xq = _layernorm(hq_ref[...].astype(jnp.float32),
                        ln1g_ref[...], ln1b_ref[...], eps)
        q = jnp.dot(xq.astype(jnp.bfloat16), wq_ref[...],
                    preferred_element_type=jnp.float32)               # (tq, H)
        q = q.reshape(q_tile, num_heads, d_head).transpose(1, 0, 2)   # (nh, tq, Dh)
        q_scr[...] = q.astype(jnp.bfloat16)
        m_scr[...] = jnp.full_like(m_scr, -jnp.inf)
        l_scr[...] = jnp.zeros_like(l_scr)
        acc_scr[...] = jnp.zeros_like(acc_scr)

    # Skip KV tiles that lie entirely above the causal diagonal (no valid keys).
    @pl.when(k_start <= q_start + (q_tile - 1))
    def _update():
        xkv = _layernorm(hkv_ref[...].astype(jnp.float32),
                         ln1g_ref[...], ln1b_ref[...], eps)
        kv = jnp.dot(xkv.astype(jnp.bfloat16), wkv_ref[...],
                     preferred_element_type=jnp.float32)               # (tk, 2H)
        # Per-tile head relayouts (tile-sized only; batch-leading dims for MXU).
        k = kv[:, :H].reshape(kv_tile, num_heads, d_head)\
                     .transpose(1, 0, 2).astype(jnp.bfloat16)          # (nh, tk, Dh)
        v = kv[:, H:].reshape(kv_tile, num_heads, d_head)\
                     .transpose(1, 0, 2).astype(jnp.bfloat16)          # (nh, tk, Dh)

        # Combined causal + key-padding additive bias, built in-kernel.
        q_pos = q_start + jax.lax.broadcasted_iota(jnp.int32, (q_tile, kv_tile), 0)
        k_pos = k_start + jax.lax.broadcasted_iota(jnp.int32, (q_tile, kv_tile), 1)
        key_ok = mask_ref[0, 0] > 0                                    # (1, tk)
        allowed = (q_pos >= k_pos) & key_ok                            # (tq, tk)
        bias = jnp.where(allowed, 0.0, MASK_VALUE).astype(jnp.float32)

        # GPT-Neo quirk: NO 1/sqrt(d_head) scaling of attention scores.
        s = jnp.einsum('hqd,hkd->hqk', q_scr[...], k,
                       preferred_element_type=jnp.float32)             # (nh, tq, tk)
        s = s + bias[None, :, :]

        m_prev = m_scr[...]                                            # (nh, tq)
        m_new = jnp.maximum(m_prev, jnp.max(s, axis=-1))
        alpha = jnp.exp(m_prev - m_new)
        p = jnp.exp(s - m_new[:, :, None])                             # (nh, tq, tk)
        l_scr[...] = alpha * l_scr[...] + jnp.sum(p, axis=-1)
        acc_scr[...] = (alpha[:, :, None] * acc_scr[...]
                        + jnp.einsum('hqk,hkd->hqd', p.astype(jnp.bfloat16), v,
                                     preferred_element_type=jnp.float32))
        m_scr[...] = m_new

    @pl.when(ki == n_kv - 1)
    def _finalize():
        inv_l = pl.reciprocal(l_scr[...], approx=True)                 # (nh, tq)
        ctx = acc_scr[...] * inv_l[:, :, None]                         # (nh, tq, Dh)
        attn = ctx.transpose(1, 0, 2).reshape(q_tile, H)               # one relayout
        out = jnp.dot(attn.astype(jnp.bfloat16), wout_ref[...],
                      preferred_element_type=jnp.float32) + bout_ref[...]
        o_ref[...] = (hq_ref[...].astype(jnp.float32) + out).astype(o_ref.dtype)


def attn_block(hidden, key_mask, p, *, batch, seq, num_heads, q_tile, kv_tile,
               eps=LN_EPS):
    R, H = hidden.shape
    nq, nk = seq // q_tile, seq // kv_tile

    def _resident(shape):
        # Constant block index -> stays resident across the whole grid; single
        # buffering halves its VMEM footprint.
        return pl.BlockSpec(shape, lambda b, qi, ki: (0,) * len(shape),
                            pipeline_mode=pl.Buffered(1))

    kernel = functools.partial(attn_block_kernel, num_heads=num_heads, eps=eps)
    return pl.pallas_call(
        kernel,
        out_shape=jax.ShapeDtypeStruct((R, H), hidden.dtype),
        grid=(batch, nq, nk),
        in_specs=[
            # q-side residual rows (resident across the kv axis)
            pl.BlockSpec((q_tile, H), lambda b, qi, ki: (b * nq + qi, 0)),
            # kv-side residual rows (streamed along the kv axis)
            pl.BlockSpec((kv_tile, H), lambda b, qi, ki: (b * nk + ki, 0)),
            # key-padding mask, pre-tiled in glue to (B, nk, 1, kv_tile)
            pl.BlockSpec((1, 1, 1, kv_tile), lambda b, qi, ki: (b, ki, 0, 0)),
            _resident((1, H)),                         # ln1 gamma
            _resident((1, H)),                         # ln1 beta
            _resident((H, H)),                         # W_q   (bf16)
            _resident((H, 2 * H)),                     # W_kv  (bf16)
            _resident((H, H)),                         # W_out (bf16)
            _resident((1, H)),                         # b_out
        ],
        out_specs=pl.BlockSpec((q_tile, H), lambda b, qi, ki: (b * nq + qi, 0)),
        scratch_shapes=[
            pltpu.VMEM((num_heads, q_tile, H // num_heads), jnp.bfloat16),  # q
            pltpu.VMEM((num_heads, q_tile), jnp.float32),                   # m
            pltpu.VMEM((num_heads, q_tile), jnp.float32),                   # l
            pltpu.VMEM((num_heads, q_tile, H // num_heads), jnp.float32),   # acc
        ],
        compiler_params=pltpu.CompilerParams(
            dimension_semantics=("parallel", "parallel", "arbitrary"),
            vmem_limit_bytes=VMEM_LIMIT_BYTES),
    )(hidden, hidden, key_mask, p['ln1_g'], p['ln1_b'],
      p['w_q'], p['w_kv'], p['w_out'], p['b_out'])


# ------------------------------ MLP (I-tiled) ---------------------------------
def mlp_block_kernel(h_ref, ln2g_ref, ln2b_ref, wfc_ref, bfc_ref,
                     wproj_ref, bproj_ref, lnfg_ref, lnfb_ref,
                     o_ref, y_scr, acc_scr, *, eps, final_ln):
    """ln_2 -> fc -> gelu_new -> proj -> +residual [-> ln_f], intermediate-tiled."""
    j = pl.program_id(1)

    @pl.when(j == 0)
    def _init():
        h = h_ref[...].astype(jnp.float32)
        y_scr[...] = _layernorm(h, ln2g_ref[...], ln2b_ref[...], eps).astype(jnp.bfloat16)
        acc_scr[...] = jnp.zeros_like(acc_scr)

    ff = jnp.dot(y_scr[...], wfc_ref[...],
                 preferred_element_type=jnp.float32) + bfc_ref[...]    # (tm, tI)
    ff = _gelu_new(ff)
    acc_scr[...] += jnp.dot(ff.astype(jnp.bfloat16), wproj_ref[...],
                            preferred_element_type=jnp.float32)        # (tm, H)

    @pl.when(j == pl.num_programs(1) - 1)
    def _finalize():
        out = h_ref[...].astype(jnp.float32) + acc_scr[...] + bproj_ref[...]
        if final_ln:   # fused final LayerNorm on the last layer (python-static)
            out = _layernorm(out, lnfg_ref[...], lnfb_ref[...], eps)
        o_ref[...] = out.astype(o_ref.dtype)


def mlp_block(hidden, p, lnf_g, lnf_b, *, row_tile, inner_tile, final_ln,
              eps=LN_EPS):
    R, H = hidden.shape
    I = p['w_fc'].shape[1]
    kernel = functools.partial(mlp_block_kernel, eps=eps, final_ln=final_ln)
    return pl.pallas_call(
        kernel,
        out_shape=jax.ShapeDtypeStruct((R, H), hidden.dtype),
        grid=(R // row_tile, I // inner_tile),
        in_specs=[
            pl.BlockSpec((row_tile, H), lambda i, j: (i, 0)),     # activation rows
            pl.BlockSpec((1, H), lambda i, j: (0, 0)),            # ln2 gamma
            pl.BlockSpec((1, H), lambda i, j: (0, 0)),            # ln2 beta
            pl.BlockSpec((H, inner_tile), lambda i, j: (0, j)),   # fc weight tile
            pl.BlockSpec((1, inner_tile), lambda i, j: (0, j)),   # fc bias tile
            pl.BlockSpec((inner_tile, H), lambda i, j: (j, 0)),   # proj weight tile
            pl.BlockSpec((1, H), lambda i, j: (0, 0)),            # proj bias
            pl.BlockSpec((1, H), lambda i, j: (0, 0)),            # ln_f gamma
            pl.BlockSpec((1, H), lambda i, j: (0, 0)),            # ln_f beta
        ],
        out_specs=pl.BlockSpec((row_tile, H), lambda i, j: (i, 0)),
        scratch_shapes=[pltpu.VMEM((row_tile, H), jnp.bfloat16),   # ln_2 output
                        pltpu.VMEM((row_tile, H), jnp.float32)],   # proj accumulator
        input_output_aliases={0: 0},                               # in-place residual
        compiler_params=pltpu.CompilerParams(
            dimension_semantics=("parallel", "arbitrary"),
            vmem_limit_bytes=VMEM_LIMIT_BYTES),
    )(hidden, p['ln2_g'], p['ln2_b'], p['w_fc'], p['b_fc'],
      p['w_proj'], p['b_proj'], lnf_g, lnf_b)


# --------------------- standalone final LN (0-layer edge case) ----------------
def layernorm_kernel(x_ref, g_ref, b_ref, o_ref, *, eps):
    x = x_ref[...].astype(jnp.float32)
    o_ref[...] = _layernorm(x, g_ref[...], b_ref[...], eps).astype(o_ref.dtype)


def layernorm(x, g, b, *, row_tile, eps=LN_EPS):
    R, H = x.shape
    return pl.pallas_call(
        functools.partial(layernorm_kernel, eps=eps),
        out_shape=jax.ShapeDtypeStruct((R, H), x.dtype),
        grid=(R // row_tile,),
        in_specs=[pl.BlockSpec((row_tile, H), lambda i: (i, 0)),
                  pl.BlockSpec((1, H), lambda i: (0, 0)),
                  pl.BlockSpec((1, H), lambda i: (0, 0))],
        out_specs=pl.BlockSpec((row_tile, H), lambda i: (i, 0)),
        compiler_params=pltpu.CompilerParams(
            dimension_semantics=("parallel",),
            vmem_limit_bytes=VMEM_LIMIT_BYTES),
    )(x, g, b)


# --------------------------------- model glue ---------------------------------
def _pick_tile(n, prefer=(256, 128, 64, 32, 16, 8)):
    for t in prefer:
        if n % t == 0:
            return t
    return n


def gptneo_model_forward(params, input_ids, attention_mask=None, *, num_heads,
                         q_tile=None, kv_tile=None, row_tile=None,
                         inner_tile=None, eps=LN_EPS):
    B, S = input_ids.shape
    H = params['wte'].shape[1]
    R = B * S

    if attention_mask is not None:
        am = attention_mask.astype(jnp.int32)
        position_ids = jnp.cumsum(am, axis=-1) - 1
        position_ids = jnp.where(am == 0, 1, position_ids)     # masked_fill_(==0, 1)
    else:
        am = jnp.ones((B, S), dtype=jnp.int32)
        position_ids = jnp.broadcast_to(
            jnp.arange(S, dtype=jnp.int32)[None, :], (B, S))

    if q_tile is None:
        q_tile = _pick_tile(S)
    if kv_tile is None:
        kv_tile = _pick_tile(S)
    if row_tile is None:
        row_tile = _pick_tile(R, prefer=(512, 256, 128, 64, 32, 16, 8))
    if inner_tile is None and params['blocks']:
        inner_tile = _pick_tile(params['blocks'][0]['w_fc'].shape[1],
                                prefer=(2048, 1024, 512, 256, 128))
    assert S % q_tile == 0 and S % kv_tile == 0 and R % row_tile == 0

    # Key-padding mask, pre-tiled so each kv block is a full (lane-dense) last dim.
    key_mask = am.reshape(B, S // kv_tile, 1, kv_tile)

    # Embedding gathers stay in plain JAX (glue).
    inputs_embeds = jnp.take(params['wte'], input_ids, axis=0)        # (B, S, H)
    position_embeds = jnp.take(params['wpe'], position_ids, axis=0)   # (B, S, H)
    hidden = (inputs_embeds + position_embeds).astype(jnp.bfloat16).reshape(R, H)

    n_layers = len(params['blocks'])
    for li, blk in enumerate(params['blocks']):
        hidden = attn_block(hidden, key_mask, blk, batch=B, seq=S,
                            num_heads=num_heads, q_tile=q_tile, kv_tile=kv_tile,
                            eps=eps)
        hidden = mlp_block(hidden, blk, params['lnf_g'], params['lnf_b'],
                           row_tile=row_tile, inner_tile=inner_tile,
                           final_ln=(li == n_layers - 1), eps=eps)
    if n_layers == 0:
        hidden = layernorm(hidden, params['lnf_g'], params['lnf_b'],
                           row_tile=row_tile, eps=eps)
    return hidden.reshape(B, S, H).astype(jnp.float32)


# ------------------------------ param construction -----------------------------
def init_params(key, *, vocab_size, max_pos, hidden, intermediate, num_layers):
    """Raw params in PyTorch nn.Linear convention (out_features, in_features)."""
    def nrm(k, shape, scale=0.02):
        return scale * jax.random.normal(k, shape, dtype=jnp.float32)

    keys = jax.random.split(key, 2 + num_layers)
    params = {
        'wte': nrm(keys[0], (vocab_size, hidden)),
        'wpe': nrm(keys[1], (max_pos, hidden)),
        'lnf_g': jnp.ones((hidden,), jnp.float32),
        'lnf_b': jnp.zeros((hidden,), jnp.float32),
        'blocks': [],
    }
    for l in range(num_layers):
        ks = jax.random.split(keys[2 + l], 6)
        params['blocks'].append({
            'ln1_g': jnp.ones((hidden,), jnp.float32),
            'ln1_b': jnp.zeros((hidden,), jnp.float32),
            'q_w': nrm(ks[0], (hidden, hidden)),           # nn.Linear(H, H, bias=False)
            'k_w': nrm(ks[1], (hidden, hidden)),
            'v_w': nrm(ks[2], (hidden, hidden)),
            'out_w': nrm(ks[3], (hidden, hidden)),          # nn.Linear(H, H)
            'out_b': jnp.zeros((hidden,), jnp.float32),
            'ln2_g': jnp.ones((hidden,), jnp.float32),
            'ln2_b': jnp.zeros((hidden,), jnp.float32),
            'fc_w': nrm(ks[4], (intermediate, hidden)),     # nn.Linear(H, I)
            'fc_b': jnp.zeros((intermediate,), jnp.float32),
            'proj_w': nrm(ks[5], (hidden, intermediate)),   # nn.Linear(I, H)
            'proj_b': jnp.zeros((hidden,), jnp.float32),
        })
    return params


def prepare_params(raw):
    """One-time prep: transpose Linears to (in, out), fuse K/V, cast matmul
    weights to bf16 (MXU-native), reshape 1-D vectors to (1, n) 2-D operands."""
    def as_row(v):
        return v.reshape(1, -1).astype(jnp.float32)

    prepared = {
        'wte': raw['wte'],
        'wpe': raw['wpe'],
        'lnf_g': as_row(raw['lnf_g']),
        'lnf_b': as_row(raw['lnf_b']),
        'blocks': [],
    }
    for b in raw['blocks']:
        w_kv = jnp.concatenate([b['k_w'].T, b['v_w'].T], axis=1)        # (H, 2H)
        prepared['blocks'].append({
            'ln1_g': as_row(b['ln1_g']),
            'ln1_b': as_row(b['ln1_b']),
            'w_q': b['q_w'].T.astype(jnp.bfloat16),          # (H, H)
            'w_kv': w_kv.astype(jnp.bfloat16),               # (H, 2H)
            'w_out': b['out_w'].T.astype(jnp.bfloat16),      # (H, H)
            'b_out': as_row(b['out_b']),
            'ln2_g': as_row(b['ln2_g']),
            'ln2_b': as_row(b['ln2_b']),
            'w_fc': b['fc_w'].T.astype(jnp.bfloat16),        # (H, I)
            'b_fc': as_row(b['fc_b']),
            'w_proj': b['proj_w'].T.astype(jnp.bfloat16),    # (I, H)
            'b_proj': as_row(b['proj_b']),
        })
    return prepared


if __name__ == "__main__":
    VOCAB, MAX_POS, HIDDEN, N_HEADS, N_LAYERS, INTERMEDIATE = 100, 32, 32, 4, 2, 256
    B, S = 2, 16

    key = jax.random.PRNGKey(0)
    k_params, k_ids = jax.random.split(key)
    raw_params = init_params(k_params, vocab_size=VOCAB, max_pos=MAX_POS,
                             hidden=HIDDEN, intermediate=INTERMEDIATE,
                             num_layers=N_LAYERS)
    params = prepare_params(raw_params)

    input_ids = jax.random.randint(k_ids, (B, S), 0, VOCAB, dtype=jnp.int32)
    # batch 0 fully valid, batch 1 has the last 3 key positions padded out
    attention_mask = jnp.concatenate(
        [jnp.ones((1, S), jnp.int32),
         jnp.concatenate([jnp.ones((1, S - 3), jnp.int32),
                          jnp.zeros((1, 3), jnp.int32)], axis=1)], axis=0)

    # Small tiles so the flash kv axis, the q axis and the MLP inner axis all
    # take multiple grid steps at these toy shapes.
    fwd = jax.jit(functools.partial(gptneo_model_forward, num_heads=N_HEADS,
                                    q_tile=8, kv_tile=8, row_tile=16,
                                    inner_tile=128, eps=LN_EPS))
    out = fwd(params, input_ids, attention_mask)
    jax.block_until_ready(out)
    assert out.shape == (B, S, HIDDEN) and out.dtype == jnp.float32
    print("KERNEL_OK")
</pallas_src>

<mosaic_0001>
module attributes {stable_mosaic.version = 11 : i64} {
  func.func @mlp_block_kernel(%arg0: i32, %arg1: i32, %arg2: memref<16x32xbf16, #tpu.memory_space<vmem>>, %arg3: memref<1x32xf32, #tpu.memory_space<vmem>>, %arg4: memref<1x32xf32, #tpu.memory_space<vmem>>, %arg5: memref<32x128xbf16, #tpu.memory_space<vmem>>, %arg6: memref<1x128xf32, #tpu.memory_space<vmem>>, %arg7: memref<128x32xbf16, #tpu.memory_space<vmem>>, %arg8: memref<1x32xf32, #tpu.memory_space<vmem>>, %arg9: memref<1x32xf32, #tpu.memory_space<vmem>>, %arg10: memref<1x32xf32, #tpu.memory_space<vmem>>, %arg11: memref<16x32xbf16, #tpu.memory_space<vmem>>, %arg12: memref<16x32xbf16, #tpu.memory_space<vmem>>, %arg13: memref<16x32xf32, #tpu.memory_space<vmem>>) attributes {dimension_semantics = [#tpu.dimension_semantics<parallel>, #tpu.dimension_semantics<arbitrary>], iteration_bounds = array<i64: 2, 2>, scalar_prefetch = 0 : i64, scratch_operands = 2 : i64, tpu.core_type = #tpu.core_type<tc>, window_params = [{transform_indices = @transform_0, window_bounds = array<i64: 16, 32>}, {pipeline_mode = #tpu.pipeline_mode<synchronous>, transform_indices = @transform_1, window_bounds = array<i64: 1, 32>}, {pipeline_mode = #tpu.pipeline_mode<synchronous>, transform_indices = @transform_2, window_bounds = array<i64: 1, 32>}, {transform_indices = @transform_3, window_bounds = array<i64: 32, 128>}, {transform_indices = @transform_4, window_bounds = array<i64: 1, 128>}, {transform_indices = @transform_5, window_bounds = array<i64: 128, 32>}, {pipeline_mode = #tpu.pipeline_mode<synchronous>, transform_indices = @transform_6, window_bounds = array<i64: 1, 32>}, {pipeline_mode = #tpu.pipeline_mode<synchronous>, transform_indices = @transform_7, window_bounds = array<i64: 1, 32>}, {pipeline_mode = #tpu.pipeline_mode<synchronous>, transform_indices = @transform_8, window_bounds = array<i64: 1, 32>}, {transform_indices = @transform_9, window_bounds = array<i64: 16, 32>}]} {
    %c0_i32 = arith.constant 0 : i32
    %0 = arith.cmpi eq, %arg1, %c0_i32 : i32
    %1 = arith.extui %0 : i1 to i32
    %c0_i32_0 = arith.constant 0 : i32
    %2 = arith.cmpi ne, %1, %c0_i32_0 : i32
    scf.if %2 {
      %c0_18 = arith.constant 0 : index
      %c0_19 = arith.constant 0 : index
      %31 = vector.load %arg2[%c0_18, %c0_19] : memref<16x32xbf16, #tpu.memory_space<vmem>>, vector<16x32xbf16>
      %32 = arith.extf %31 : vector<16x32xbf16> to vector<16x32xf32>
      %c0_20 = arith.constant 0 : index
      %c0_21 = arith.constant 0 : index
      %33 = vector.load %arg3[%c0_20, %c0_21] : memref<1x32xf32, #tpu.memory_space<vmem>>, vector<1x32xf32>
      %c0_22 = arith.constant 0 : index
      %c0_23 = arith.constant 0 : index
      %34 = vector.load %arg4[%c0_22, %c0_23] : memref<1x32xf32, #tpu.memory_space<vmem>>, vector<1x32xf32>
      %cst_24 = arith.constant dense<0.000000e+00> : vector<16xf32>
      %35 = vector.multi_reduction <add>, %32, %cst_24 [1] : vector<16x32xf32> to vector<16xf32>
      %36 = vector.shape_cast %35 : vector<16xf32> to vector<16x1xf32>
      %cst_25 = arith.constant 3.200000e+01 : f32
      %37 = vector.broadcast %cst_25 : f32 to vector<16x1xf32>
      %38 = arith.divf %36, %37 : vector<16x1xf32>
      %39 = vector.broadcast %38 : vector<16x1xf32> to vector<16x32xf32>
      %40 = arith.subf %32, %39 : vector<16x32xf32>
      %41 = arith.mulf %40, %40 : vector<16x32xf32>
      %cst_26 = arith.constant dense<0.000000e+00> : vector<16xf32>
      %42 = vector.multi_reduction <add>, %41, %cst_26 [1] : vector<16x32xf32> to vector<16xf32>
      %43 = vector.shape_cast %42 : vector<16xf32> to vector<16x1xf32>
      %cst_27 = arith.constant 3.200000e+01 : f32
      %44 = vector.broadcast %cst_27 : f32 to vector<16x1xf32>
      %45 = arith.divf %43, %44 : vector<16x1xf32>
      %46 = vector.broadcast %38 : vector<16x1xf32> to vector<16x32xf32>
      %47 = arith.subf %32, %46 : vector<16x32xf32>
      %cst_28 = arith.constant 9.99999974E-6 : f32
      %48 = vector.broadcast %cst_28 : f32 to vector<16x1xf32>
      %49 = arith.addf %45, %48 : vector<16x1xf32>
      %50 = math.rsqrt %49 : vector<16x1xf32>
      %51 = vector.broadcast %50 : vector<16x1xf32> to vector<16x32xf32>
      %52 = arith.mulf %47, %51 : vector<16x32xf32>
      %53 = vector.broadcast %33 : vector<1x32xf32> to vector<16x32xf32>
      %54 = arith.mulf %52, %53 : vector<16x32xf32>
      %55 = vector.broadcast %34 : vector<1x32xf32> to vector<16x32xf32>
      %56 = arith.addf %54, %55 : vector<16x32xf32>
      %57 = arith.truncf %56 : vector<16x32xf32> to vector<16x32xbf16>
      %c0_29 = arith.constant 0 : index
      %c0_30 = arith.constant 0 : index
      %58 = vector.load %arg12[%c0_29, %c0_30] : memref<16x32xbf16, #tpu.memory_space<vmem>>, vector<16x32xbf16>
      tpu.vector_store %arg12[%c0_29, %c0_30], %57 {strides = array<i32>} : memref<16x32xbf16, #tpu.memory_space<vmem>>, vector<16x32xbf16>,
      %cst_31 = arith.constant 0.000000e+00 : f32
      %59 = vector.broadcast %cst_31 : f32 to vector<16x32xf32>
      %c0_32 = arith.constant 0 : index
      %c0_33 = arith.constant 0 : index
      %60 = vector.load %arg13[%c0_32, %c0_33] : memref<16x32xf32, #tpu.memory_space<vmem>>, vector<16x32xf32>
      tpu.vector_store %arg13[%c0_32, %c0_33], %59 {strides = array<i32>} : memref<16x32xf32, #tpu.memory_space<vmem>>, vector<16x32xf32>,
    } else {
    }
    %c0 = arith.constant 0 : index
    %c0_1 = arith.constant 0 : index
    %3 = vector.load %arg12[%c0, %c0_1] : memref<16x32xbf16, #tpu.memory_space<vmem>>, vector<16x32xbf16>
    %c0_2 = arith.constant 0 : index
    %c0_3 = arith.constant 0 : index
    %4 = vector.load %arg5[%c0_2, %c0_3] : memref<32x128xbf16, #tpu.memory_space<vmem>>, vector<32x128xbf16>
    %cst = arith.constant dense<0.000000e+00> : vector<16x128xf32>
    %5 = tpu.matmul %3, %4, %cst {dimension_numbers = #tpu.dot_dimension_numbers<[1], [0], [0], [1], [0, 0, 1, 1], [], []>} : vector<16x32xbf16>, vector<32x128xbf16>, vector<16x128xf32> -> vector<16x128xf32>
    %c0_4 = arith.constant 0 : index
    %c0_5 = arith.constant 0 : index
    %6 = vector.load %arg6[%c0_4, %c0_5] : memref<1x128xf32, #tpu.memory_space<vmem>>, vector<1x128xf32>
    %7 = vector.broadcast %6 : vector<1x128xf32> to vector<16x128xf32>
    %8 = arith.addf %5, %7 : vector<16x128xf32>
    %cst_6 = arith.constant 5.000000e-01 : f32
    %9 = vector.broadcast %cst_6 : f32 to vector<16x128xf32>
    %10 = arith.mulf %9, %8 : vector<16x128xf32>
    %cst_7 = arith.constant 4.471500e-02 : f32
    %11 = vector.broadcast %cst_7 : f32 to vector<16x128xf32>
    %12 = arith.mulf %11, %8 : vector<16x128xf32>
    %13 = arith.mulf %12, %8 : vector<16x128xf32>
    %14 = arith.mulf %13, %8 : vector<16x128xf32>
    %15 = arith.addf %8, %14 : vector<16x128xf32>
    %cst_8 = arith.constant 0.797884583 : f32
    %16 = vector.broadcast %cst_8 : f32 to vector<16x128xf32>
    %17 = arith.mulf %16, %15 : vector<16x128xf32>
    %18 = math.tanh %17 : vector<16x128xf32>
    %cst_9 = arith.constant 1.000000e+00 : f32
    %19 = vector.broadcast %cst_9 : f32 to vector<16x128xf32>
    %20 = arith.addf %19, %18 : vector<16x128xf32>
    %21 = arith.mulf %10, %20 : vector<16x128xf32>
    %c0_10 = arith.constant 0 : index
    %c0_11 = arith.constant 0 : index
    %22 = vector.load %arg13[%c0_10, %c0_11] : memref<16x32xf32, #tpu.memory_space<vmem>>, vector<16x32xf32>
    %23 = arith.truncf %21 : vector<16x128xf32> to vector<16x128xbf16>
    %c0_12 = arith.constant 0 : index
    %c0_13 = arith.constant 0 : index
    %24 = vector.load %arg7[%c0_12, %c0_13] : memref<128x32xbf16, #tpu.memory_space<vmem>>, vector<128x32xbf16>
    %cst_14 = arith.constant dense<0.000000e+00> : vector<16x32xf32>
    %25 = tpu.matmul %23, %24, %cst_14 {dimension_numbers = #tpu.dot_dimension_numbers<[1], [0], [0], [1], [0, 0, 1, 1], [], []>} : vector<16x128xbf16>, vector<128x32xbf16>, vector<16x32xf32> -> vector<16x32xf32>
    %26 = arith.addf %22, %25 : vector<16x32xf32>
    %c0_15 = arith.constant 0 : index
    %c0_16 = arith.constant 0 : index
    %27 = vector.load %arg13[%c0_15, %c0_16] : memref<16x32xf32, #tpu.memory_space<vmem>>, vector<16x32xf32>
    tpu.vector_store %arg13[%c0_15, %c0_16], %26 {strides = array<i32>} : memref<16x32xf32, #tpu.memory_space<vmem>>, vector<16x32xf32>,
    %c1_i32 = arith.constant 1 : i32
    %28 = arith.cmpi eq, %arg1, %c1_i32 : i32
    %29 = arith.extui %28 : i1 to i32
    %c0_i32_17 = arith.constant 0 : i32
    %30 = arith.cmpi ne, %29, %c0_i32_17 : i32
    scf.if %30 {
      %c0_18 = arith.constant 0 : index
      %c0_19 = arith.constant 0 : index
      %31 = vector.load %arg2[%c0_18, %c0_19] : memref<16x32xbf16, #tpu.memory_space<vmem>>, vector<16x32xbf16>
      %32 = arith.extf %31 : vector<16x32xbf16> to vector<16x32xf32>
      %c0_20 = arith.constant 0 : index
      %c0_21 = arith.constant 0 : index
      %33 = vector.load %arg13[%c0_20, %c0_21] : memref<16x32xf32, #tpu.memory_space<vmem>>, vector<16x32xf32>
      %34 = arith.addf %32, %33 : vector<16x32xf32>
      %c0_22 = arith.constant 0 : index
      %c0_23 = arith.constant 0 : index
      %35 = vector.load %arg8[%c0_22, %c0_23] : memref<1x32xf32, #tpu.memory_space<vmem>>, vector<1x32xf32>
      %36 = vector.broadcast %35 : vector<1x32xf32> to vector<16x32xf32>
      %37 = arith.addf %34, %36 : vector<16x32xf32>
      %38 = arith.truncf %37 : vector<16x32xf32> to vector<16x32xbf16>
      %c0_24 = arith.constant 0 : index
      %c0_25 = arith.constant 0 : index
      %39 = vector.load %arg11[%c0_24, %c0_25] : memref<16x32xbf16, #tpu.memory_space<vmem>>, vector<16x32xbf16>
      tpu.vector_store %arg11[%c0_24, %c0_25], %38 {strides = array<i32>} : memref<16x32xbf16, #tpu.memory_space<vmem>>, vector<16x32xbf16>,
    } else {
    }
    return
  }
  func.func @transform_0(%arg0: i32, %arg1: i32) -> (i32, i32) {
    %c0_i32 = arith.constant 0 : i32
    %c0_i32_0 = arith.constant 0 : i32
    return %arg0, %c0_i32 : i32, i32
  }
  func.func @transform_1(%arg0: i32, %arg1: i32) -> (i32, i32) {
    %c0_i32 = arith.constant 0 : i32
    %c0_i32_0 = arith.constant 0 : i32
    %c0_i32_1 = arith.constant 0 : i32
    return %c0_i32, %c0_i32_0 : i32, i32
  }
  func.func @transform_2(%arg0: i32, %arg1: i32) -> (i32, i32) {
    %c0_i32 = arith.constant 0 : i32
    %c0_i32_0 = arith.constant 0 : i32
    %c0_i32_1 = arith.constant 0 : i32
    return %c0_i32, %c0_i32_0 : i32, i32
  }
  func.func @transform_3(%arg0: i32, %arg1: i32) -> (i32, i32) {
    %c0_i32 = arith.constant 0 : i32
    %c0_i32_0 = arith.constant 0 : i32
    return %c0_i32, %arg1 : i32, i32
  }
  func.func @transform_4(%arg0: i32, %arg1: i32) -> (i32, i32) {
    %c0_i32 = arith.constant 0 : i32
    %c0_i32_0 = arith.constant 0 : i32
    return %c0_i32, %arg1 : i32, i32
  }
  func.func @transform_5(%arg0: i32, %arg1: i32) -> (i32, i32) {
    %c0_i32 = arith.constant 0 : i32
    %c0_i32_0 = arith.constant 0 : i32
    return %arg1, %c0_i32 : i32, i32
  }
  func.func @transform_6(%arg0: i32, %arg1: i32) -> (i32, i32) {
    %c0_i32 = arith.constant 0 : i32
    %c0_i32_0 = arith.constant 0 : i32
    %c0_i32_1 = arith.constant 0 : i32
    return %c0_i32, %c0_i32_0 : i32, i32
  }
  func.func @transform_7(%arg0: i32, %arg1: i32) -> (i32, i32) {
    %c0_i32 = arith.constant 0 : i32
    %c0_i32_0 = arith.constant 0 : i32
    %c0_i32_1 = arith.constant 0 : i32
    return %c0_i32, %c0_i32_0 : i32, i32
  }
  func.func @transform_8(%arg0: i32, %arg1: i32) -> (i32, i32) {
    %c0_i32 = arith.constant 0 : i32
    %c0_i32_0 = arith.constant 0 : i32
    %c0_i32_1 = arith.constant 0 : i32
    return %c0_i32, %c0_i32_0 : i32, i32
  }
  func.func @transform_9(%arg0: i32, %arg1: i32) -> (i32, i32) {
    %c0_i32 = arith.constant 0 : i32
    %c0_i32_0 = arith.constant 0 : i32
    return %arg0, %c0_i32 : i32, i32
  }
}

module attributes {stable_mosaic.version = 11 : i64} {
  func.func @mlp_block_kernel(%arg0: i32, %arg1: i32, %arg2: memref<16x32xbf16, #tpu.memory_space<vmem>>, %arg3: memref<1x32xf32, #tpu.memory_space<vmem>>, %arg4: memref<1x32xf32, #tpu.memory_space<vmem>>, %arg5: memref<32x128xbf16, #tpu.memory_space<vmem>>, %arg6: memref<1x128xf32, #tpu.memory_space<vmem>>, %arg7: memref<128x32xbf16, #tpu.memory_space<vmem>>, %arg8: memref<1x32xf32, #tpu.memory_space<vmem>>, %arg9: memref<1x32xf32, #tpu.memory_space<vmem>>, %arg10: memref<1x32xf32, #tpu.memory_space<vmem>>, %arg11: memref<16x32xbf16, #tpu.memory_space<vmem>>, %arg12: memref<16x32xbf16, #tpu.memory_space<vmem>>, %arg13: memref<16x32xf32, #tpu.memory_space<vmem>>) attributes {dimension_semantics = [#tpu.dimension_semantics<parallel>, #tpu.dimension_semantics<arbitrary>], iteration_bounds = array<i64: 2, 2>, scalar_prefetch = 0 : i64, scratch_operands = 2 : i64, tpu.core_type = #tpu.core_type<tc>, window_params = [{transform_indices = @transform_0, window_bounds = array<i64: 16, 32>}, {pipeline_mode = #tpu.pipeline_mode<synchronous>, transform_indices = @transform_1, window_bounds = array<i64: 1, 32>}, {pipeline_mode = #tpu.pipeline_mode<synchronous>, transform_indices = @transform_2, window_bounds = array<i64: 1, 32>}, {transform_indices = @transform_3, window_bounds = array<i64: 32, 128>}, {transform_indices = @transform_4, window_bounds = array<i64: 1, 128>}, {transform_indices = @transform_5, window_bounds = array<i64: 128, 32>}, {pipeline_mode = #tpu.pipeline_mode<synchronous>, transform_indices = @transform_6, window_bounds = array<i64: 1, 32>}, {pipeline_mode = #tpu.pipeline_mode<synchronous>, transform_indices = @transform_7, window_bounds = array<i64: 1, 32>}, {pipeline_mode = #tpu.pipeline_mode<synchronous>, transform_indices = @transform_8, window_bounds = array<i64: 1, 32>}, {transform_indices = @transform_9, window_bounds = array<i64: 16, 32>}]} {
    %c0_i32 = arith.constant 0 : i32
    %0 = arith.cmpi eq, %arg1, %c0_i32 : i32
    %1 = arith.extui %0 : i1 to i32
    %c0_i32_0 = arith.constant 0 : i32
    %2 = arith.cmpi ne, %1, %c0_i32_0 : i32
    scf.if %2 {
      %c0_18 = arith.constant 0 : index
      %c0_19 = arith.constant 0 : index
      %31 = vector.load %arg2[%c0_18, %c0_19] : memref<16x32xbf16, #tpu.memory_space<vmem>>, vector<16x32xbf16>
      %32 = arith.extf %31 : vector<16x32xbf16> to vector<16x32xf32>
      %c0_20 = arith.constant 0 : index
      %c0_21 = arith.constant 0 : index
      %33 = vector.load %arg3[%c0_20, %c0_21] : memref<1x32xf32, #tpu.memory_space<vmem>>, vector<1x32xf32>
      %c0_22 = arith.constant 0 : index
      %c0_23 = arith.constant 0 : index
      %34 = vector.load %arg4[%c0_22, %c0_23] : memref<1x32xf32, #tpu.memory_space<vmem>>, vector<1x32xf32>
      %cst_24 = arith.constant dense<0.000000e+00> : vector<16xf32>
      %35 = vector.multi_reduction <add>, %32, %cst_24 [1] : vector<16x32xf32> to vector<16xf32>
      %36 = vector.shape_cast %35 : vector<16xf32> to vector<16x1xf32>
      %cst_25 = arith.constant 3.200000e+01 : f32
      %37 = vector.broadcast %cst_25 : f32 to vector<16x1xf32>
      %38 = arith.divf %36, %37 : vector<16x1xf32>
      %39 = vector.broadcast %38 : vector<16x1xf32> to vector<16x32xf32>
      %40 = arith.subf %32, %39 : vector<16x32xf32>
      %41 = arith.mulf %40, %40 : vector<16x32xf32>
      %cst_26 = arith.constant dense<0.000000e+00> : vector<16xf32>
      %42 = vector.multi_reduction <add>, %41, %cst_26 [1] : vector<16x32xf32> to vector<16xf32>
      %43 = vector.shape_cast %42 : vector<16xf32> to vector<16x1xf32>
      %cst_27 = arith.constant 3.200000e+01 : f32
      %44 = vector.broadcast %cst_27 : f32 to vector<16x1xf32>
      %45 = arith.divf %43, %44 : vector<16x1xf32>
      %46 = vector.broadcast %38 : vector<16x1xf32> to vector<16x32xf32>
      %47 = arith.subf %32, %46 : vector<16x32xf32>
      %cst_28 = arith.constant 9.99999974E-6 : f32
      %48 = vector.broadcast %cst_28 : f32 to vector<16x1xf32>
      %49 = arith.addf %45, %48 : vector<16x1xf32>
      %50 = math.rsqrt %49 : vector<16x1xf32>
      %51 = vector.broadcast %50 : vector<16x1xf32> to vector<16x32xf32>
      %52 = arith.mulf %47, %51 : vector<16x32xf32>
      %53 = vector.broadcast %33 : vector<1x32xf32> to vector<16x32xf32>
      %54 = arith.mulf %52, %53 : vector<16x32xf32>
      %55 = vector.broadcast %34 : vector<1x32xf32> to vector<16x32xf32>
      %56 = arith.addf %54, %55 : vector<16x32xf32>
      %57 = arith.truncf %56 : vector<16x32xf32> to vector<16x32xbf16>
      %c0_29 = arith.constant 0 : index
      %c0_30 = arith.constant 0 : index
      %58 = vector.load %arg12[%c0_29, %c0_30] : memref<16x32xbf16, #tpu.memory_space<vmem>>, vector<16x32xbf16>
      tpu.vector_store %arg12[%c0_29, %c0_30], %57 {strides = array<i32>} : memref<16x32xbf16, #tpu.memory_space<vmem>>, vector<16x32xbf16>,
      %cst_31 = arith.constant 0.000000e+00 : f32
      %59 = vector.broadcast %cst_31 : f32 to vector<16x32xf32>
      %c0_32 = arith.constant 0 : index
      %c0_33 = arith.constant 0 : index
      %60 = vector.load %arg13[%c0_32, %c0_33] : memref<16x32xf32, #tpu.memory_space<vmem>>, vector<16x32xf32>
      tpu.vector_store %arg13[%c0_32, %c0_33], %59 {strides = array<i32>} : memref<16x32xf32, #tpu.memory_space<vmem>>, vector<16x32xf32>,
    } else {
    }
    %c0 = arith.constant 0 : index
    %c0_1 = arith.constant 0 : index
    %3 = vector.load %arg12[%c0, %c0_1] : memref<16x32xbf16, #tpu.memory_space<vmem>>, vector<16x32xbf16>
    %c0_2 = arith.constant 0 : index
    %c0_3 = arith.constant 0 : index
    %4 = vector.load %arg5[%c0_2, %c0_3] : memref<32x128xbf16, #tpu.memory_space<vmem>>, vector<32x128xbf16>
    %cst = arith.constant dense<0.000000e+00> : vector<16x128xf32>
    %5 = tpu.matmul %3, %4, %cst {dimension_numbers = #tpu.dot_dimension_numbers<[1], [0], [0], [1], [0, 0, 1, 1], [], []>} : vector<16x32xbf16>, vector<32x128xbf16>, vector<16x128xf32> -> vector<16x128xf32>
    %c0_4 = arith.constant 0 : index
    %c0_5 = arith.constant 0 : index
    %6 = vector.load %arg6[%c0_4, %c0_5] : memref<1x128xf32, #tpu.memory_space<vmem>>, vector<1x128xf32>
    %7 = vector.broadcast %6 : vector<1x128xf32> to vector<16x128xf32>
    %8 = arith.addf %5, %7 : vector<16x128xf32>
    %cst_6 = arith.constant 5.000000e-01 : f32
    %9 = vector.broadcast %cst_6 : f32 to vector<16x128xf32>
    %10 = arith.mulf %9, %8 : vector<16x128xf32>
    %cst_7 = arith.constant 4.471500e-02 : f32
    %11 = vector.broadcast %cst_7 : f32 to vector<16x128xf32>
    %12 = arith.mulf %11, %8 : vector<16x128xf32>
    %13 = arith.mulf %12, %8 : vector<16x128xf32>
    %14 = arith.mulf %13, %8 : vector<16x128xf32>
    %15 = arith.addf %8, %14 : vector<16x128xf32>
    %cst_8 = arith.constant 0.797884583 : f32
    %16 = vector.broadcast %cst_8 : f32 to vector<16x128xf32>
    %17 = arith.mulf %16, %15 : vector<16x128xf32>
    %18 = math.tanh %17 : vector<16x128xf32>
    %cst_9 = arith.constant 1.000000e+00 : f32
    %19 = vector.broadcast %cst_9 : f32 to vector<16x128xf32>
    %20 = arith.addf %19, %18 : vector<16x128xf32>
    %21 = arith.mulf %10, %20 : vector<16x128xf32>
    %c0_10 = arith.constant 0 : index
    %c0_11 = arith.constant 0 : index
    %22 = vector.load %arg13[%c0_10, %c0_11] : memref<16x32xf32, #tpu.memory_space<vmem>>, vector<16x32xf32>
    %23 = arith.truncf %21 : vector<16x128xf32> to vector<16x128xbf16>
    %c0_12 = arith.constant 0 : index
    %c0_13 = arith.constant 0 : index
    %24 = vector.load %arg7[%c0_12, %c0_13] : memref<128x32xbf16, #tpu.memory_space<vmem>>, vector<128x32xbf16>
    %cst_14 = arith.constant dense<0.000000e+00> : vector<16x32xf32>
    %25 = tpu.matmul %23, %24, %cst_14 {dimension_numbers = #tpu.dot_dimension_numbers<[1], [0], [0], [1], [0, 0, 1, 1], [], []>} : vector<16x128xbf16>, vector<128x32xbf16>, vector<16x32xf32> -> vector<16x32xf32>
    %26 = arith.addf %22, %25 : vector<16x32xf32>
    %c0_15 = arith.constant 0 : index
    %c0_16 = arith.constant 0 : index
    %27 = vector.load %arg13[%c0_15, %c0_16] : memref<16x32xf32, #tpu.memory_space<vmem>>, vector<16x32xf32>
    tpu.vector_store %arg13[%c0_15, %c0_16], %26 {strides = array<i32>} : memref<16x32xf32, #tpu.memory_space<vmem>>, vector<16x32xf32>,
    %c1_i32 = arith.constant 1 : i32
    %28 = arith.cmpi eq, %arg1, %c1_i32 : i32
    %29 = arith.extui %28 : i1 to i32
    %c0_i32_17 = arith.constant 0 : i32
    %30 = arith.cmpi ne, %29, %c0_i32_17 : i32
    scf.if %30 {
      %c0_18 = arith.constant 0 : index
      %c0_19 = arith.constant 0 : index
      %31 = vector.load %arg2[%c0_18, %c0_19] : memref<16x32xbf16, #tpu.memory_space<vmem>>, vector<16x32xbf16>
      %32 = arith.extf %31 : vector<16x32xbf16> to vector<16x32xf32>
      %c0_20 = arith.constant 0 : index
      %c0_21 = arith.constant 0 : index
      %33 = vector.load %arg13[%c0_20, %c0_21] : memref<16x32xf32, #tpu.memory_space<vmem>>, vector<16x32xf32>
      %34 = arith.addf %32, %33 : vector<16x32xf32>
      %c0_22 = arith.constant 0 : index
      %c0_23 = arith.constant 0 : index
      %35 = vector.load %arg8[%c0_22, %c0_23] : memref<1x32xf32, #tpu.memory_space<vmem>>, vector<1x32xf32>
      %36 = vector.broadcast %35 : vector<1x32xf32> to vector<16x32xf32>
      %37 = arith.addf %34, %36 : vector<16x32xf32>
      %c0_24 = arith.constant 0 : index
      %c0_25 = arith.constant 0 : index
      %38 = vector.load %arg9[%c0_24, %c0_25] : memref<1x32xf32, #tpu.memory_space<vmem>>, vector<1x32xf32>
      %c0_26 = arith.constant 0 : index
      %c0_27 = arith.constant 0 : index
      %39 = vector.load %arg10[%c0_26, %c0_27] : memref<1x32xf32, #tpu.memory_space<vmem>>, vector<1x32xf32>
      %cst_28 = arith.constant dense<0.000000e+00> : vector<16xf32>
      %40 = vector.multi_reduction <add>, %37, %cst_28 [1] : vector<16x32xf32> to vector<16xf32>
      %41 = vector.shape_cast %40 : vector<16xf32> to vector<16x1xf32>
      %cst_29 = arith.constant 3.200000e+01 : f32
      %42 = vector.broadcast %cst_29 : f32 to vector<16x1xf32>
      %43 = arith.divf %41, %42 : vector<16x1xf32>
      %44 = vector.broadcast %43 : vector<16x1xf32> to vector<16x32xf32>
      %45 = arith.subf %37, %44 : vector<16x32xf32>
      %46 = arith.mulf %45, %45 : vector<16x32xf32>
      %cst_30 = arith.constant dense<0.000000e+00> : vector<16xf32>
      %47 = vector.multi_reduction <add>, %46, %cst_30 [1] : vector<16x32xf32> to vector<16xf32>
      %48 = vector.shape_cast %47 : vector<16xf32> to vector<16x1xf32>
      %cst_31 = arith.constant 3.200000e+01 : f32
      %49 = vector.broadcast %cst_31 : f32 to vector<16x1xf32>
      %50 = arith.divf %48, %49 : vector<16x1xf32>
      %51 = vector.broadcast %43 : vector<16x1xf32> to vector<16x32xf32>
      %52 = arith.subf %37, %51 : vector<16x32xf32>
      %cst_32 = arith.constant 9.99999974E-6 : f32
      %53 = vector.broadcast %cst_32 : f32 to vector<16x1xf32>
      %54 = arith.addf %50, %53 : vector<16x1xf32>
      %55 = math.rsqrt %54 : vector<16x1xf32>
      %56 = vector.broadcast %55 : vector<16x1xf32> to vector<16x32xf32>
      %57 = arith.mulf %52, %56 : vector<16x32xf32>
      %58 = vector.broadcast %38 : vector<1x32xf32> to vector<16x32xf32>
      %59 = arith.mulf %57, %58 : vector<16x32xf32>
      %60 = vector.broadcast %39 : vector<1x32xf32> to vector<16x32xf32>
      %61 = arith.addf %59, %60 : vector<16x32xf32>
      %62 = arith.truncf %61 : vector<16x32xf32> to vector<16x32xbf16>
      %c0_33 = arith.constant 0 : index
      %c0_34 = arith.constant 0 : index
      %63 = vector.load %arg11[%c0_33, %c0_34] : memref<16x32xbf16, #tpu.memory_space<vmem>>, vector<16x32xbf16>
      tpu.vector_store %arg11[%c0_33, %c0_34], %62 {strides = array<i32>} : memref<16x32xbf16, #tpu.memory_space<vmem>>, vector<16x32xbf16>,
    } else {
    }
    return
  }
  func.func @transform_0(%arg0: i32, %arg1: i32) -> (i32, i32) {
    %c0_i32 = arith.constant 0 : i32
    %c0_i32_0 = arith.constant 0 : i32
    return %arg0, %c0_i32 : i32, i32
  }
  func.func @transform_1(%arg0: i32, %arg1: i32) -> (i32, i32) {
    %c0_i32 = arith.constant 0 : i32
    %c0_i32_0 = arith.constant 0 : i32
    %c0_i32_1 = arith.constant 0 : i32
    return %c0_i32, %c0_i32_0 : i32, i32
  }
  func.func @transform_2(%arg0: i32, %arg1: i32) -> (i32, i32) {
    %c0_i32 = arith.constant 0 : i32
    %c0_i32_0 = arith.constant 0 : i32
    %c0_i32_1 = arith.constant 0 : i32
    return %c0_i32, %c0_i32_0 : i32, i32
  }
  func.func @transform_3(%arg0: i32, %arg1: i32) -> (i32, i32) {
    %c0_i32 = arith.constant 0 : i32
    %c0_i32_0 = arith.constant 0 : i32
    return %c0_i32, %arg1 : i32, i32
  }
  func.func @transform_4(%arg0: i32, %arg1: i32) -> (i32, i32) {
    %c0_i32 = arith.constant 0 : i32
    %c0_i32_0 = arith.constant 0 : i32
    return %c0_i32, %arg1 : i32, i32
  }
  func.func @transform_5(%arg0: i32, %arg1: i32) -> (i32, i32) {
    %c0_i32 = arith.constant 0 : i32
    %c0_i32_0 = arith.constant 0 : i32
    return %arg1, %c0_i32 : i32, i32
  }
  func.func @transform_6(%arg0: i32, %arg1: i32) -> (i32, i32) {
    %c0_i32 = arith.constant 0 : i32
    %c0_i32_0 = arith.constant 0 : i32
    %c0_i32_1 = arith.constant 0 : i32
    return %c0_i32, %c0_i32_0 : i32, i32
  }
  func.func @transform_7(%arg0: i32, %arg1: i32) -> (i32, i32) {
    %c0_i32 = arith.constant 0 : i32
    %c0_i32_0 = arith.constant 0 : i32
    %c0_i32_1 = arith.constant 0 : i32
    return %c0_i32, %c0_i32_0 : i32, i32
  }
  func.func @transform_8(%arg0: i32, %arg1: i32) -> (i32, i32) {
    %c0_i32 = arith.constant 0 : i32
    %c0_i32_0 = arith.constant 0 : i32
    %c0_i32_1 = arith.constant 0 : i32
    return %c0_i32, %c0_i32_0 : i32, i32
  }
  func.func @transform_9(%arg0: i32, %arg1: i32) -> (i32, i32) {
    %c0_i32 = arith.constant 0 : i32
    %c0_i32_0 = arith.constant 0 : i32
    return %arg0, %c0_i32 : i32, i32
  }
}

module attributes {stable_mosaic.version = 11 : i64} {
  func.func @attn_block_kernel(%arg0: i32, %arg1: i32, %arg2: i32, %arg3: memref<8x32xbf16, #tpu.memory_space<vmem>>, %arg4: memref<8x32xbf16, #tpu.memory_space<vmem>>, %arg5: memref<1x1x1x8xi32, #tpu.memory_space<vmem>>, %arg6: memref<1x32xf32, #tpu.memory_space<vmem>>, %arg7: memref<1x32xf32, #tpu.memory_space<vmem>>, %arg8: memref<32x32xbf16, #tpu.memory_space<vmem>>, %arg9: memref<32x64xbf16, #tpu.memory_space<vmem>>, %arg10: memref<32x32xbf16, #tpu.memory_space<vmem>>, %arg11: memref<1x32xf32, #tpu.memory_space<vmem>>, %arg12: memref<8x32xbf16, #tpu.memory_space<vmem>>, %arg13: memref<4x8x8xbf16, #tpu.memory_space<vmem>>, %arg14: memref<4x8xf32, #tpu.memory_space<vmem>>, %arg15: memref<4x8xf32, #tpu.memory_space<vmem>>, %arg16: memref<4x8x8xf32, #tpu.memory_space<vmem>>) attributes {dimension_semantics = [#tpu.dimension_semantics<parallel>, #tpu.dimension_semantics<parallel>, #tpu.dimension_semantics<arbitrary>], iteration_bounds = array<i64: 2, 2, 2>, scalar_prefetch = 0 : i64, scratch_operands = 4 : i64, tpu.core_type = #tpu.core_type<tc>, window_params = [{transform_indices = @transform_0, window_bounds = array<i64: 8, 32>}, {transform_indices = @transform_1, window_bounds = array<i64: 8, 32>}, {transform_indices = @transform_2, window_bounds = array<i64: 1, 1, 1, 8>}, {pipeline_mode = #tpu.pipeline_mode<synchronous>, transform_indices = @transform_3, window_bounds = array<i64: 1, 32>}, {pipeline_mode = #tpu.pipeline_mode<synchronous>, transform_indices = @transform_4, window_bounds = array<i64: 1, 32>}, {pipeline_mode = #tpu.pipeline_mode<synchronous>, transform_indices = @transform_5, window_bounds = array<i64: 32, 32>}, {pipeline_mode = #tpu.pipeline_mode<synchronous>, transform_indices = @transform_6, window_bounds = array<i64: 32, 64>}, {pipeline_mode = #tpu.pipeline_mode<synchronous>, transform_indices = @transform_7, window_bounds = array<i64: 32, 32>}, {pipeline_mode = #tpu.pipeline_mode<synchronous>, transform_indices = @transform_8, window_bounds = array<i64: 1, 32>}, {transform_indices = @transform_9, window_bounds = array<i64: 8, 32>}]} {
    %c8_i32 = arith.constant 8 : i32
    %0 = arith.muli %arg1, %c8_i32 : i32
    %c8_i32_0 = arith.constant 8 : i32
    %1 = arith.muli %arg2, %c8_i32_0 : i32
    %c0_i32 = arith.constant 0 : i32
    %2 = arith.cmpi eq, %arg2, %c0_i32 : i32
    %3 = arith.extui %2 : i1 to i32
    %c0_i32_1 = arith.constant 0 : i32
    %4 = arith.cmpi ne, %3, %c0_i32_1 : i32
    scf.if %4 {
      %c0 = arith.constant 0 : index
      %c0_4 = arith.constant 0 : index
      %12 = vector.load %arg3[%c0, %c0_4] : memref<8x32xbf16, #tpu.memory_space<vmem>>, vector<8x32xbf16>
      %13 = arith.extf %12 : vector<8x32xbf16> to vector<8x32xf32>
      %c0_5 = arith.constant 0 : index
      %c0_6 = arith.constant 0 : index
      %14 = vector.load %arg6[%c0_5, %c0_6] : memref<1x32xf32, #tpu.memory_space<vmem>>, vector<1x32xf32>
      %c0_7 = arith.constant 0 : index
      %c0_8 = arith.constant 0 : index
      %15 = vector.load %arg7[%c0_7, %c0_8] : memref<1x32xf32, #tpu.memory_space<vmem>>, vector<1x32xf32>
      %cst = arith.constant dense<0.000000e+00> : vector<8xf32>
      %16 = vector.multi_reduction <add>, %13, %cst [1] : vector<8x32xf32> to vector<8xf32>
      %17 = vector.shape_cast %16 : vector<8xf32> to vector<8x1xf32>
      %cst_9 = arith.constant 3.200000e+01 : f32
      %18 = vector.broadcast %cst_9 : f32 to vector<8x1xf32>
      %19 = arith.divf %17, %18 : vector<8x1xf32>
      %20 = vector.broadcast %19 : vector<8x1xf32> to vector<8x32xf32>
      %21 = arith.subf %13, %20 : vector<8x32xf32>
      %22 = arith.mulf %21, %21 : vector<8x32xf32>
      %cst_10 = arith.constant dense<0.000000e+00> : vector<8xf32>
      %23 = vector.multi_reduction <add>, %22, %cst_10 [1] : vector<8x32xf32> to vector<8xf32>
      %24 = vector.shape_cast %23 : vector<8xf32> to vector<8x1xf32>
      %cst_11 = arith.constant 3.200000e+01 : f32
      %25 = vector.broadcast %cst_11 : f32 to vector<8x1xf32>
      %26 = arith.divf %24, %25 : vector<8x1xf32>
      %27 = vector.broadcast %19 : vector<8x1xf32> to vector<8x32xf32>
      %28 = arith.subf %13, %27 : vector<8x32xf32>
      %cst_12 = arith.constant 9.99999974E-6 : f32
      %29 = vector.broadcast %cst_12 : f32 to vector<8x1xf32>
      %30 = arith.addf %26, %29 : vector<8x1xf32>
      %31 = math.rsqrt %30 : vector<8x1xf32>
      %32 = vector.broadcast %31 : vector<8x1xf32> to vector<8x32xf32>
      %33 = arith.mulf %28, %32 : vector<8x32xf32>
      %34 = vector.broadcast %14 : vector<1x32xf32> to vector<8x32xf32>
      %35 = arith.mulf %33, %34 : vector<8x32xf32>
      %36 = vector.broadcast %15 : vector<1x32xf32> to vector<8x32xf32>
      %37 = arith.addf %35, %36 : vector<8x32xf32>
      %38 = arith.truncf %37 : vector<8x32xf32> to vector<8x32xbf16>
      %c0_13 = arith.constant 0 : index
      %c0_14 = arith.constant 0 : index
      %39 = vector.load %arg8[%c0_13, %c0_14] : memref<32x32xbf16, #tpu.memory_space<vmem>>, vector<32x32xbf16>
      %cst_15 = arith.constant dense<0.000000e+00> : vector<8x32xf32>
      %40 = tpu.matmul %38, %39, %cst_15 {dimension_numbers = #tpu.dot_dimension_numbers<[1], [0], [0], [1], [0, 0, 1, 1], [], []>} : vector<8x32xbf16>, vector<32x32xbf16>, vector<8x32xf32> -> vector<8x32xf32>
      %41 = vector.shape_cast %40 : vector<8x32xf32> to vector<8x4x8xf32>
      %42 = tpu.transpose %41, [1, 0, 2] : vector<8x4x8xf32> -> vector<4x8x8xf32>
      %43 = arith.truncf %42 : vector<4x8x8xf32> to vector<4x8x8xbf16>
      %c0_16 = arith.constant 0 : index
      %c0_17 = arith.constant 0 : index
      %c0_18 = arith.constant 0 : index
      %44 = vector.load %arg13[%c0_16, %c0_17, %c0_18] : memref<4x8x8xbf16, #tpu.memory_space<vmem>>, vector<4x8x8xbf16>
      tpu.vector_store %arg13[%c0_16, %c0_17, %c0_18], %43 {strides = array<i32>} : memref<4x8x8xbf16, #tpu.memory_space<vmem>>, vector<4x8x8xbf16>,
      %cst_19 = arith.constant 0xFF800000 : f32
      %45 = vector.broadcast %cst_19 : f32 to vector<4x8xf32>
      %c0_20 = arith.constant 0 : index
      %c0_21 = arith.constant 0 : index
      %46 = vector.load %arg14[%c0_20, %c0_21] : memref<4x8xf32, #tpu.memory_space<vmem>>, vector<4x8xf32>
      tpu.vector_store %arg14[%c0_20, %c0_21], %45 {strides = array<i32>} : memref<4x8xf32, #tpu.memory_space<vmem>>, vector<4x8xf32>,
      %cst_22 = arith.constant 0.000000e+00 : f32
      %47 = vector.broadcast %cst_22 : f32 to vector<4x8xf32>
      %c0_23 = arith.constant 0 : index
      %c0_24 = arith.constant 0 : index
      %48 = vector.load %arg15[%c0_23, %c0_24] : memref<4x8xf32, #tpu.memory_space<vmem>>, vector<4x8xf32>
      tpu.vector_store %arg15[%c0_23, %c0_24], %47 {strides = array<i32>} : memref<4x8xf32, #tpu.memory_space<vmem>>, vector<4x8xf32>,
      %cst_25 = arith.constant 0.000000e+00 : f32
      %49 = vector.broadcast %cst_25 : f32 to vector<4x8x8xf32>
      %c0_26 = arith.constant 0 : index
      %c0_27 = arith.constant 0 : index
      %c0_28 = arith.constant 0 : index
      %50 = vector.load %arg16[%c0_26, %c0_27, %c0_28] : memref<4x8x8xf32, #tpu.memory_space<vmem>>, vector<4x8x8xf32>
      tpu.vector_store %arg16[%c0_26, %c0_27, %c0_28], %49 {strides = array<i32>} : memref<4x8x8xf32, #tpu.memory_space<vmem>>, vector<4x8x8xf32>,
    } else {
    }
    %c7_i32 = arith.constant 7 : i32
    %5 = arith.addi %0, %c7_i32 : i32
    %6 = arith.cmpi sle, %1, %5 : i32
    %7 = arith.extui %6 : i1 to i32
    %c0_i32_2 = arith.constant 0 : i32
    %8 = arith.cmpi ne, %7, %c0_i32_2 : i32
    scf.if %8 {
      %c0 = arith.constant 0 : index
      %c0_4 = arith.constant 0 : index
      %12 = vector.load %arg4[%c0, %c0_4] : memref<8x32xbf16, #tpu.memory_space<vmem>>, vector<8x32xbf16>
      %13 = arith.extf %12 : vector<8x32xbf16> to vector<8x32xf32>
      %c0_5 = arith.constant 0 : index
      %c0_6 = arith.constant 0 : index
      %14 = vector.load %arg6[%c0_5, %c0_6] : memref<1x32xf32, #tpu.memory_space<vmem>>, vector<1x32xf32>
      %c0_7 = arith.constant 0 : index
      %c0_8 = arith.constant 0 : index
      %15 = vector.load %arg7[%c0_7, %c0_8] : memref<1x32xf32, #tpu.memory_space<vmem>>, vector<1x32xf32>
      %cst = arith.constant dense<0.000000e+00> : vector<8xf32>
      %16 = vector.multi_reduction <add>, %13, %cst [1] : vector<8x32xf32> to vector<8xf32>
      %17 = vector.shape_cast %16 : vector<8xf32> to vector<8x1xf32>
      %cst_9 = arith.constant 3.200000e+01 : f32
      %18 = vector.broadcast %cst_9 : f32 to vector<8x1xf32>
      %19 = arith.divf %17, %18 : vector<8x1xf32>
      %20 = vector.broadcast %19 : vector<8x1xf32> to vector<8x32xf32>
      %21 = arith.subf %13, %20 : vector<8x32xf32>
      %22 = arith.mulf %21, %21 : vector<8x32xf32>
      %cst_10 = arith.constant dense<0.000000e+00> : vector<8xf32>
      %23 = vector.multi_reduction <add>, %22, %cst_10 [1] : vector<8x32xf32> to vector<8xf32>
      %24 = vector.shape_cast %23 : vector<8xf32> to vector<8x1xf32>
      %cst_11 = arith.constant 3.200000e+01 : f32
      %25 = vector.broadcast %cst_11 : f32 to vector<8x1xf32>
      %26 = arith.divf %24, %25 : vector<8x1xf32>
      %27 = vector.broadcast %19 : vector<8x1xf32> to vector<8x32xf32>
      %28 = arith.subf %13, %27 : vector<8x32xf32>
      %cst_12 = arith.constant 9.99999974E-6 : f32
      %29 = vector.broadcast %cst_12 : f32 to vector<8x1xf32>
      %30 = arith.addf %26, %29 : vector<8x1xf32>
      %31 = math.rsqrt %30 : vector<8x1xf32>
      %32 = vector.broadcast %31 : vector<8x1xf32> to vector<8x32xf32>
      %33 = arith.mulf %28, %32 : vector<8x32xf32>
      %34 = vector.broadcast %14 : vector<1x32xf32> to vector<8x32xf32>
      %35 = arith.mulf %33, %34 : vector<8x32xf32>
      %36 = vector.broadcast %15 : vector<1x32xf32> to vector<8x32xf32>
      %37 = arith.addf %35, %36 : vector<8x32xf32>
      %38 = arith.truncf %37 : vector<8x32xf32> to vector<8x32xbf16>
      %c0_13 = arith.constant 0 : index
      %c0_14 = arith.constant 0 : index
      %39 = vector.load %arg9[%c0_13, %c0_14] : memref<32x64xbf16, #tpu.memory_space<vmem>>, vector<32x64xbf16>
      %cst_15 = arith.constant dense<0.000000e+00> : vector<8x64xf32>
      %40 = tpu.matmul %38, %39, %cst_15 {dimension_numbers = #tpu.dot_dimension_numbers<[1], [0], [0], [1], [0, 0, 1, 1], [], []>} : vector<8x32xbf16>, vector<32x64xbf16>, vector<8x64xf32> -> vector<8x64xf32>
      %41 = vector.extract_strided_slice %40 {offsets = [0, 0], sizes = [8, 32], strides = [1, 1]} : vector<8x64xf32> to vector<8x32xf32>
      %42 = vector.shape_cast %41 : vector<8x32xf32> to vector<8x4x8xf32>
      %43 = tpu.transpose %42, [1, 0, 2] : vector<8x4x8xf32> -> vector<4x8x8xf32>
      %44 = arith.truncf %43 : vector<4x8x8xf32> to vector<4x8x8xbf16>
      %45 = vector.extract_strided_slice %40 {offsets = [0, 32], sizes = [8, 32], strides = [1, 1]} : vector<8x64xf32> to vector<8x32xf32>
      %46 = vector.shape_cast %45 : vector<8x32xf32> to vector<8x4x8xf32>
      %47 = tpu.transpose %46, [1, 0, 2] : vector<8x4x8xf32> -> vector<4x8x8xf32>
      %48 = arith.truncf %47 : vector<4x8x8xf32> to vector<4x8x8xbf16>
      %49 = tpu.iota {dimensions = array<i32: 0>} : vector<8x8xi32>
      %50 = vector.broadcast %0 : i32 to vector<8x8xi32>
      %51 = arith.addi %50, %49 : vector<8x8xi32>
      %52 = tpu.iota {dimensions = array<i32: 1>} : vector<8x8xi32>
      %53 = vector.broadcast %1 : i32 to vector<8x8xi32>
      %54 = arith.addi %53, %52 : vector<8x8xi32>
      %c0_16 = arith.constant 0 : index
      %c0_17 = arith.constant 0 : index
      %c0_18 = arith.constant 0 : index
      %c0_19 = arith.constant 0 : index
      %55 = vector.load %arg5[%c0_16, %c0_17, %c0_18, %c0_19] : memref<1x1x1x8xi32, #tpu.memory_space<vmem>>, vector<1x1x1x8xi32>
      %56 = vector.shape_cast %55 : vector<1x1x1x8xi32> to vector<1x8xi32>
      %c0_i32_20 = arith.constant 0 : i32
      %57 = vector.broadcast %c0_i32_20 : i32 to vector<1x8xi32>
      %58 = arith.cmpi sgt, %56, %57 : vector<1x8xi32>
      %59 = arith.cmpi sge, %51, %54 : vector<8x8xi32>
      %60 = vector.broadcast %58 : vector<1x8xi1> to vector<8x8xi1>
      %61 = arith.andi %59, %60 : vector<8x8xi1>
      %cst_21 = arith.constant 0.000000e+00 : f32
      %cst_22 = arith.constant -1.000000e+09 : f32
      %62 = vector.broadcast %cst_21 : f32 to vector<8x8xf32>
      %63 = vector.broadcast %cst_22 : f32 to vector<8x8xf32>
      %64 = arith.select %61, %62, %63 : vector<8x8xi1>, vector<8x8xf32>
      %c0_23 = arith.constant 0 : index
      %c0_24 = arith.constant 0 : index
      %c0_25 = arith.constant 0 : index
      %65 = vector.load %arg13[%c0_23, %c0_24, %c0_25] : memref<4x8x8xbf16, #tpu.memory_space<vmem>>, vector<4x8x8xbf16>
      "tpu.trace_start"() <{level = 10 : i32, message = "hqd,hkd->hqk"}> : () -> ()
      %cst_26 = arith.constant dense<0.000000e+00> : vector<4x8x8xf32>
      %66 = tpu.matmul %65, %44, %cst_26 {dimension_numbers = #tpu.dot_dimension_numbers<[2], [2], [1], [1], [0, 0, 0, 1, 1, 1], [0], [0]>} : vector<4x8x8xbf16>, vector<4x8x8xbf16>, vector<4x8x8xf32> -> vector<4x8x8xf32>
      "tpu.trace_stop"() : () -> ()
      %67 = vector.shape_cast %64 : vector<8x8xf32> to vector<1x8x8xf32>
      %68 = vector.broadcast %67 : vector<1x8x8xf32> to vector<4x8x8xf32>
      %69 = arith.addf %66, %68 : vector<4x8x8xf32>
      %c0_27 = arith.constant 0 : index
      %c0_28 = arith.constant 0 : index
      %70 = vector.load %arg14[%c0_27, %c0_28] : memref<4x8xf32, #tpu.memory_space<vmem>>, vector<4x8xf32>
      %cst_29 = arith.constant dense<0xFF800000> : vector<4x8xf32>
      %71 = vector.multi_reduction <maximumf>, %69, %cst_29 [2] : vector<4x8x8xf32> to vector<4x8xf32>
      %72 = arith.maximumf %70, %71 : vector<4x8xf32>
      %73 = arith.subf %70, %72 : vector<4x8xf32>
      %74 = math.exp %73 : vector<4x8xf32>
      %75 = vector.shape_cast %72 : vector<4x8xf32> to vector<4x8x1xf32>
      %76 = vector.broadcast %75 : vector<4x8x1xf32> to vector<4x8x8xf32>
      %77 = arith.subf %69, %76 : vector<4x8x8xf32>
      %78 = math.exp %77 : vector<4x8x8xf32>
      %c0_30 = arith.constant 0 : index
      %c0_31 = arith.constant 0 : index
      %79 = vector.load %arg15[%c0_30, %c0_31] : memref<4x8xf32, #tpu.memory_space<vmem>>, vector<4x8xf32>
      %80 = arith.mulf %74, %79 : vector<4x8xf32>
      %cst_32 = arith.constant dense<0.000000e+00> : vector<4x8xf32>
      %81 = vector.multi_reduction <add>, %78, %cst_32 [2] : vector<4x8x8xf32> to vector<4x8xf32>
      %82 = arith.addf %80, %81 : vector<4x8xf32>
      %c0_33 = arith.constant 0 : index
      %c0_34 = arith.constant 0 : index
      %83 = vector.load %arg15[%c0_33, %c0_34] : memref<4x8xf32, #tpu.memory_space<vmem>>, vector<4x8xf32>
      tpu.vector_store %arg15[%c0_33, %c0_34], %82 {strides = array<i32>} : memref<4x8xf32, #tpu.memory_space<vmem>>, vector<4x8xf32>,
      %84 = vector.shape_cast %74 : vector<4x8xf32> to vector<4x8x1xf32>
      %c0_35 = arith.constant 0 : index
      %c0_36 = arith.constant 0 : index
      %c0_37 = arith.constant 0 : index
      %85 = vector.load %arg16[%c0_35, %c0_36, %c0_37] : memref<4x8x8xf32, #tpu.memory_space<vmem>>, vector<4x8x8xf32>
      %86 = vector.broadcast %84 : vector<4x8x1xf32> to vector<4x8x8xf32>
      %87 = arith.mulf %86, %85 : vector<4x8x8xf32>
      %88 = arith.truncf %78 : vector<4x8x8xf32> to vector<4x8x8xbf16>
      "tpu.trace_start"() <{level = 10 : i32, message = "hqk,hkd->hqd"}> : () -> ()
      %cst_38 = arith.constant dense<0.000000e+00> : vector<4x8x8xf32>
      %89 = tpu.matmul %88, %48, %cst_38 {dimension_numbers = #tpu.dot_dimension_numbers<[2], [1], [1], [2], [0, 0, 0, 1, 1, 2], [0], [0]>} : vector<4x8x8xbf16>, vector<4x8x8xbf16>, vector<4x8x8xf32> -> vector<4x8x8xf32>
      "tpu.trace_stop"() : () -> ()
      %90 = arith.addf %87, %89 : vector<4x8x8xf32>
      %c0_39 = arith.constant 0 : index
      %c0_40 = arith.constant 0 : index
      %c0_41 = arith.constant 0 : index
      %91 = vector.load %arg16[%c0_39, %c0_40, %c0_41] : memref<4x8x8xf32, #tpu.memory_space<vmem>>, vector<4x8x8xf32>
      tpu.vector_store %arg16[%c0_39, %c0_40, %c0_41], %90 {strides = array<i32>} : memref<4x8x8xf32, #tpu.memory_space<vmem>>, vector<4x8x8xf32>,
      %c0_42 = arith.constant 0 : index
      %c0_43 = arith.constant 0 : index
      %92 = vector.load %arg14[%c0_42, %c0_43] : memref<4x8xf32, #tpu.memory_space<vmem>>, vector<4x8xf32>
      tpu.vector_store %arg14[%c0_42, %c0_43], %72 {strides = array<i32>} : memref<4x8xf32, #tpu.memory_space<vmem>>, vector<4x8xf32>,
    } else {
    }
    %c1_i32 = arith.constant 1 : i32
    %9 = arith.cmpi eq, %arg2, %c1_i32 : i32
    %10 = arith.extui %9 : i1 to i32
    %c0_i32_3 = arith.constant 0 : i32
    %11 = arith.cmpi ne, %10, %c0_i32_3 : i32
    scf.if %11 {
      %c0 = arith.constant 0 : index
      %c0_4 = arith.constant 0 : index
      %12 = vector.load %arg15[%c0, %c0_4] : memref<4x8xf32, #tpu.memory_space<vmem>>, vector<4x8xf32>
      %13 = tpu.reciprocal %12 {approx = true} : vector<4x8xf32> -> vector<4x8xf32>
      %c0_5 = arith.constant 0 : index
      %c0_6 = arith.constant 0 : index
      %c0_7 = arith.constant 0 : index
      %14 = vector.load %arg16[%c0_5, %c0_6, %c0_7] : memref<4x8x8xf32, #tpu.memory_space<vmem>>, vector<4x8x8xf32>
      %15 = vector.shape_cast %13 : vector<4x8xf32> to vector<4x8x1xf32>
      %16 = vector.broadcast %15 : vector<4x8x1xf32> to vector<4x8x8xf32>
      %17 = arith.mulf %14, %16 : vector<4x8x8xf32>
      %18 = tpu.transpose %17, [1, 0, 2] : vector<4x8x8xf32> -> vector<8x4x8xf32>
      %19 = vector.shape_cast %18 : vector<8x4x8xf32> to vector<8x32xf32>
      %20 = arith.truncf %19 : vector<8x32xf32> to vector<8x32xbf16>
      %c0_8 = arith.constant 0 : index
      %c0_9 = arith.constant 0 : index
      %21 = vector.load %arg10[%c0_8, %c0_9] : memref<32x32xbf16, #tpu.memory_space<vmem>>, vector<32x32xbf16>
      %cst = arith.constant dense<0.000000e+00> : vector<8x32xf32>
      %22 = tpu.matmul %20, %21, %cst {dimension_numbers = #tpu.dot_dimension_numbers<[1], [0], [0], [1], [0, 0, 1, 1], [], []>} : vector<8x32xbf16>, vector<32x32xbf16>, vector<8x32xf32> -> vector<8x32xf32>
      %c0_10 = arith.constant 0 : index
      %c0_11 = arith.constant 0 : index
      %23 = vector.load %arg11[%c0_10, %c0_11] : memref<1x32xf32, #tpu.memory_space<vmem>>, vector<1x32xf32>
      %24 = vector.broadcast %23 : vector<1x32xf32> to vector<8x32xf32>
      %25 = arith.addf %22, %24 : vector<8x32xf32>
      %c0_12 = arith.constant 0 : index
      %c0_13 = arith.constant 0 : index
      %26 = vector.load %arg3[%c0_12, %c0_13] : memref<8x32xbf16, #tpu.memory_space<vmem>>, vector<8x32xbf16>
      %27 = arith.extf %26 : vector<8x32xbf16> to vector<8x32xf32>
      %28 = arith.addf %27, %25 : vector<8x32xf32>
      %29 = arith.truncf %28 : vector<8x32xf32> to vector<8x32xbf16>
      %c0_14 = arith.constant 0 : index
      %c0_15 = arith.constant 0 : index
      %30 = vector.load %arg12[%c0_14, %c0_15] : memref<8x32xbf16, #tpu.memory_space<vmem>>, vector<8x32xbf16>
      tpu.vector_store %arg12[%c0_14, %c0_15], %29 {strides = array<i32>} : memref<8x32xbf16, #tpu.memory_space<vmem>>, vector<8x32xbf16>,
    } else {
    }
    return
  }
  func.func @transform_0(%arg0: i32, %arg1: i32, %arg2: i32) -> (i32, i32) {
    %c2_i32 = arith.constant 2 : i32
    %0 = arith.muli %arg0, %c2_i32 : i32
    %1 = arith.addi %0, %arg1 : i32
    %c0_i32 = arith.constant 0 : i32
    %c0_i32_0 = arith.constant 0 : i32
    return %1, %c0_i32 : i32, i32
  }
  func.func @transform_1(%arg0: i32, %arg1: i32, %arg2: i32) -> (i32, i32) {
    %c2_i32 = arith.constant 2 : i32
    %0 = arith.muli %arg0, %c2_i32 : i32
    %1 = arith.addi %0, %arg2 : i32
    %c0_i32 = arith.constant 0 : i32
    %c0_i32_0 = arith.constant 0 : i32
    return %1, %c0_i32 : i32, i32
  }
  func.func @transform_2(%arg0: i32, %arg1: i32, %arg2: i32) -> (i32, i32, i32, i32) {
    %c0_i32 = arith.constant 0 : i32
    %c0_i32_0 = arith.constant 0 : i32
    %c0_i32_1 = arith.constant 0 : i32
    return %arg0, %arg2, %c0_i32, %c0_i32_0 : i32, i32, i32, i32
  }
  func.func @transform_3(%arg0: i32, %arg1: i32, %arg2: i32) -> (i32, i32) {
    %c0_i32 = arith.constant 0 : i32
    %c0_i32_0 = arith.constant 0 : i32
    %c0_i32_1 = arith.constant 0 : i32
    return %c0_i32, %c0_i32_0 : i32, i32
  }
  func.func @transform_4(%arg0: i32, %arg1: i32, %arg2: i32) -> (i32, i32) {
    %c0_i32 = arith.constant 0 : i32
    %c0_i32_0 = arith.constant 0 : i32
    %c0_i32_1 = arith.constant 0 : i32
    return %c0_i32, %c0_i32_0 : i32, i32
  }
  func.func @transform_5(%arg0: i32, %arg1: i32, %arg2: i32) -> (i32, i32) {
    %c0_i32 = arith.constant 0 : i32
    %c0_i32_0 = arith.constant 0 : i32
    %c0_i32_1 = arith.constant 0 : i32
    return %c0_i32, %c0_i32_0 : i32, i32
  }
  func.func @transform_6(%arg0: i32, %arg1: i32, %arg2: i32) -> (i32, i32) {
    %c0_i32 = arith.constant 0 : i32
    %c0_i32_0 = arith.constant 0 : i32
    %c0_i32_1 = arith.constant 0 : i32
    return %c0_i32, %c0_i32_0 : i32, i32
  }
  func.func @transform_7(%arg0: i32, %arg1: i32, %arg2: i32) -> (i32, i32) {
    %c0_i32 = arith.constant 0 : i32
    %c0_i32_0 = arith.constant 0 : i32
    %c0_i32_1 = arith.constant 0 : i32
    return %c0_i32, %c0_i32_0 : i32, i32
  }
  func.func @transform_8(%arg0: i32, %arg1: i32, %arg2: i32) -> (i32, i32) {
    %c0_i32 = arith.constant 0 : i32
    %c0_i32_0 = arith.constant 0 : i32
    %c0_i32_1 = arith.constant 0 : i32
    return %c0_i32, %c0_i32_0 : i32, i32
  }
  func.func @transform_9(%arg0: i32, %arg1: i32, %arg2: i32) -> (i32, i32) {
    %c2_i32 = arith.constant 2 : i32
    %0 = arith.muli %arg0, %c2_i32 : i32
    %1 = arith.addi %0, %arg1 : i32
    %c0_i32 = arith.constant 0 : i32
    %c0_i32_0 = arith.constant 0 : i32
    return %1, %c0_i32 : i32, i32
  }
}

</mosaic_0001>

<llo_original>
// kernel: gptneo_model_forward.7
$region0: #{gptneo_model_forward.7}
  #allocation0 [shape = 'u32[]', space=smem, size = 0x4, offset = 0x4, fixed_abs, tag = 'smem constant byte address 0x4 - core index']
  #allocation1 [shape = 'u32[144,128]{1,0:T(1,128)}', space=vmem, size = 0x12000, scoped, tag = 'internal scratch']
  #allocation2 [shape = 'bf16[16,32]{1,0:T(8,128)(2,1)}', space=vmem, size = 0x1000, scoped, tag = 'scratch operand']
  #allocation3 [shape = 'f32[16,32]{1,0:T(8,128)}', space=vmem, size = 0x2000, scoped, tag = 'scratch operand']
  %s0 = inlined_call_operand.vmem [shape: bf16[32,32], index: 0, kind: input, shape index: {}, may-alias: {0,9}]
  %s1 = inlined_call_operand.vmem [shape: f32[1,32], index: 1, kind: input, shape index: {}]
  %s2 = inlined_call_operand.vmem [shape: f32[1,32], index: 2, kind: input, shape index: {}]
  %s3 = inlined_call_operand.vmem [shape: bf16[32,256], index: 3, kind: input, shape index: {}]
  %s4 = inlined_call_operand.vmem [shape: f32[1,256], index: 4, kind: input, shape index: {}]
  %s5 = inlined_call_operand.vmem [shape: bf16[256,32], index: 5, kind: input, shape index: {}]
  %s6 = inlined_call_operand.vmem [shape: f32[1,32], index: 6, kind: input, shape index: {}]
  %s7 = inlined_call_operand.vmem [shape: f32[1,32], index: 7, kind: input, shape index: {}]
  %s8 = inlined_call_operand.vmem [shape: f32[1,32], index: 8, kind: input, shape index: {}]
  %s9 = inlined_call_operand.vmem [shape: bf16[32,32], index: 9, kind: output, shape index: {}, may-alias: {0,9}]
  %s10 = sld [smem:[#allocation0]]
  $region118: #{gptneo_model_forward.7} parent=0
    _
  %s12 = ssub.s32 1, %s10
  %s13 = scalar_select 0, %s12, %s10
  $region1: #{gptneo_model_forward.7} parent=0
    #allocation4 [shape = 'u8[16384]{0}', space=vmem, size = 0x4000, scoped, tag = 'input window, operand 3']
    loop: start=0, step=1, limit=6
    $region2: #{gptneo_model_forward.7} parent=1 // loop_pre_header
      _
    $region3: #{gptneo_model_forward.7} parent=1 // loop_header
      %s15 = sphi 0, %s19
      %p16 = scmp.ge.s32.totalorder %s15, 6
      %s22 = sphi 0, %s34
      %s23 = sphi 0, %s30
      %s24 = sphi 0, %s22
      %s25 = sphi 0, %s23
      %s26 = sphi 0, %s24
      %s27 = sphi 0, %s25
      %s37 = sphi 0, %s39
      %s40 = sphi 0, %s37
      %s41 = sphi 0, %s40
      %s57 = sphi 0, %s41
      %s61 = sphi 0, %s61
      %s63 = sphi 0, %s61
      %s64 = sphi 0, %s63
      %s78 = sphi 0, %s64
      %s82 = sphi 0, %s82
      %s84 = sphi 0, %s82
      %s85 = sphi 0, %s84
      %s99 = sphi 0, %s85
      %s105 = sphi 0, %s107
      %s108 = sphi 0, %s105
      %s109 = sphi 0, %s108
      %s125 = sphi 0, %s109
      %s131 = sphi 0, %s133
      %s134 = sphi 0, %s131
      %s135 = sphi 0, %s134
      %s151 = sphi 0, %s135
      %s157 = sphi 0, %s159
      %s160 = sphi 0, %s157
      %s161 = sphi 0, %s160
      %s177 = sphi 0, %s161
      %s181 = sphi 0, %s181
      %s183 = sphi 0, %s181
      %s184 = sphi 0, %s183
      %s198 = sphi 0, %s184
      %s202 = sphi 0, %s202
      %s204 = sphi 0, %s202
      %s205 = sphi 0, %s204
      %s219 = sphi 0, %s205
      %s223 = sphi 0, %s223
      %s225 = sphi 0, %s223
      %s226 = sphi 0, %s225
      %s240 = sphi 0, %s226
      %s246 = sphi 0, %s248
      %s249 = sphi 0, %s246
      %s250 = sphi 0, %s249
      %s266 = sphi 0, %s250
    $region4: #{gptneo_model_forward.7} parent=1 // loop_header_branch
      %18 = sbr.rel (%p16) target = $region8
    $region5: #{gptneo_model_forward.7} parent=1 // loop_body
      %s20 = ssub.s32 %s15, 1
      %s21 = ssub.s32 %s15, 2
      %s28 = sadd.s32 1, %s23
      %p29 = scmp.ge.s32.totalorder %s28, 2
      %s30 = scalar_select %p29, 0, %s28
      %s31 = sadd.s32 1, %s22
      %s32 = scalar_select %p29, %s31, %s22
      %p33 = scmp.ge.s32.totalorder %s32, 2
      %s34 = scalar_select %p33, 0, %s32
      %s35 = ssub.s32 %s22, %s34
      %p36 = scmp.eq.s32.totalorder %s35, 0
      %s38 = sadd.s32 %s37, 1
      %s39 = scalar_select %p36, %s37, %s38
      %p42 = pneg %p36
      %p43 = scmp.eq.s32.totalorder %s15, 3
      %p44 = por %p42, %p43
      %p45 = scmp.ne.s32.totalorder %s37, %s40
      %p46 = scmp.eq.s32.totalorder %s15, 0
      %p47 = por %p45, %p46
      %p48 = scmp.ne.s32.totalorder %s37, %s40
      %p49 = scmp.eq.s32.totalorder %s20, 3
      %p50 = por %p48, %p49
      %p51 = scmp.ne.s32.totalorder %s40, %s41
      %p52 = scmp.eq.s32.totalorder %s20, 0
      %p53 = por %p51, %p52
      %p54 = scmp.ne.s32.totalorder %s40, %s41
      %p55 = scmp.eq.s32.totalorder %s21, 3
      %p56 = por %p54, %p55
      %p58 = scmp.ne.s32.totalorder %s41, %s57
      %p59 = scmp.eq.s32.totalorder %s21, 0
      %p60 = por %p58, %p59
      %s62 = sadd.s32 %s61, 1
      %p65 = scmp.eq.s32.totalorder %s15, 3
      %p66 = scmp.ne.s32.totalorder %s61, %s63
      %p67 = scmp.eq.s32.totalorder %s15, 0
      %p68 = por %p66, %p67
      %p69 = scmp.ne.s32.totalorder %s61, %s63
      %p70 = scmp.eq.s32.totalorder %s20, 3
      %p71 = por %p69, %p70
      %p72 = scmp.ne.s32.totalorder %s63, %s64
      %p73 = scmp.eq.s32.totalorder %s20, 0
      %p74 = por %p72, %p73
      %p75 = scmp.ne.s32.totalorder %s63, %s64
      %p76 = scmp.eq.s32.totalorder %s21, 3
      %p77 = por %p75, %p76
      %p79 = scmp.ne.s32.totalorder %s64, %s78
      %p80 = scmp.eq.s32.totalorder %s21, 0
      %p81 = por %p79, %p80
      %s83 = sadd.s32 %s82, 1
      %p86 = scmp.eq.s32.totalorder %s15, 3
      %p87 = scmp.ne.s32.totalorder %s82, %s84
      %p88 = scmp.eq.s32.totalorder %s15, 0
      %p89 = por %p87, %p88
      %p90 = scmp.ne.s32.totalorder %s82, %s84
      %p91 = scmp.eq.s32.totalorder %s20, 3
      %p92 = por %p90, %p91
      %p93 = scmp.ne.s32.totalorder %s84, %s85
      %p94 = scmp.eq.s32.totalorder %s20, 0
      %p95 = por %p93, %p94
      %p96 = scmp.ne.s32.totalorder %s84, %s85
      %p97 = scmp.eq.s32.totalorder %s21, 3
      %p98 = por %p96, %p97
      %p100 = scmp.ne.s32.totalorder %s85, %s99
      %p101 = scmp.eq.s32.totalorder %s21, 0
      %p102 = por %p100, %p101
      %s103 = ssub.s32 %s23, %s30
      %p104 = scmp.eq.s32.totalorder %s103, 0
      %s106 = sadd.s32 %s105, 1
      %s107 = scalar_select %p104, %s105, %s106
      %p110 = pneg %p104
      %p111 = scmp.eq.s32.totalorder %s15, 3
      %p112 = por %p110, %p111
      %p113 = scmp.ne.s32.totalorder %s105, %s108
      %p114 = scmp.eq.s32.totalorder %s15, 0
      %p115 = por %p113, %p114
      %p116 = scmp.ne.s32.totalorder %s105, %s108
      %p117 = scmp.eq.s32.totalorder %s20, 3
      %p118 = por %p116, %p117
      %p119 = scmp.ne.s32.totalorder %s108, %s109
      %p120 = scmp.eq.s32.totalorder %s20, 0
      %p121 = por %p119, %p120
      %p122 = scmp.ne.s32.totalorder %s108, %s109
      %p123 = scmp.eq.s32.totalorder %s21, 3
      %p124 = por %p122, %p123
      %p126 = scmp.ne.s32.totalorder %s109, %s125
      %p127 = scmp.eq.s32.totalorder %s21, 0
      %p128 = por %p126, %p127
      %s129 = ssub.s32 %s23, %s30
      %p130 = scmp.eq.s32.totalorder %s129, 0
      %s132 = sadd.s32 %s131, 1
      %s133 = scalar_select %p130, %s131, %s132
      %p136 = pneg %p130
      %p137 = scmp.eq.s32.totalorder %s15, 3
      %p138 = por %p136, %p137
      %p139 = scmp.ne.s32.totalorder %s131, %s134
      %p140 = scmp.eq.s32.totalorder %s15, 0
      %p141 = por %p139, %p140
      %p142 = scmp.ne.s32.totalorder %s131, %s134
      %p143 = scmp.eq.s32.totalorder %s20, 3
      %p144 = por %p142, %p143
      %p145 = scmp.ne.s32.totalorder %s134, %s135
      %p146 = scmp.eq.s32.totalorder %s20, 0
      %p147 = por %p145, %p146
      %p148 = scmp.ne.s32.totalorder %s134, %s135
      %p149 = scmp.eq.s32.totalorder %s21, 3
      %p150 = por %p148, %p149
      %p152 = scmp.ne.s32.totalorder %s135, %s151
      %p153 = scmp.eq.s32.totalorder %s21, 0
      %p154 = por %p152, %p153
      %s155 = ssub.s32 %s23, %s30
      %p156 = scmp.eq.s32.totalorder %s155, 0
      %s158 = sadd.s32 %s157, 1
      %s159 = scalar_select %p156, %s157, %s158
      %p162 = pneg %p156
      %p163 = scmp.eq.s32.totalorder %s15, 3
      %p164 = por %p162, %p163
      %p165 = scmp.ne.s32.totalorder %s157, %s160
      %p166 = scmp.eq.s32.totalorder %s15, 0
      %p167 = por %p165, %p166
      %p168 = scmp.ne.s32.totalorder %s157, %s160
      %p169 = scmp.eq.s32.totalorder %s20, 3
      %p170 = por %p168, %p169
      %p171 = scmp.ne.s32.totalorder %s160, %s161
      %p172 = scmp.eq.s32.totalorder %s20, 0
      %p173 = por %p171, %p172
      %p174 = scmp.ne.s32.totalorder %s160, %s161
      %p175 = scmp.eq.s32.totalorder %s21, 3
      %p176 = por %p174, %p175
      %p178 = scmp.ne.s32.totalorder %s161, %s177
      %p179 = scmp.eq.s32.totalorder %s21, 0
      %p180 = por %p178, %p179
      %s182 = sadd.s32 %s181, 1
      %p185 = scmp.eq.s32.totalorder %s15, 3
      %p186 = scmp.ne.s32.totalorder %s181, %s183
      %p187 = scmp.eq.s32.totalorder %s15, 0
      %p188 = por %p186, %p187
      %p189 = scmp.ne.s32.totalorder %s181, %s183
      %p190 = scmp.eq.s32.totalorder %s20, 3
      %p191 = por %p189, %p190
      %p192 = scmp.ne.s32.totalorder %s183, %s184
      %p193 = scmp.eq.s32.totalorder %s20, 0
      %p194 = por %p192, %p193
      %p195 = scmp.ne.s32.totalorder %s183, %s184
      %p196 = scmp.eq.s32.totalorder %s21, 3
      %p197 = por %p195, %p196
      %p199 = scmp.ne.s32.totalorder %s184, %s198
      %p200 = scmp.eq.s32.totalorder %s21, 0
      %p201 = por %p199, %p200
      %s203 = sadd.s32 %s202, 1
      %p206 = scmp.eq.s32.totalorder %s15, 3
      %p207 = scmp.ne.s32.totalorder %s202, %s204
      %p208 = scmp.eq.s32.totalorder %s15, 0
      %p209 = por %p207, %p208
      %p210 = scmp.ne.s32.totalorder %s202, %s204
      %p211 = scmp.eq.s32.totalorder %s20, 3
      %p212 = por %p210, %p211
      %p213 = scmp.ne.s32.totalorder %s204, %s205
      %p214 = scmp.eq.s32.totalorder %s20, 0
      %p215 = por %p213, %p214
      %p216 = scmp.ne.s32.totalorder %s204, %s205
      %p217 = scmp.eq.s32.totalorder %s21, 3
      %p218 = por %p216, %p217
      %p220 = scmp.ne.s32.totalorder %s205, %s219
      %p221 = scmp.eq.s32.totalorder %s21, 0
      %p222 = por %p220, %p221
      %s224 = sadd.s32 %s223, 1
      %p227 = scmp.eq.s32.totalorder %s15, 3
      %p228 = scmp.ne.s32.totalorder %s223, %s225
      %p229 = scmp.eq.s32.totalorder %s15, 0
      %p230 = por %p228, %p229
      %p231 = scmp.ne.s32.totalorder %s223, %s225
      %p232 = scmp.eq.s32.totalorder %s20, 3
      %p233 = por %p231, %p232
      %p234 = scmp.ne.s32.totalorder %s225, %s226
      %p235 = scmp.eq.s32.totalorder %s20, 0
      %p236 = por %p234, %p235
      %p237 = scmp.ne.s32.totalorder %s225, %s226
      %p238 = scmp.eq.s32.totalorder %s21, 3
      %p239 = por %p237, %p238
      %p241 = scmp.ne.s32.totalorder %s226, %s240
      %p242 = scmp.eq.s32.totalorder %s21, 0
      %p243 = por %p241, %p242
      %s244 = ssub.s32 %s22, %s34
      %p245 = scmp.eq.s32.totalorder %s244, 0
      %s247 = sadd.s32 %s246, 1
      %s248 = scalar_select %p245, %s246, %s247
      %p251 = pneg %p245
      %p252 = scmp.eq.s32.totalorder %s15, 3
      %p253 = por %p251, %p252
      %p254 = scmp.ne.s32.totalorder %s246, %s249
      %p255 = scmp.eq.s32.totalorder %s15, 0
      %p256 = por %p254, %p255
      %p257 = scmp.ne.s32.totalorder %s246, %s249
      %p258 = scmp.eq.s32.totalorder %s20, 3
      %p259 = por %p257, %p258
      %p260 = scmp.ne.s32.totalorder %s249, %s250
      %p261 = scmp.eq.s32.totalorder %s20, 0
      %p262 = por %p260, %p261
      %p263 = scmp.ne.s32.totalorder %s249, %s250
      %p264 = scmp.eq.s32.totalorder %s21, 3
      %p265 = por %p263, %p264
      %p267 = scmp.ne.s32.totalorder %s250, %s266
      %p268 = scmp.eq.s32.totalorder %s21, 0
      %p269 = por %p267, %p268
      %p270 = scmp.le.s32.totalorder 1, %s15
      %p271 = scmp.lt.s32.totalorder %s15, 5
      %p272 = pnand %p270, %p271
      %p273 = pneg %p272
      // Predicated region
      $region9: #{gptneo_model_forward.7} parent=5 // pred_check
        _
      $region10: #{gptneo_model_forward.7} parent=5 // pred_check_branch
        %275 = sbr.rel (%p272) target = $region12
      $region11: #{gptneo_model_forward.7} parent=5 // pred_region
        %s276 = ssub.s32 %s15, 1
        // Predicated region
        $region13: #{gptneo_model_forward.7} parent=11 // pred_check
          %p277 = pneg %p74
        $region14: #{gptneo_model_forward.7} parent=11 // pred_check_branch
          %279 = sbr.rel (%p277) target = $region16
        $region15: #{gptneo_model_forward.7} parent=11 // pred_region
          _
        $region16: #{gptneo_model_forward.7} parent=11 // pred_fallthru
          _
        // Predicated region
        $region17: #{gptneo_model_forward.7} parent=11 // pred_check
          %p280 = pneg %p95
        $region18: #{gptneo_model_forward.7} parent=11 // pred_check_branch
          %282 = sbr.rel (%p280) target = $region20
        $region19: #{gptneo_model_forward.7} parent=11 // pred_region
          _
        $region20: #{gptneo_model_forward.7} parent=11 // pred_fallthru
          _
        // Predicated region
        $region21: #{gptneo_model_forward.7} parent=11 // pred_check
          %p283 = pneg %p194
        $region22: #{gptneo_model_forward.7} parent=11 // pred_check_branch
          %285 = sbr.rel (%p283) target = $region24
        $region23: #{gptneo_model_forward.7} parent=11 // pred_region
          _
        $region24: #{gptneo_model_forward.7} parent=11 // pred_fallthru
          _
        // Predicated region
        $region25: #{gptneo_model_forward.7} parent=11 // pred_check
          %p286 = pneg %p215
        $region26: #{gptneo_model_forward.7} parent=11 // pred_check_branch
          %288 = sbr.rel (%p286) target = $region28
        $region27: #{gptneo_model_forward.7} parent=11 // pred_region
          _
        $region28: #{gptneo_model_forward.7} parent=11 // pred_fallthru
          _
        // Predicated region
        $region29: #{gptneo_model_forward.7} parent=11 // pred_check
          %p289 = pneg %p236
        $region30: #{gptneo_model_forward.7} parent=11 // pred_check_branch
          %291 = sbr.rel (%p289) target = $region32
        $region31: #{gptneo_model_forward.7} parent=11 // pred_region
          _
        $region32: #{gptneo_model_forward.7} parent=11 // pred_fallthru
          _
      $region12: #{gptneo_model_forward.7} parent=5 // pred_fallthru
        _
      %p292 = scmp.lt.s32.totalorder %s15, 4
      // Predicated region
      $region33: #{gptneo_model_forward.7} parent=5 // pred_check
        %p293 = pneg %p292
      $region34: #{gptneo_model_forward.7} parent=5 // pred_check_branch
        %295 = sbr.rel (%p293) target = $region36
      $region35: #{gptneo_model_forward.7} parent=5 // pred_region
        // Predicated region
        $region37: #{gptneo_model_forward.7} parent=35 // pred_check
          %p296 = pneg %p47
        $region38: #{gptneo_model_forward.7} parent=35 // pred_check_branch
          %298 = sbr.rel (%p296) target = $region40
        $region39: #{gptneo_model_forward.7} parent=35 // pred_region
          %s299 = smul.u32 2, %s22
          %p300 = scmp.lt.s32.totalorder %s299, 3
          %s301 = scalar_select %p300, %s299, 3
          %s302 = smul.addr %s301, 4
          %s303 = scalar_lea.vmem %s0, %s302
          %s304 = smul.u32 2, %s22
        $region40: #{gptneo_model_forward.7} parent=35 // pred_fallthru
          _
        // Predicated region
        $region41: #{gptneo_model_forward.7} parent=35 // pred_check
          %p305 = pneg %p115
        $region42: #{gptneo_model_forward.7} parent=35 // pred_check_branch
          %307 = sbr.rel (%p305) target = $region44
        $region43: #{gptneo_model_forward.7} parent=35 // pred_region
          %s308 = sand.u32 %s105, 1
          %s309 = sand.u32 %s105, 1
          %s310 = smul.addr %s309, 16
          %s311 = scalar_lea.vmem [#allocation4], %s310
          %s312 = smul.addr %s23, 4
          %s313 = scalar_lea.vmem %s3, %s312
          // Predicated region
          $region45: #{gptneo_model_forward.7} parent=43 // pred_check
            _
          $region46: #{gptneo_model_forward.7} parent=43 // pred_check_branch
            %315 = sbr.rel (0) target = $region48
          $region47: #{gptneo_model_forward.7} parent=43 // pred_region
            // Predicated region
            $region49: #{gptneo_model_forward.7} parent=47 // pred_check
              _
            $region50: #{gptneo_model_forward.7} parent=47 // pred_check_branch
              %317 = sbr.rel target = $region52
            $region51: #{gptneo_model_forward.7} parent=47 // pred_region
              // Predicated region
              $region64: #{gptneo_model_forward.7} parent=51 // pred_check
                _
              $region65: #{gptneo_model_forward.7} parent=51 // pred_check_branch
                %339 = sbr.rel (0) target = $region67
              $region66: #{gptneo_model_forward.7} parent=51 // pred_region
                loop: start=0, step=1, limit=1
                $region68: #{gptneo_model_forward.7} parent=66 // loop_pre_header
                  _
                $region69: #{gptneo_model_forward.7} parent=66 // loop_header
                  %s341 = sphi 0, %s345
                  %p342 = scmp.ge.s32.totalorder %s341, 1
                  %s346 = sphi %s313, %s313
                  %s347 = sphi %s311, %s311
                $region70: #{gptneo_model_forward.7} parent=66 // loop_header_branch
                  %344 = sbr.rel (%p342) target = $region74
                $region71: #{gptneo_model_forward.7} parent=66 // loop_body
                  _
                $region72: #{gptneo_model_forward.7} parent=66 // loop_footer
                  %s345 = sadd.s32 1, %s341
                $region73: #{gptneo_model_forward.7} parent=66 // loop_footer_branch
                  %340 = sbr.rel target = $region69
                $region74: #{gptneo_model_forward.7} parent=66 // loop_exit
                  _
                %s349 = ssub.s32 16, 1
                loop: start=0, step=1, limit=1
                $region75: #{gptneo_model_forward.7} parent=66 // loop_pre_header
                  _
                $region76: #{gptneo_model_forward.7} parent=66 // loop_header
                  %s351 = sphi 0, %s355
                  %p352 = scmp.ge.s32.totalorder %s351, 1
                  %s356 = sphi %s313, %s313
                  %s357 = sphi %s311, %s311
                $region77: #{gptneo_model_forward.7} parent=66 // loop_header_branch
                  %354 = sbr.rel (%p352) target = $region81
                $region78: #{gptneo_model_forward.7} parent=66 // loop_body
                  %v358 = vld [vmem:[%s356] sm:%s349]
                  %359 = vst [vmem:[%s357] sm:%s349] %v358
                  %v360 = vld [vmem:[%s356 + $0x8] sm:%s349]
                  %361 = vst [vmem:[%s357 + $0x4] sm:%s349] %v360
                  %v362 = vld [vmem:[%s356 + $0x10] sm:%s349]
                  %363 = vst [vmem:[%s357 + $0x8] sm:%s349] %v362
                  %v364 = vld [vmem:[%s356 + $0x18] sm:%s349]
                  %365 = vst [vmem:[%s357 + $0xc] sm:%s349] %v364
                $region79: #{gptneo_model_forward.7} parent=66 // loop_footer
                  %s355 = sadd.s32 1, %s351
                $region80: #{gptneo_model_forward.7} parent=66 // loop_footer_branch
                  %350 = sbr.rel target = $region76
                $region81: #{gptneo_model_forward.7} parent=66 // loop_exit
                  _
              $region67: #{gptneo_model_forward.7} parent=51 // pred_fallthru
                _
            $region52: #{gptneo_model_forward.7} parent=47 // pred_fallthru
              _
            // Predicated region
            $region53: #{gptneo_model_forward.7} parent=47 // pred_check
              _
            $region54: #{gptneo_model_forward.7} parent=47 // pred_check_branch
              %319 = sbr.rel (0) target = $region56
            $region55: #{gptneo_model_forward.7} parent=47 // pred_region
              %s321 = ssub.s32 16, 1
              loop: start=0, step=1, limit=1
              $region57: #{gptneo_model_forward.7} parent=55 // loop_pre_header
                _
              $region58: #{gptneo_model_forward.7} parent=55 // loop_header
                %s323 = sphi 0, %s327
                %p324 = scmp.ge.s32.totalorder %s323, 1
                %s328 = sphi %s313, %s313
                %s329 = sphi %s311, %s311
              $region59: #{gptneo_model_forward.7} parent=55 // loop_header_branch
                %326 = sbr.rel (%p324) target = $region63
              $region60: #{gptneo_model_forward.7} parent=55 // loop_body
                %v330 = vld [vmem:[%s328] sm:%s321]
                %331 = vst [vmem:[%s329] sm:%s321] %v330
                %v332 = vld [vmem:[%s328 + $0x8] sm:%s321]
                %333 = vst [vmem:[%s329 + $0x4] sm:%s321] %v332
                %v334 = vld [vmem:[%s328 + $0x10] sm:%s321]
                %335 = vst [vmem:[%s329 + $0x8] sm:%s321] %v334
                %v336 = vld [vmem:[%s328 + $0x18] sm:%s321]
                %337 = vst [vmem:[%s329 + $0xc] sm:%s321] %v336
              $region61: #{gptneo_model_forward.7} parent=55 // loop_footer
                %s327 = sadd.s32 1, %s323
              $region62: #{gptneo_model_forward.7} parent=55 // loop_footer_branch
                %322 = sbr.rel target = $region58
              $region63: #{gptneo_model_forward.7} parent=55 // loop_exit
                _
            $region56: #{gptneo_model_forward.7} parent=47 // pred_fallthru
              _
          $region48: #{gptneo_model_forward.7} parent=43 // pred_fallthru
            _
          %366 = vnop
        $region44: #{gptneo_model_forward.7} parent=35 // pred_fallthru
          _
        // Predicated region
        $region82: #{gptneo_model_forward.7} parent=35 // pred_check
          %p367 = pneg %p141
        $region83: #{gptneo_model_forward.7} parent=35 // pred_check_branch
          %369 = sbr.rel (%p367) target = $region85
        $region84: #{gptneo_model_forward.7} parent=35 // pred_region
          %p370 = scmp.lt.s32.totalorder %s23, 1
          %s371 = scalar_select %p370, %s23, 1
          %s372 = scalar_lea.vmem %s4, %s371
        $region85: #{gptneo_model_forward.7} parent=35 // pred_fallthru
          _
        // Predicated region
        $region86: #{gptneo_model_forward.7} parent=35 // pred_check
          %p373 = pneg %p167
        $region87: #{gptneo_model_forward.7} parent=35 // pred_check_branch
          %375 = sbr.rel (%p373) target = $region89
        $region88: #{gptneo_model_forward.7} parent=35 // pred_region
          %s376 = smul.u32 16, %s23
          %p377 = scmp.lt.s32.totalorder %s376, 31
          %s378 = scalar_select %p377, %s376, 31
          %s379 = smul.addr %s378, 4
          %s380 = scalar_lea.vmem %s5, %s379
          %s381 = smul.u32 16, %s23
        $region89: #{gptneo_model_forward.7} parent=35 // pred_fallthru
          _
      $region36: #{gptneo_model_forward.7} parent=5 // pred_fallthru
        _
      %p382 = scmp.le.s32.totalorder 1, %s15
      %p383 = scmp.lt.s32.totalorder %s15, 5
      %p384 = pnand %p382, %p383
      %p385 = pneg %p384
      // Predicated region
      $region90: #{gptneo_model_forward.7} parent=5 // pred_check
        _
      $region91: #{gptneo_model_forward.7} parent=5 // pred_check_branch
        %387 = sbr.rel (%p384) target = $region93
      $region92: #{gptneo_model_forward.7} parent=5 // pred_region
        %s388 = ssub.s32 %s15, 1
        %s389 = sand.u32 %s108, 1
        %s390 = sand.u32 %s108, 1
        %s391 = smul.addr %s390, 16
        %s392 = scalar_lea.vmem [#allocation4], %s391
        // Predicated region
        $region94: #{gptneo_model_forward.7} parent=92 // pred_check
          %p393 = pneg %p121
        $region95: #{gptneo_model_forward.7} parent=92 // pred_check_branch
          %395 = sbr.rel (%p393) target = $region97
        $region96: #{gptneo_model_forward.7} parent=92 // pred_region
          _
        $region97: #{gptneo_model_forward.7} parent=92 // pred_fallthru
          _
        %s396 = smul.u32 2, %s24
        %p397 = scmp.lt.s32.totalorder %s396, 3
        %s398 = scalar_select %p397, %s396, 3
        %s399 = smul.addr %s398, 4
        %s400 = scalar_lea.vmem %s0, %s399
        %p401 = pneg %p53
        %p402 = pneg %p50
        %p403 = pneg %p74
        %p404 = pneg %p71
        %p405 = pneg %p95
        %p406 = pneg %p92
        %s407 = sand.u32 %s108, 1
        %s408 = sand.u32 %s108, 1
        %s409 = smul.addr %s408, 16
        %s410 = scalar_lea.vmem [#allocation4], %s409
        %p411 = pneg %p121
        %p412 = pneg %p118
        %p413 = scmp.lt.s32.totalorder %s25, 1
        %s414 = scalar_select %p413, %s25, 1
        %s415 = scalar_lea.vmem %s4, %s414
        %p416 = pneg %p147
        %p417 = pneg %p144
        %s418 = smul.u32 16, %s25
        %p419 = scmp.lt.s32.totalorder %s418, 31
        %s420 = scalar_select %p419, %s418, 31
        %s421 = smul.addr %s420, 4
        %s422 = scalar_lea.vmem %s5, %s421
        %p423 = pneg %p173
        %p424 = pneg %p170
        %p425 = pneg %p194
        %p426 = pneg %p191
        %p427 = pneg %p215
        %p428 = pneg %p212
        %p429 = pneg %p236
        %p430 = pneg %p233
        %p431 = pneg %p262
        %p432 = pneg %p259
        %s433 = smul.u32 2, %s24
        %p434 = scmp.lt.s32.totalorder %s433, 3
        %s435 = scalar_select %p434, %s433, 3
        %s436 = smul.addr %s435, 4
        %s437 = scalar_lea.vmem %s9, %s436
        %s438 = smul.u32 2, %s24
        %p439 = scmp.lt.s32.totalorder %s438, 3
        %s440 = scalar_select %p439, %s438, 3
        %s441 = smul.addr %s440, 4
        %s442 = scalar_lea.vmem %s0, %s441
        %s443 = smul.u32 2, %s24
        %p444 = scmp.lt.s32.totalorder %s25, 1
        %s445 = scalar_select %p444, %s25, 1
        %s446 = scalar_lea.vmem %s4, %s445
        %s447 = smul.u32 16, %s25
        %p448 = scmp.lt.s32.totalorder %s447, 31
        %s449 = scalar_select %p448, %s447, 31
        %s450 = smul.addr %s449, 4
        %s451 = scalar_lea.vmem %s5, %s450
        %s452 = smul.u32 16, %s25
        %s453 = smul.u32 2, %s24
        %p454 = scmp.lt.s32.totalorder %s453, 3
        %s455 = scalar_select %p454, %s453, 3
        %s456 = smul.addr %s455, 4
        %s457 = scalar_lea.vmem %s9, %s456
        %s458 = smul.u32 2, %s24
        %p460 = scmp.eq.s32.totalorder %s25, 0
        // Predicated region
        $region98: #{gptneo_model_forward.7} parent=92 // pred_check
          %p461 = pneg %p460
        $region99: #{gptneo_model_forward.7} parent=92 // pred_check_branch
          %463 = sbr.rel (%p461) target = $region101
        $region100: #{gptneo_model_forward.7} parent=92 // pred_region
          %v464 = vld [vmem:[%s442] sm:$0xf]
          %v465 = vld [vmem:[%s442 + $0x4] sm:$0xf]
          %v466 = vunpack.c.l.bf16 %v464
          %v467 = vunpack.c.l.bf16 %v465
          %v468 = vld [vmem:[%s1] sm:$0x1]
          %v469 = vld [vmem:[%s2] sm:$0x1]
          %vm470 = vcmask 261120
          %v471 = vsel %vm470, %v466, 0.0
          %472 = vadd.xlane.f32.xlu0 %v471
          %v473 = vpop.xlane.xlu0 %472
          %v474 = vsel %vm470, %v467, 0.0
          %475 = vadd.xlane.f32.xlu0 %v474
          %v476 = vpop.xlane.xlu0 %475
          %v477 = vrcp.pop 32.0
          %v478 = vmul.f32 %v473, %v477
          %v479 = vmul.f32 %v476, %v477
          %v480 = vsub.f32 %v466, %v478
          %v481 = vsub.f32 %v467, %v479
          %v482 = vmul.f32 %v480, %v480
          %v483 = vmul.f32 %v481, %v481
          %v484 = vsel %vm470, %v482, 0.0
          %485 = vadd.xlane.f32.xlu0 %v484
          %v486 = vpop.xlane.xlu0 %485
          %v487 = vsel %vm470, %v483, 0.0
          %488 = vadd.xlane.f32.xlu0 %v487
          %v489 = vpop.xlane.xlu0 %488
          %v490 = vmul.f32 %v486, %v477
          %v491 = vmul.f32 %v489, %v477
          %v492 = vadd.f32 %v490, 1e-05
          %v493 = vadd.f32 %v491, 1e-05
          %v494 = vrsqrt.pop %v492
          %v495 = vrsqrt.pop %v493
          %v496 = vmul.f32 %v480, %v494
          %v497 = vmul.f32 %v481, %v495
          %v499 = vlaneseq
          %v500 = vshrl.u32 %v499, 7
          %v501 = vsub.s32 0, %v500
          %v502 = vrot.slane %v468, %v501
          %v504 = vmul.f32 %v496, %v502
          %v505 = vmul.f32 %v497, %v502
          %v507 = vlaneseq
          %v508 = vshrl.u32 %v507, 7
          %v509 = vsub.s32 0, %v508
          %v510 = vrot.slane %v469, %v509
          %v512 = vadd.f32 %v504, %v510
          %v513 = vadd.f32 %v505, %v510
          %v514 = vpack.c.bf16 %v513, %v512
          %v516 = vunpack.c.l.b16 %v514
          %v517 = vunpack.c.h.b16 %v514
          %v518 = vpack.c.b16 %v516, %v516
          %v519 = vpack.c.b16 %v517, %v517
          %vm522 = vcmask 257024
          %523 = vst.msk [vmem:[#allocation2] sm:$0xf] %vm522, %v518
          %524 = vst.msk [vmem:[#allocation2 + $0x4] sm:$0xf] %vm522, %v519
          %525 = vst.msk [vmem:[#allocation3] sm:$0xff] %vm470, 0.0
          %526 = vst.msk [vmem:[#allocation3 + $0x8] sm:$0xff] %vm470, 0.0
        $region101: #{gptneo_model_forward.7} parent=92 // pred_fallthru
          _
        %v527 = vld [vmem:[#allocation2] sm:$0xf]
        %v528 = vld [vmem:[#allocation2 + $0x4] sm:$0xf]
        %v529 = vld [vmem:[%s392] sm:$0xf]
        %v530 = vld [vmem:[%s392 + $0x4] sm:$0xf]
        %v531 = vld [vmem:[%s392 + $0x8] sm:$0xf]
        %v532 = vld [vmem:[%s392 + $0xc] sm:$0xf]
        %v533 = vld [vmem:[%s446] sm:$0x1]
        %v535 = vlaneseq
        %v536 = vshrl.u32 %v535, 7
        %v537 = vsub.s32 0, %v536
        %v538 = vrot.slane %v533, %v537
        %v542 = vunpack.c.l.b16 %v527
        %v543 = vunpack.c.l.b16 %v528
        %v544 = vpack.c.b16 %v543, %v542
        %v549 = vunpack.c.l.b16 %v529
        %v550 = vunpack.c.l.b16 %v530
        %v551 = vunpack.c.l.b16 %v531
        %v552 = vunpack.c.l.b16 %v532
        %v553 = vpack.c.b16 %v550, %v549
        %v554 = vpack.c.b16 %v552, %v551
        %vm557 = vcmask 261120
        %v559 = vsel %vm557, %v544, 0
        %561 = vmatprep.subr.bf16.mxu0 0
        %562 = vmatpush1.bf16.msra.mxu0 0
        %563 = vmatprep.subr.bf16.mxu0 0
        %564 = vmatpush1.bf16.msra.mxu0 0
        %565 = vmatprep.subr.bf16.mxu0 0
        %566 = vmatpush1.bf16.msra.mxu0 0
        %567 = vmatprep.subr.bf16.mxu0 0
        %568 = vmatpush1.bf16.msra.mxu0 0
        %569 = vmatprep.subr.bf16.mxu0 0
        %570 = vmatpush1.bf16.msra.mxu0 0
        %571 = vmatprep.subr.bf16.mxu0 0
        %572 = vmatpush1.bf16.msra.mxu0 0
        %573 = vmatprep.subr.bf16.mxu0 0
        %574 = vmatpush1.bf16.msra.mxu0 %v554
        %575 = vmatprep.subr.bf16.mxu0 0
        %576 = vmatpush1.bf16.msra.mxu0 %v553
        %577 = vmatprep.subr.bf16.mxu0 0
        %578 = vmatpush2.bf16.msra.mxu0 0
        %579 = vmatprep.subr.bf16.mxu0 0
        %580 = vmatpush2.bf16.msra.mxu0 0
        %581 = vmatprep.subr.bf16.mxu0 0
        %582 = vmatpush2.bf16.msra.mxu0 0
        %583 = vmatprep.subr.bf16.mxu0 0
        %584 = vmatpush2.bf16.msra.mxu0 0
        %585 = vmatprep.subr.bf16.mxu0 0
        %586 = vmatpush2.bf16.msra.mxu0 0
        %587 = vmatprep.subr.bf16.mxu0 0
        %588 = vmatpush2.bf16.msra.mxu0 0
        %589 = vmatprep.subr.bf16.mxu0 0
        %590 = vmatpush2.bf16.msra.mxu0 0
        %591 = vmatprep.subr.bf16.mxu0 0
        %592 = vmatpush2.bf16.msra.mxu0 0
        %593 = vmatprep.mubr.bf16.mxu0 0
        %594 = vmatmul.mubr.bf16.gmra.mxu0 %v559
        %v595 = vpop.f32.mrf.mxu0
        %v596 = vadd.f32 %v538, %v595
        %v597 = vpop.f32.mrf.mxu0
        %v598 = vpop.f32.mrf.mxu0
        %v599 = vadd.f32 %v538, %v598
        %v600 = vpop.f32.mrf.mxu0
        %601 = vdwg.mxu0
        %v602 = vmul.f32 %v596, 0.5
        %v603 = vmul.f32 %v599, 0.5
        %v604 = vmul.f32 %v596, 0.044715
        %v605 = vmul.f32 %v599, 0.044715
        %v606 = vmul.f32 %v604, %v596
        %v607 = vmul.f32 %v605, %v599
        %v608 = vmul.f32 %v606, %v596
        %v609 = vmul.f32 %v607, %v599
        %v610 = vadd.f32 %v596, %v608
        %v611 = vadd.f32 %v599, %v609
        %v612 = vmul.f32 %v610, 0.7978846
        %v613 = vmul.f32 %v611, 0.7978846
        %v614 = vtanh.pop %v612
        %v615 = vtanh.pop %v613
        %v616 = vadd.f32 %v614, 1.0
        %v617 = vadd.f32 %v615, 1.0
        %v618 = vmul.f32 %v602, %v616
        %v619 = vmul.f32 %v603, %v617
        %v620 = vld [vmem:[#allocation3] sm:$0xff]
        %v621 = vld [vmem:[#allocation3 + $0x8] sm:$0xff]
        %v622 = vpack.c.bf16 %v619, %v618
        %v623 = vld [vmem:[%s451] sm:$0xf]
        %v624 = vld [vmem:[%s451 + $0x4] sm:$0xf]
        %v625 = vld [vmem:[%s451 + $0x8] sm:$0xf]
        %v626 = vld [vmem:[%s451 + $0xc] sm:$0xf]
        %v627 = vld [vmem:[%s451 + $0x10] sm:$0xf]
        %v628 = vld [vmem:[%s451 + $0x14] sm:$0xf]
        %v629 = vld [vmem:[%s451 + $0x18] sm:$0xf]
        %v630 = vld [vmem:[%s451 + $0x1c] sm:$0xf]
        %v631 = vld [vmem:[%s451 + $0x20] sm:$0xf]
        %v632 = vld [vmem:[%s451 + $0x24] sm:$0xf]
        %v633 = vld [vmem:[%s451 + $0x28] sm:$0xf]
        %v634 = vld [vmem:[%s451 + $0x2c] sm:$0xf]
        %v635 = vld [vmem:[%s451 + $0x30] sm:$0xf]
        %v636 = vld [vmem:[%s451 + $0x34] sm:$0xf]
        %v637 = vld [vmem:[%s451 + $0x38] sm:$0xf]
        %v638 = vld [vmem:[%s451 + $0x3c] sm:$0xf]
        %v655 = vunpack.c.l.b16 %v623
        %v656 = vunpack.c.l.b16 %v624
        %v657 = vunpack.c.l.b16 %v625
        %v658 = vunpack.c.l.b16 %v626
        %v659 = vunpack.c.l.b16 %v627
        %v660 = vunpack.c.l.b16 %v628
        %v661 = vunpack.c.l.b16 %v629
        %v662 = vunpack.c.l.b16 %v630
        %v663 = vunpack.c.l.b16 %v631
        %v664 = vunpack.c.l.b16 %v632
        %v665 = vunpack.c.l.b16 %v633
        %v666 = vunpack.c.l.b16 %v634
        %v667 = vunpack.c.l.b16 %v635
        %v668 = vunpack.c.l.b16 %v636
        %v669 = vunpack.c.l.b16 %v637
        %v670 = vunpack.c.l.b16 %v638
        %v671 = vpack.c.b16 %v656, %v655
        %v672 = vpack.c.b16 %v658, %v657
        %v673 = vpack.c.b16 %v660, %v659
        %v674 = vpack.c.b16 %v662, %v661
        %v675 = vpack.c.b16 %v664, %v663
        %v676 = vpack.c.b16 %v666, %v665
        %v677 = vpack.c.b16 %v668, %v667
        %v678 = vpack.c.b16 %v670, %v669
        %687 = vmatprep.subr.bf16.mxu0 0
        %688 = vmatpush1.bf16.msra.mxu0 %v678
        %689 = vmatprep.subr.bf16.mxu0 0
        %690 = vmatpush1.bf16.msra.mxu0 %v677
        %691 = vmatprep.subr.bf16.mxu0 0
        %692 = vmatpush1.bf16.msra.mxu0 %v676
        %693 = vmatprep.subr.bf16.mxu0 0
        %694 = vmatpush1.bf16.msra.mxu0 %v675
        %695 = vmatprep.subr.bf16.mxu0 0
        %696 = vmatpush1.bf16.msra.mxu0 %v674
        %697 = vmatprep.subr.bf16.mxu0 0
        %698 = vmatpush1.bf16.msra.mxu0 %v673
        %699 = vmatprep.subr.bf16.mxu0 0
        %700 = vmatpush1.bf16.msra.mxu0 %v672
        %701 = vmatprep.subr.bf16.mxu0 0
        %702 = vmatpush1.bf16.msra.mxu0 %v671
        %703 = vmatprep.subr.bf16.mxu0 0
        %704 = vmatpush2.bf16.msra.mxu0 0
        %705 = vmatprep.subr.bf16.mxu0 0
        %706 = vmatpush2.bf16.msra.mxu0 0
        %707 = vmatprep.subr.bf16.mxu0 0
        %708 = vmatpush2.bf16.msra.mxu0 0
        %709 = vmatprep.subr.bf16.mxu0 0
        %710 = vmatpush2.bf16.msra.mxu0 0
        %711 = vmatprep.subr.bf16.mxu0 0
        %712 = vmatpush2.bf16.msra.mxu0 0
        %713 = vmatprep.subr.bf16.mxu0 0
        %714 = vmatpush2.bf16.msra.mxu0 0
        %715 = vmatprep.subr.bf16.mxu0 0
        %716 = vmatpush2.bf16.msra.mxu0 0
        %717 = vmatprep.subr.bf16.mxu0 0
        %718 = vmatpush2.bf16.msra.mxu0 0
        %719 = vmatprep.mubr.bf16.mxu0 0
        %720 = vmatmul.mubr.bf16.gmra.mxu0 %v622
        %v721 = vpop.f32.mrf.mxu0
        %v722 = vadd.f32 0.0, %v721
        %v723 = vpop.f32.mrf.mxu0
        %v724 = vpop.f32.mrf.mxu0
        %v725 = vadd.f32 0.0, %v724
        %v726 = vpop.f32.mrf.mxu0
        %727 = vdwg.mxu0
        %v728 = vadd.f32 %v620, %v722
        %v729 = vadd.f32 %v621, %v725
        %730 = vst.msk [vmem:[#allocation3] sm:$0xff] %vm557, %v728
        %731 = vst.msk [vmem:[#allocation3 + $0x8] sm:$0xff] %vm557, %v729
        %p732 = scmp.eq.s32.totalorder %s25, 1
        // Predicated region
        $region102: #{gptneo_model_forward.7} parent=92 // pred_check
          %p733 = pneg %p732
        $region103: #{gptneo_model_forward.7} parent=92 // pred_check_branch
          %735 = sbr.rel (%p733) target = $region105
        $region104: #{gptneo_model_forward.7} parent=92 // pred_region
          %v736 = vld [vmem:[%s442] sm:$0xf]
          %v737 = vld [vmem:[%s442 + $0x4] sm:$0xf]
          %v738 = vunpack.c.l.bf16 %v736
          %v739 = vunpack.c.l.bf16 %v737
          %v740 = vld [vmem:[#allocation3] sm:$0xff]
          %v741 = vld [vmem:[#allocation3 + $0x8] sm:$0xff]
          %v742 = vadd.f32 %v738, %v740
          %v743 = vadd.f32 %v739, %v741
          %v744 = vld [vmem:[%s6] sm:$0x1]
          %v746 = vlaneseq
          %v747 = vshrl.u32 %v746, 7
          %v748 = vsub.s32 0, %v747
          %v749 = vrot.slane %v744, %v748
          %v751 = vadd.f32 %v742, %v749
          %v752 = vadd.f32 %v743, %v749
          %v753 = vld [vmem:[%s7] sm:$0x1]
          %v754 = vld [vmem:[%s8] sm:$0x1]
          %v755 = vsel %vm557, %v751, 0.0
          %756 = vadd.xlane.f32.xlu0 %v755
          %v757 = vpop.xlane.xlu0 %756
          %v758 = vsel %vm557, %v752, 0.0
          %759 = vadd.xlane.f32.xlu0 %v758
          %v760 = vpop.xlane.xlu0 %759
          %v761 = vrcp.pop 32.0
          %v762 = vmul.f32 %v757, %v761
          %v763 = vmul.f32 %v760, %v761
          %v764 = vsub.f32 %v751, %v762
          %v765 = vsub.f32 %v752, %v763
          %v766 = vmul.f32 %v764, %v764
          %v767 = vmul.f32 %v765, %v765
          %v768 = vsel %vm557, %v766, 0.0
          %769 = vadd.xlane.f32.xlu0 %v768
          %v770 = vpop.xlane.xlu0 %769
          %v771 = vsel %vm557, %v767, 0.0
          %772 = vadd.xlane.f32.xlu0 %v771
          %v773 = vpop.xlane.xlu0 %772
          %v774 = vmul.f32 %v770, %v761
          %v775 = vmul.f32 %v773, %v761
          %v776 = vadd.f32 %v774, 1e-05
          %v777 = vadd.f32 %v775, 1e-05
          %v778 = vrsqrt.pop %v776
          %v779 = vrsqrt.pop %v777
          %v780 = vmul.f32 %v764, %v778
          %v781 = vmul.f32 %v765, %v779
          %v783 = vlaneseq
          %v784 = vshrl.u32 %v783, 7
          %v785 = vsub.s32 0, %v784
          %v786 = vrot.slane %v753, %v785
          %v788 = vmul.f32 %v780, %v786
          %v789 = vmul.f32 %v781, %v786
          %v791 = vlaneseq
          %v792 = vshrl.u32 %v791, 7
          %v793 = vsub.s32 0, %v792
          %v794 = vrot.slane %v754, %v793
          %v796 = vadd.f32 %v788, %v794
          %v797 = vadd.f32 %v789, %v794
          %v798 = vpack.c.bf16 %v797, %v796
          %v800 = vunpack.c.l.b16 %v798
          %v801 = vunpack.c.h.b16 %v798
          %v802 = vpack.c.b16 %v800, %v800
          %v803 = vpack.c.b16 %v801, %v801
          %vm806 = vcmask 257024
          %807 = vst.msk [vmem:[%s457] sm:$0xf] %vm806, %v802
          %808 = vst.msk [vmem:[%s457 + $0x4] sm:$0xf] %vm806, %v803
        $region105: #{gptneo_model_forward.7} parent=92 // pred_fallthru
          _
        %s809 = smul.u32 2, %s24
        %p810 = scmp.lt.s32.totalorder %s809, 3
        %s811 = scalar_select %p810, %s809, 3
        %s812 = smul.addr %s811, 4
        %s813 = scalar_lea.vmem %s9, %s812
        // Predicated region
        $region106: #{gptneo_model_forward.7} parent=92 // pred_check
          %p814 = pneg %p259
        $region107: #{gptneo_model_forward.7} parent=92 // pred_check_branch
          %816 = sbr.rel (%p814) target = $region109
        $region108: #{gptneo_model_forward.7} parent=92 // pred_region
          %s817 = smul.u32 2, %s24
        $region109: #{gptneo_model_forward.7} parent=92 // pred_fallthru
          _
      $region93: #{gptneo_model_forward.7} parent=5 // pred_fallthru
        _
      %p818 = scmp.le.s32.totalorder 2, %s15
      // Predicated region
      $region110: #{gptneo_model_forward.7} parent=5 // pred_check
        %p819 = pneg %p818
      $region111: #{gptneo_model_forward.7} parent=5 // pred_check_branch
        %821 = sbr.rel (%p819) target = $region113
      $region112: #{gptneo_model_forward.7} parent=5 // pred_region
        %s822 = ssub.s32 %s15, 2
        // Predicated region
        $region114: #{gptneo_model_forward.7} parent=112 // pred_check
          %p823 = pneg %p265
        $region115: #{gptneo_model_forward.7} parent=112 // pred_check_branch
          %825 = sbr.rel (%p823) target = $region117
        $region116: #{gptneo_model_forward.7} parent=112 // pred_region
          %s826 = smul.u32 2, %s26
          %p827 = scmp.lt.s32.totalorder %s826, 3
          %s828 = scalar_select %p827, %s826, 3
          %s829 = smul.addr %s828, 4
          %s830 = scalar_lea.vmem %s9, %s829
        $region117: #{gptneo_model_forward.7} parent=112 // pred_fallthru
          _
      $region113: #{gptneo_model_forward.7} parent=5 // pred_fallthru
        _
    $region6: #{gptneo_model_forward.7} parent=1 // loop_footer
      %s19 = sadd.s32 1, %s15
    $region7: #{gptneo_model_forward.7} parent=1 // loop_footer_branch
      %14 = sbr.rel target = $region3
    $region8: #{gptneo_model_forward.7} parent=1 // loop_exit
      _

// kernel: gptneo_model_forward.5
$region0: #{gptneo_model_forward.5}
  #allocation0 [shape = 'u32[]', space=smem, size = 0x4, offset = 0x4, fixed_abs, tag = 'smem constant byte address 0x4 - core index']
  #allocation1 [shape = 'u32[144,128]{1,0:T(1,128)}', space=vmem, size = 0x12000, scoped, tag = 'internal scratch']
  #allocation2 [shape = 'bf16[16,32]{1,0:T(8,128)(2,1)}', space=vmem, size = 0x1000, scoped, tag = 'scratch operand']
  #allocation3 [shape = 'f32[16,32]{1,0:T(8,128)}', space=vmem, size = 0x2000, scoped, tag = 'scratch operand']
  %s0 = inlined_call_operand.vmem [shape: bf16[32,32], index: 0, kind: input, shape index: {}, may-alias: {0,9}]
  %s1 = inlined_call_operand.vmem [shape: f32[1,32], index: 1, kind: input, shape index: {}]
  %s2 = inlined_call_operand.vmem [shape: f32[1,32], index: 2, kind: input, shape index: {}]
  %s3 = inlined_call_operand.vmem [shape: bf16[32,256], index: 3, kind: input, shape index: {}]
  %s4 = inlined_call_operand.vmem [shape: f32[1,256], index: 4, kind: input, shape index: {}]
  %s5 = inlined_call_operand.vmem [shape: bf16[256,32], index: 5, kind: input, shape index: {}]
  %s6 = inlined_call_operand.vmem [shape: f32[1,32], index: 6, kind: input, shape index: {}]
  %s7 = inlined_call_operand.vmem [shape: f32[1,32], index: 7, kind: input, shape index: {}]
  %s8 = inlined_call_operand.vmem [shape: f32[1,32], index: 8, kind: input, shape index: {}]
  %s9 = inlined_call_operand.vmem [shape: bf16[32,32], index: 9, kind: output, shape index: {}, may-alias: {0,9}]
  %s10 = sld [smem:[#allocation0]]
  $region118: #{gptneo_model_forward.5} parent=0
    _
  %s12 = ssub.s32 1, %s10
  %s13 = scalar_select 0, %s12, %s10
  $region1: #{gptneo_model_forward.5} parent=0
    #allocation4 [shape = 'u8[16384]{0}', space=vmem, size = 0x4000, scoped, tag = 'input window, operand 3']
    loop: start=0, step=1, limit=6
    $region2: #{gptneo_model_forward.5} parent=1 // loop_pre_header
      _
    $region3: #{gptneo_model_forward.5} parent=1 // loop_header
      %s15 = sphi 0, %s19
      %p16 = scmp.ge.s32.totalorder %s15, 6
      %s22 = sphi 0, %s34
      %s23 = sphi 0, %s30
      %s24 = sphi 0, %s22
      %s25 = sphi 0, %s23
      %s26 = sphi 0, %s24
      %s27 = sphi 0, %s25
      %s37 = sphi 0, %s39
      %s40 = sphi 0, %s37
      %s41 = sphi 0, %s40
      %s57 = sphi 0, %s41
      %s61 = sphi 0, %s61
      %s63 = sphi 0, %s61
      %s64 = sphi 0, %s63
      %s78 = sphi 0, %s64
      %s82 = sphi 0, %s82
      %s84 = sphi 0, %s82
      %s85 = sphi 0, %s84
      %s99 = sphi 0, %s85
      %s105 = sphi 0, %s107
      %s108 = sphi 0, %s105
      %s109 = sphi 0, %s108
      %s125 = sphi 0, %s109
      %s131 = sphi 0, %s133
      %s134 = sphi 0, %s131
      %s135 = sphi 0, %s134
      %s151 = sphi 0, %s135
      %s157 = sphi 0, %s159
      %s160 = sphi 0, %s157
      %s161 = sphi 0, %s160
      %s177 = sphi 0, %s161
      %s181 = sphi 0, %s181
      %s183 = sphi 0, %s181
      %s184 = sphi 0, %s183
      %s198 = sphi 0, %s184
      %s202 = sphi 0, %s202
      %s204 = sphi 0, %s202
      %s205 = sphi 0, %s204
      %s219 = sphi 0, %s205
      %s223 = sphi 0, %s223
      %s225 = sphi 0, %s223
      %s226 = sphi 0, %s225
      %s240 = sphi 0, %s226
      %s246 = sphi 0, %s248
      %s249 = sphi 0, %s246
      %s250 = sphi 0, %s249
      %s266 = sphi 0, %s250
    $region4: #{gptneo_model_forward.5} parent=1 // loop_header_branch
      %18 = sbr.rel (%p16) target = $region8
    $region5: #{gptneo_model_forward.5} parent=1 // loop_body
      %s20 = ssub.s32 %s15, 1
      %s21 = ssub.s32 %s15, 2
      %s28 = sadd.s32 1, %s23
      %p29 = scmp.ge.s32.totalorder %s28, 2
      %s30 = scalar_select %p29, 0, %s28
      %s31 = sadd.s32 1, %s22
      %s32 = scalar_select %p29, %s31, %s22
      %p33 = scmp.ge.s32.totalorder %s32, 2
      %s34 = scalar_select %p33, 0, %s32
      %s35 = ssub.s32 %s22, %s34
      %p36 = scmp.eq.s32.totalorder %s35, 0
      %s38 = sadd.s32 %s37, 1
      %s39 = scalar_select %p36, %s37, %s38
      %p42 = pneg %p36
      %p43 = scmp.eq.s32.totalorder %s15, 3
      %p44 = por %p42, %p43
      %p45 = scmp.ne.s32.totalorder %s37, %s40
      %p46 = scmp.eq.s32.totalorder %s15, 0
      %p47 = por %p45, %p46
      %p48 = scmp.ne.s32.totalorder %s37, %s40
      %p49 = scmp.eq.s32.totalorder %s20, 3
      %p50 = por %p48, %p49
      %p51 = scmp.ne.s32.totalorder %s40, %s41
      %p52 = scmp.eq.s32.totalorder %s20, 0
      %p53 = por %p51, %p52
      %p54 = scmp.ne.s32.totalorder %s40, %s41
      %p55 = scmp.eq.s32.totalorder %s21, 3
      %p56 = por %p54, %p55
      %p58 = scmp.ne.s32.totalorder %s41, %s57
      %p59 = scmp.eq.s32.totalorder %s21, 0
      %p60 = por %p58, %p59
      %s62 = sadd.s32 %s61, 1
      %p65 = scmp.eq.s32.totalorder %s15, 3
      %p66 = scmp.ne.s32.totalorder %s61, %s63
      %p67 = scmp.eq.s32.totalorder %s15, 0
      %p68 = por %p66, %p67
      %p69 = scmp.ne.s32.totalorder %s61, %s63
      %p70 = scmp.eq.s32.totalorder %s20, 3
      %p71 = por %p69, %p70
      %p72 = scmp.ne.s32.totalorder %s63, %s64
      %p73 = scmp.eq.s32.totalorder %s20, 0
      %p74 = por %p72, %p73
      %p75 = scmp.ne.s32.totalorder %s63, %s64
      %p76 = scmp.eq.s32.totalorder %s21, 3
      %p77 = por %p75, %p76
      %p79 = scmp.ne.s32.totalorder %s64, %s78
      %p80 = scmp.eq.s32.totalorder %s21, 0
      %p81 = por %p79, %p80
      %s83 = sadd.s32 %s82, 1
      %p86 = scmp.eq.s32.totalorder %s15, 3
      %p87 = scmp.ne.s32.totalorder %s82, %s84
      %p88 = scmp.eq.s32.totalorder %s15, 0
      %p89 = por %p87, %p88
      %p90 = scmp.ne.s32.totalorder %s82, %s84
      %p91 = scmp.eq.s32.totalorder %s20, 3
      %p92 = por %p90, %p91
      %p93 = scmp.ne.s32.totalorder %s84, %s85
      %p94 = scmp.eq.s32.totalorder %s20, 0
      %p95 = por %p93, %p94
      %p96 = scmp.ne.s32.totalorder %s84, %s85
      %p97 = scmp.eq.s32.totalorder %s21, 3
      %p98 = por %p96, %p97
      %p100 = scmp.ne.s32.totalorder %s85, %s99
      %p101 = scmp.eq.s32.totalorder %s21, 0
      %p102 = por %p100, %p101
      %s103 = ssub.s32 %s23, %s30
      %p104 = scmp.eq.s32.totalorder %s103, 0
      %s106 = sadd.s32 %s105, 1
      %s107 = scalar_select %p104, %s105, %s106
      %p110 = pneg %p104
      %p111 = scmp.eq.s32.totalorder %s15, 3
      %p112 = por %p110, %p111
      %p113 = scmp.ne.s32.totalorder %s105, %s108
      %p114 = scmp.eq.s32.totalorder %s15, 0
      %p115 = por %p113, %p114
      %p116 = scmp.ne.s32.totalorder %s105, %s108
      %p117 = scmp.eq.s32.totalorder %s20, 3
      %p118 = por %p116, %p117
      %p119 = scmp.ne.s32.totalorder %s108, %s109
      %p120 = scmp.eq.s32.totalorder %s20, 0
      %p121 = por %p119, %p120
      %p122 = scmp.ne.s32.totalorder %s108, %s109
      %p123 = scmp.eq.s32.totalorder %s21, 3
      %p124 = por %p122, %p123
      %p126 = scmp.ne.s32.totalorder %s109, %s125
      %p127 = scmp.eq.s32.totalorder %s21, 0
      %p128 = por %p126, %p127
      %s129 = ssub.s32 %s23, %s30
      %p130 = scmp.eq.s32.totalorder %s129, 0
      %s132 = sadd.s32 %s131, 1
      %s133 = scalar_select %p130, %s131, %s132
      %p136 = pneg %p130
      %p137 = scmp.eq.s32.totalorder %s15, 3
      %p138 = por %p136, %p137
      %p139 = scmp.ne.s32.totalorder %s131, %s134
      %p140 = scmp.eq.s32.totalorder %s15, 0
      %p141 = por %p139, %p140
      %p142 = scmp.ne.s32.totalorder %s131, %s134
      %p143 = scmp.eq.s32.totalorder %s20, 3
      %p144 = por %p142, %p143
      %p145 = scmp.ne.s32.totalorder %s134, %s135
      %p146 = scmp.eq.s32.totalorder %s20, 0
      %p147 = por %p145, %p146
      %p148 = scmp.ne.s32.totalorder %s134, %s135
      %p149 = scmp.eq.s32.totalorder %s21, 3
      %p150 = por %p148, %p149
      %p152 = scmp.ne.s32.totalorder %s135, %s151
      %p153 = scmp.eq.s32.totalorder %s21, 0
      %p154 = por %p152, %p153
      %s155 = ssub.s32 %s23, %s30
      %p156 = scmp.eq.s32.totalorder %s155, 0
      %s158 = sadd.s32 %s157, 1
      %s159 = scalar_select %p156, %s157, %s158
      %p162 = pneg %p156
      %p163 = scmp.eq.s32.totalorder %s15, 3
      %p164 = por %p162, %p163
      %p165 = scmp.ne.s32.totalorder %s157, %s160
      %p166 = scmp.eq.s32.totalorder %s15, 0
      %p167 = por %p165, %p166
      %p168 = scmp.ne.s32.totalorder %s157, %s160
      %p169 = scmp.eq.s32.totalorder %s20, 3
      %p170 = por %p168, %p169
      %p171 = scmp.ne.s32.totalorder %s160, %s161
      %p172 = scmp.eq.s32.totalorder %s20, 0
      %p173 = por %p171, %p172
      %p174 = scmp.ne.s32.totalorder %s160, %s161
      %p175 = scmp.eq.s32.totalorder %s21, 3
      %p176 = por %p174, %p175
      %p178 = scmp.ne.s32.totalorder %s161, %s177
      %p179 = scmp.eq.s32.totalorder %s21, 0
      %p180 = por %p178, %p179
      %s182 = sadd.s32 %s181, 1
      %p185 = scmp.eq.s32.totalorder %s15, 3
      %p186 = scmp.ne.s32.totalorder %s181, %s183
      %p187 = scmp.eq.s32.totalorder %s15, 0
      %p188 = por %p186, %p187
      %p189 = scmp.ne.s32.totalorder %s181, %s183
      %p190 = scmp.eq.s32.totalorder %s20, 3
      %p191 = por %p189, %p190
      %p192 = scmp.ne.s32.totalorder %s183, %s184
      %p193 = scmp.eq.s32.totalorder %s20, 0
      %p194 = por %p192, %p193
      %p195 = scmp.ne.s32.totalorder %s183, %s184
      %p196 = scmp.eq.s32.totalorder %s21, 3
      %p197 = por %p195, %p196
      %p199 = scmp.ne.s32.totalorder %s184, %s198
      %p200 = scmp.eq.s32.totalorder %s21, 0
      %p201 = por %p199, %p200
      %s203 = sadd.s32 %s202, 1
      %p206 = scmp.eq.s32.totalorder %s15, 3
      %p207 = scmp.ne.s32.totalorder %s202, %s204
      %p208 = scmp.eq.s32.totalorder %s15, 0
      %p209 = por %p207, %p208
      %p210 = scmp.ne.s32.totalorder %s202, %s204
      %p211 = scmp.eq.s32.totalorder %s20, 3
      %p212 = por %p210, %p211
      %p213 = scmp.ne.s32.totalorder %s204, %s205
      %p214 = scmp.eq.s32.totalorder %s20, 0
      %p215 = por %p213, %p214
      %p216 = scmp.ne.s32.totalorder %s204, %s205
      %p217 = scmp.eq.s32.totalorder %s21, 3
      %p218 = por %p216, %p217
      %p220 = scmp.ne.s32.totalorder %s205, %s219
      %p221 = scmp.eq.s32.totalorder %s21, 0
      %p222 = por %p220, %p221
      %s224 = sadd.s32 %s223, 1
      %p227 = scmp.eq.s32.totalorder %s15, 3
      %p228 = scmp.ne.s32.totalorder %s223, %s225
      %p229 = scmp.eq.s32.totalorder %s15, 0
      %p230 = por %p228, %p229
      %p231 = scmp.ne.s32.totalorder %s223, %s225
      %p232 = scmp.eq.s32.totalorder %s20, 3
      %p233 = por %p231, %p232
      %p234 = scmp.ne.s32.totalorder %s225, %s226
      %p235 = scmp.eq.s32.totalorder %s20, 0
      %p236 = por %p234, %p235
      %p237 = scmp.ne.s32.totalorder %s225, %s226
      %p238 = scmp.eq.s32.totalorder %s21, 3
      %p239 = por %p237, %p238
      %p241 = scmp.ne.s32.totalorder %s226, %s240
      %p242 = scmp.eq.s32.totalorder %s21, 0
      %p243 = por %p241, %p242
      %s244 = ssub.s32 %s22, %s34
      %p245 = scmp.eq.s32.totalorder %s244, 0
      %s247 = sadd.s32 %s246, 1
      %s248 = scalar_select %p245, %s246, %s247
      %p251 = pneg %p245
      %p252 = scmp.eq.s32.totalorder %s15, 3
      %p253 = por %p251, %p252
      %p254 = scmp.ne.s32.totalorder %s246, %s249
      %p255 = scmp.eq.s32.totalorder %s15, 0
      %p256 = por %p254, %p255
      %p257 = scmp.ne.s32.totalorder %s246, %s249
      %p258 = scmp.eq.s32.totalorder %s20, 3
      %p259 = por %p257, %p258
      %p260 = scmp.ne.s32.totalorder %s249, %s250
      %p261 = scmp.eq.s32.totalorder %s20, 0
      %p262 = por %p260, %p261
      %p263 = scmp.ne.s32.totalorder %s249, %s250
      %p264 = scmp.eq.s32.totalorder %s21, 3
      %p265 = por %p263, %p264
      %p267 = scmp.ne.s32.totalorder %s250, %s266
      %p268 = scmp.eq.s32.totalorder %s21, 0
      %p269 = por %p267, %p268
      %p270 = scmp.le.s32.totalorder 1, %s15
      %p271 = scmp.lt.s32.totalorder %s15, 5
      %p272 = pnand %p270, %p271
      %p273 = pneg %p272
      // Predicated region
      $region9: #{gptneo_model_forward.5} parent=5 // pred_check
        _
      $region10: #{gptneo_model_forward.5} parent=5 // pred_check_branch
        %275 = sbr.rel (%p272) target = $region12
      $region11: #{gptneo_model_forward.5} parent=5 // pred_region
        %s276 = ssub.s32 %s15, 1
        // Predicated region
        $region13: #{gptneo_model_forward.5} parent=11 // pred_check
          %p277 = pneg %p74
        $region14: #{gptneo_model_forward.5} parent=11 // pred_check_branch
          %279 = sbr.rel (%p277) target = $region16
        $region15: #{gptneo_model_forward.5} parent=11 // pred_region
          _
        $region16: #{gptneo_model_forward.5} parent=11 // pred_fallthru
          _
        // Predicated region
        $region17: #{gptneo_model_forward.5} parent=11 // pred_check
          %p280 = pneg %p95
        $region18: #{gptneo_model_forward.5} parent=11 // pred_check_branch
          %282 = sbr.rel (%p280) target = $region20
        $region19: #{gptneo_model_forward.5} parent=11 // pred_region
          _
        $region20: #{gptneo_model_forward.5} parent=11 // pred_fallthru
          _
        // Predicated region
        $region21: #{gptneo_model_forward.5} parent=11 // pred_check
          %p283 = pneg %p194
        $region22: #{gptneo_model_forward.5} parent=11 // pred_check_branch
          %285 = sbr.rel (%p283) target = $region24
        $region23: #{gptneo_model_forward.5} parent=11 // pred_region
          _
        $region24: #{gptneo_model_forward.5} parent=11 // pred_fallthru
          _
        // Predicated region
        $region25: #{gptneo_model_forward.5} parent=11 // pred_check
          %p286 = pneg %p215
        $region26: #{gptneo_model_forward.5} parent=11 // pred_check_branch
          %288 = sbr.rel (%p286) target = $region28
        $region27: #{gptneo_model_forward.5} parent=11 // pred_region
          _
        $region28: #{gptneo_model_forward.5} parent=11 // pred_fallthru
          _
        // Predicated region
        $region29: #{gptneo_model_forward.5} parent=11 // pred_check
          %p289 = pneg %p236
        $region30: #{gptneo_model_forward.5} parent=11 // pred_check_branch
          %291 = sbr.rel (%p289) target = $region32
        $region31: #{gptneo_model_forward.5} parent=11 // pred_region
          _
        $region32: #{gptneo_model_forward.5} parent=11 // pred_fallthru
          _
      $region12: #{gptneo_model_forward.5} parent=5 // pred_fallthru
        _
      %p292 = scmp.lt.s32.totalorder %s15, 4
      // Predicated region
      $region33: #{gptneo_model_forward.5} parent=5 // pred_check
        %p293 = pneg %p292
      $region34: #{gptneo_model_forward.5} parent=5 // pred_check_branch
        %295 = sbr.rel (%p293) target = $region36
      $region35: #{gptneo_model_forward.5} parent=5 // pred_region
        // Predicated region
        $region37: #{gptneo_model_forward.5} parent=35 // pred_check
          %p296 = pneg %p47
        $region38: #{gptneo_model_forward.5} parent=35 // pred_check_branch
          %298 = sbr.rel (%p296) target = $region40
        $region39: #{gptneo_model_forward.5} parent=35 // pred_region
          %s299 = smul.u32 2, %s22
          %p300 = scmp.lt.s32.totalorder %s299, 3
          %s301 = scalar_select %p300, %s299, 3
          %s302 = smul.addr %s301, 4
          %s303 = scalar_lea.vmem %s0, %s302
          %s304 = smul.u32 2, %s22
        $region40: #{gptneo_model_forward.5} parent=35 // pred_fallthru
          _
        // Predicated region
        $region41: #{gptneo_model_forward.5} parent=35 // pred_check
          %p305 = pneg %p115
        $region42: #{gptneo_model_forward.5} parent=35 // pred_check_branch
          %307 = sbr.rel (%p305) target = $region44
        $region43: #{gptneo_model_forward.5} parent=35 // pred_region
          %s308 = sand.u32 %s105, 1
          %s309 = sand.u32 %s105, 1
          %s310 = smul.addr %s309, 16
          %s311 = scalar_lea.vmem [#allocation4], %s310
          %s312 = smul.addr %s23, 4
          %s313 = scalar_lea.vmem %s3, %s312
          // Predicated region
          $region45: #{gptneo_model_forward.5} parent=43 // pred_check
            _
          $region46: #{gptneo_model_forward.5} parent=43 // pred_check_branch
            %315 = sbr.rel (0) target = $region48
          $region47: #{gptneo_model_forward.5} parent=43 // pred_region
            // Predicated region
            $region49: #{gptneo_model_forward.5} parent=47 // pred_check
              _
            $region50: #{gptneo_model_forward.5} parent=47 // pred_check_branch
              %317 = sbr.rel target = $region52
            $region51: #{gptneo_model_forward.5} parent=47 // pred_region
              // Predicated region
              $region64: #{gptneo_model_forward.5} parent=51 // pred_check
                _
              $region65: #{gptneo_model_forward.5} parent=51 // pred_check_branch
                %339 = sbr.rel (0) target = $region67
              $region66: #{gptneo_model_forward.5} parent=51 // pred_region
                loop: start=0, step=1, limit=1
                $region68: #{gptneo_model_forward.5} parent=66 // loop_pre_header
                  _
                $region69: #{gptneo_model_forward.5} parent=66 // loop_header
                  %s341 = sphi 0, %s345
                  %p342 = scmp.ge.s32.totalorder %s341, 1
                  %s346 = sphi %s313, %s313
                  %s347 = sphi %s311, %s311
                $region70: #{gptneo_model_forward.5} parent=66 // loop_header_branch
                  %344 = sbr.rel (%p342) target = $region74
                $region71: #{gptneo_model_forward.5} parent=66 // loop_body
                  _
                $region72: #{gptneo_model_forward.5} parent=66 // loop_footer
                  %s345 = sadd.s32 1, %s341
                $region73: #{gptneo_model_forward.5} parent=66 // loop_footer_branch
                  %340 = sbr.rel target = $region69
                $region74: #{gptneo_model_forward.5} parent=66 // loop_exit
                  _
                %s349 = ssub.s32 16, 1
                loop: start=0, step=1, limit=1
                $region75: #{gptneo_model_forward.5} parent=66 // loop_pre_header
                  _
                $region76: #{gptneo_model_forward.5} parent=66 // loop_header
                  %s351 = sphi 0, %s355
                  %p352 = scmp.ge.s32.totalorder %s351, 1
                  %s356 = sphi %s313, %s313
                  %s357 = sphi %s311, %s311
                $region77: #{gptneo_model_forward.5} parent=66 // loop_header_branch
                  %354 = sbr.rel (%p352) target = $region81
                $region78: #{gptneo_model_forward.5} parent=66 // loop_body
                  %v358 = vld [vmem:[%s356] sm:%s349]
                  %359 = vst [vmem:[%s357] sm:%s349] %v358
                  %v360 = vld [vmem:[%s356 + $0x8] sm:%s349]
                  %361 = vst [vmem:[%s357 + $0x4] sm:%s349] %v360
                  %v362 = vld [vmem:[%s356 + $0x10] sm:%s349]
                  %363 = vst [vmem:[%s357 + $0x8] sm:%s349] %v362
                  %v364 = vld [vmem:[%s356 + $0x18] sm:%s349]
                  %365 = vst [vmem:[%s357 + $0xc] sm:%s349] %v364
                $region79: #{gptneo_model_forward.5} parent=66 // loop_footer
                  %s355 = sadd.s32 1, %s351
                $region80: #{gptneo_model_forward.5} parent=66 // loop_footer_branch
                  %350 = sbr.rel target = $region76
                $region81: #{gptneo_model_forward.5} parent=66 // loop_exit
                  _
              $region67: #{gptneo_model_forward.5} parent=51 // pred_fallthru
                _
            $region52: #{gptneo_model_forward.5} parent=47 // pred_fallthru
              _
            // Predicated region
            $region53: #{gptneo_model_forward.5} parent=47 // pred_check
              _
            $region54: #{gptneo_model_forward.5} parent=47 // pred_check_branch
              %319 = sbr.rel (0) target = $region56
            $region55: #{gptneo_model_forward.5} parent=47 // pred_region
              %s321 = ssub.s32 16, 1
              loop: start=0, step=1, limit=1
              $region57: #{gptneo_model_forward.5} parent=55 // loop_pre_header
                _
              $region58: #{gptneo_model_forward.5} parent=55 // loop_header
                %s323 = sphi 0, %s327
                %p324 = scmp.ge.s32.totalorder %s323, 1
                %s328 = sphi %s313, %s313
                %s329 = sphi %s311, %s311
              $region59: #{gptneo_model_forward.5} parent=55 // loop_header_branch
                %326 = sbr.rel (%p324) target = $region63
              $region60: #{gptneo_model_forward.5} parent=55 // loop_body
                %v330 = vld [vmem:[%s328] sm:%s321]
                %331 = vst [vmem:[%s329] sm:%s321] %v330
                %v332 = vld [vmem:[%s328 + $0x8] sm:%s321]
                %333 = vst [vmem:[%s329 + $0x4] sm:%s321] %v332
                %v334 = vld [vmem:[%s328 + $0x10] sm:%s321]
                %335 = vst [vmem:[%s329 + $0x8] sm:%s321] %v334
                %v336 = vld [vmem:[%s328 + $0x18] sm:%s321]
                %337 = vst [vmem:[%s329 + $0xc] sm:%s321] %v336
              $region61: #{gptneo_model_forward.5} parent=55 // loop_footer
                %s327 = sadd.s32 1, %s323
              $region62: #{gptneo_model_forward.5} parent=55 // loop_footer_branch
                %322 = sbr.rel target = $region58
              $region63: #{gptneo_model_forward.5} parent=55 // loop_exit
                _
            $region56: #{gptneo_model_forward.5} parent=47 // pred_fallthru
              _
          $region48: #{gptneo_model_forward.5} parent=43 // pred_fallthru
            _
          %366 = vnop
        $region44: #{gptneo_model_forward.5} parent=35 // pred_fallthru
          _
        // Predicated region
        $region82: #{gptneo_model_forward.5} parent=35 // pred_check
          %p367 = pneg %p141
        $region83: #{gptneo_model_forward.5} parent=35 // pred_check_branch
          %369 = sbr.rel (%p367) target = $region85
        $region84: #{gptneo_model_forward.5} parent=35 // pred_region
          %p370 = scmp.lt.s32.totalorder %s23, 1
          %s371 = scalar_select %p370, %s23, 1
          %s372 = scalar_lea.vmem %s4, %s371
        $region85: #{gptneo_model_forward.5} parent=35 // pred_fallthru
          _
        // Predicated region
        $region86: #{gptneo_model_forward.5} parent=35 // pred_check
          %p373 = pneg %p167
        $region87: #{gptneo_model_forward.5} parent=35 // pred_check_branch
          %375 = sbr.rel (%p373) target = $region89
        $region88: #{gptneo_model_forward.5} parent=35 // pred_region
          %s376 = smul.u32 16, %s23
          %p377 = scmp.lt.s32.totalorder %s376, 31
          %s378 = scalar_select %p377, %s376, 31
          %s379 = smul.addr %s378, 4
          %s380 = scalar_lea.vmem %s5, %s379
          %s381 = smul.u32 16, %s23
        $region89: #{gptneo_model_forward.5} parent=35 // pred_fallthru
          _
      $region36: #{gptneo_model_forward.5} parent=5 // pred_fallthru
        _
      %p382 = scmp.le.s32.totalorder 1, %s15
      %p383 = scmp.lt.s32.totalorder %s15, 5
      %p384 = pnand %p382, %p383
      %p385 = pneg %p384
      // Predicated region
      $region90: #{gptneo_model_forward.5} parent=5 // pred_check
        _
      $region91: #{gptneo_model_forward.5} parent=5 // pred_check_branch
        %387 = sbr.rel (%p384) target = $region93
      $region92: #{gptneo_model_forward.5} parent=5 // pred_region
        %s388 = ssub.s32 %s15, 1
        %s389 = sand.u32 %s108, 1
        %s390 = sand.u32 %s108, 1
        %s391 = smul.addr %s390, 16
        %s392 = scalar_lea.vmem [#allocation4], %s391
        // Predicated region
        $region94: #{gptneo_model_forward.5} parent=92 // pred_check
          %p393 = pneg %p121
        $region95: #{gptneo_model_forward.5} parent=92 // pred_check_branch
          %395 = sbr.rel (%p393) target = $region97
        $region96: #{gptneo_model_forward.5} parent=92 // pred_region
          _
        $region97: #{gptneo_model_forward.5} parent=92 // pred_fallthru
          _
        %s396 = smul.u32 2, %s24
        %p397 = scmp.lt.s32.totalorder %s396, 3
        %s398 = scalar_select %p397, %s396, 3
        %s399 = smul.addr %s398, 4
        %s400 = scalar_lea.vmem %s0, %s399
        %p401 = pneg %p53
        %p402 = pneg %p50
        %p403 = pneg %p74
        %p404 = pneg %p71
        %p405 = pneg %p95
        %p406 = pneg %p92
        %s407 = sand.u32 %s108, 1
        %s408 = sand.u32 %s108, 1
        %s409 = smul.addr %s408, 16
        %s410 = scalar_lea.vmem [#allocation4], %s409
        %p411 = pneg %p121
        %p412 = pneg %p118
        %p413 = scmp.lt.s32.totalorder %s25, 1
        %s414 = scalar_select %p413, %s25, 1
        %s415 = scalar_lea.vmem %s4, %s414
        %p416 = pneg %p147
        %p417 = pneg %p144
        %s418 = smul.u32 16, %s25
        %p419 = scmp.lt.s32.totalorder %s418, 31
        %s420 = scalar_select %p419, %s418, 31
        %s421 = smul.addr %s420, 4
        %s422 = scalar_lea.vmem %s5, %s421
        %p423 = pneg %p173
        %p424 = pneg %p170
        %p425 = pneg %p194
        %p426 = pneg %p191
        %p427 = pneg %p215
        %p428 = pneg %p212
        %p429 = pneg %p236
        %p430 = pneg %p233
        %p431 = pneg %p262
        %p432 = pneg %p259
        %s433 = smul.u32 2, %s24
        %p434 = scmp.lt.s32.totalorder %s433, 3
        %s435 = scalar_select %p434, %s433, 3
        %s436 = smul.addr %s435, 4
        %s437 = scalar_lea.vmem %s9, %s436
        %s438 = smul.u32 2, %s24
        %p439 = scmp.lt.s32.totalorder %s438, 3
        %s440 = scalar_select %p439, %s438, 3
        %s441 = smul.addr %s440, 4
        %s442 = scalar_lea.vmem %s0, %s441
        %s443 = smul.u32 2, %s24
        %p444 = scmp.lt.s32.totalorder %s25, 1
        %s445 = scalar_select %p444, %s25, 1
        %s446 = scalar_lea.vmem %s4, %s445
        %s447 = smul.u32 16, %s25
        %p448 = scmp.lt.s32.totalorder %s447, 31
        %s449 = scalar_select %p448, %s447, 31
        %s450 = smul.addr %s449, 4
        %s451 = scalar_lea.vmem %s5, %s450
        %s452 = smul.u32 16, %s25
        %s453 = smul.u32 2, %s24
        %p454 = scmp.lt.s32.totalorder %s453, 3
        %s455 = scalar_select %p454, %s453, 3
        %s456 = smul.addr %s455, 4
        %s457 = scalar_lea.vmem %s9, %s456
        %s458 = smul.u32 2, %s24
        %p460 = scmp.eq.s32.totalorder %s25, 0
        // Predicated region
        $region98: #{gptneo_model_forward.5} parent=92 // pred_check
          %p461 = pneg %p460
        $region99: #{gptneo_model_forward.5} parent=92 // pred_check_branch
          %463 = sbr.rel (%p461) target = $region101
        $region100: #{gptneo_model_forward.5} parent=92 // pred_region
          %v464 = vld [vmem:[%s442] sm:$0xf]
          %v465 = vld [vmem:[%s442 + $0x4] sm:$0xf]
          %v466 = vunpack.c.l.bf16 %v464
          %v467 = vunpack.c.l.bf16 %v465
          %v468 = vld [vmem:[%s1] sm:$0x1]
          %v469 = vld [vmem:[%s2] sm:$0x1]
          %vm470 = vcmask 261120
          %v471 = vsel %vm470, %v466, 0.0
          %472 = vadd.xlane.f32.xlu0 %v471
          %v473 = vpop.xlane.xlu0 %472
          %v474 = vsel %vm470, %v467, 0.0
          %475 = vadd.xlane.f32.xlu0 %v474
          %v476 = vpop.xlane.xlu0 %475
          %v477 = vrcp.pop 32.0
          %v478 = vmul.f32 %v473, %v477
          %v479 = vmul.f32 %v476, %v477
          %v480 = vsub.f32 %v466, %v478
          %v481 = vsub.f32 %v467, %v479
          %v482 = vmul.f32 %v480, %v480
          %v483 = vmul.f32 %v481, %v481
          %v484 = vsel %vm470, %v482, 0.0
          %485 = vadd.xlane.f32.xlu0 %v484
          %v486 = vpop.xlane.xlu0 %485
          %v487 = vsel %vm470, %v483, 0.0
          %488 = vadd.xlane.f32.xlu0 %v487
          %v489 = vpop.xlane.xlu0 %488
          %v490 = vmul.f32 %v486, %v477
          %v491 = vmul.f32 %v489, %v477
          %v492 = vadd.f32 %v490, 1e-05
          %v493 = vadd.f32 %v491, 1e-05
          %v494 = vrsqrt.pop %v492
          %v495 = vrsqrt.pop %v493
          %v496 = vmul.f32 %v480, %v494
          %v497 = vmul.f32 %v481, %v495
          %v499 = vlaneseq
          %v500 = vshrl.u32 %v499, 7
          %v501 = vsub.s32 0, %v500
          %v502 = vrot.slane %v468, %v501
          %v504 = vmul.f32 %v496, %v502
          %v505 = vmul.f32 %v497, %v502
          %v507 = vlaneseq
          %v508 = vshrl.u32 %v507, 7
          %v509 = vsub.s32 0, %v508
          %v510 = vrot.slane %v469, %v509
          %v512 = vadd.f32 %v504, %v510
          %v513 = vadd.f32 %v505, %v510
          %v514 = vpack.c.bf16 %v513, %v512
          %v516 = vunpack.c.l.b16 %v514
          %v517 = vunpack.c.h.b16 %v514
          %v518 = vpack.c.b16 %v516, %v516
          %v519 = vpack.c.b16 %v517, %v517
          %vm522 = vcmask 257024
          %523 = vst.msk [vmem:[#allocation2] sm:$0xf] %vm522, %v518
          %524 = vst.msk [vmem:[#allocation2 + $0x4] sm:$0xf] %vm522, %v519
          %525 = vst.msk [vmem:[#allocation3] sm:$0xff] %vm470, 0.0
          %526 = vst.msk [vmem:[#allocation3 + $0x8] sm:$0xff] %vm470, 0.0
        $region101: #{gptneo_model_forward.5} parent=92 // pred_fallthru
          _
        %v527 = vld [vmem:[#allocation2] sm:$0xf]
        %v528 = vld [vmem:[#allocation2 + $0x4] sm:$0xf]
        %v529 = vld [vmem:[%s392] sm:$0xf]
        %v530 = vld [vmem:[%s392 + $0x4] sm:$0xf]
        %v531 = vld [vmem:[%s392 + $0x8] sm:$0xf]
        %v532 = vld [vmem:[%s392 + $0xc] sm:$0xf]
        %v533 = vld [vmem:[%s446] sm:$0x1]
        %v535 = vlaneseq
        %v536 = vshrl.u32 %v535, 7
        %v537 = vsub.s32 0, %v536
        %v538 = vrot.slane %v533, %v537
        %v542 = vunpack.c.l.b16 %v527
        %v543 = vunpack.c.l.b16 %v528
        %v544 = vpack.c.b16 %v543, %v542
        %v549 = vunpack.c.l.b16 %v529
        %v550 = vunpack.c.l.b16 %v530
        %v551 = vunpack.c.l.b16 %v531
        %v552 = vunpack.c.l.b16 %v532
        %v553 = vpack.c.b16 %v550, %v549
        %v554 = vpack.c.b16 %v552, %v551
        %vm557 = vcmask 261120
        %v559 = vsel %vm557, %v544, 0
        %561 = vmatprep.subr.bf16.mxu0 0
        %562 = vmatpush1.bf16.msra.mxu0 0
        %563 = vmatprep.subr.bf16.mxu0 0
        %564 = vmatpush1.bf16.msra.mxu0 0
        %565 = vmatprep.subr.bf16.mxu0 0
        %566 = vmatpush1.bf16.msra.mxu0 0
        %567 = vmatprep.subr.bf16.mxu0 0
        %568 = vmatpush1.bf16.msra.mxu0 0
        %569 = vmatprep.subr.bf16.mxu0 0
        %570 = vmatpush1.bf16.msra.mxu0 0
        %571 = vmatprep.subr.bf16.mxu0 0
        %572 = vmatpush1.bf16.msra.mxu0 0
        %573 = vmatprep.subr.bf16.mxu0 0
        %574 = vmatpush1.bf16.msra.mxu0 %v554
        %575 = vmatprep.subr.bf16.mxu0 0
        %576 = vmatpush1.bf16.msra.mxu0 %v553
        %577 = vmatprep.subr.bf16.mxu0 0
        %578 = vmatpush2.bf16.msra.mxu0 0
        %579 = vmatprep.subr.bf16.mxu0 0
        %580 = vmatpush2.bf16.msra.mxu0 0
        %581 = vmatprep.subr.bf16.mxu0 0
        %582 = vmatpush2.bf16.msra.mxu0 0
        %583 = vmatprep.subr.bf16.mxu0 0
        %584 = vmatpush2.bf16.msra.mxu0 0
        %585 = vmatprep.subr.bf16.mxu0 0
        %586 = vmatpush2.bf16.msra.mxu0 0
        %587 = vmatprep.subr.bf16.mxu0 0
        %588 = vmatpush2.bf16.msra.mxu0 0
        %589 = vmatprep.subr.bf16.mxu0 0
        %590 = vmatpush2.bf16.msra.mxu0 0
        %591 = vmatprep.subr.bf16.mxu0 0
        %592 = vmatpush2.bf16.msra.mxu0 0
        %593 = vmatprep.mubr.bf16.mxu0 0
        %594 = vmatmul.mubr.bf16.gmra.mxu0 %v559
        %v595 = vpop.f32.mrf.mxu0
        %v596 = vadd.f32 %v538, %v595
        %v597 = vpop.f32.mrf.mxu0
        %v598 = vpop.f32.mrf.mxu0
        %v599 = vadd.f32 %v538, %v598
        %v600 = vpop.f32.mrf.mxu0
        %601 = vdwg.mxu0
        %v602 = vmul.f32 %v596, 0.5
        %v603 = vmul.f32 %v599, 0.5
        %v604 = vmul.f32 %v596, 0.044715
        %v605 = vmul.f32 %v599, 0.044715
        %v606 = vmul.f32 %v604, %v596
        %v607 = vmul.f32 %v605, %v599
        %v608 = vmul.f32 %v606, %v596
        %v609 = vmul.f32 %v607, %v599
        %v610 = vadd.f32 %v596, %v608
        %v611 = vadd.f32 %v599, %v609
        %v612 = vmul.f32 %v610, 0.7978846
        %v613 = vmul.f32 %v611, 0.7978846
        %v614 = vtanh.pop %v612
        %v615 = vtanh.pop %v613
        %v616 = vadd.f32 %v614, 1.0
        %v617 = vadd.f32 %v615, 1.0
        %v618 = vmul.f32 %v602, %v616
        %v619 = vmul.f32 %v603, %v617
        %v620 = vld [vmem:[#allocation3] sm:$0xff]
        %v621 = vld [vmem:[#allocation3 + $0x8] sm:$0xff]
        %v622 = vpack.c.bf16 %v619, %v618
        %v623 = vld [vmem:[%s451] sm:$0xf]
        %v624 = vld [vmem:[%s451 + $0x4] sm:$0xf]
        %v625 = vld [vmem:[%s451 + $0x8] sm:$0xf]
        %v626 = vld [vmem:[%s451 + $0xc] sm:$0xf]
        %v627 = vld [vmem:[%s451 + $0x10] sm:$0xf]
        %v628 = vld [vmem:[%s451 + $0x14] sm:$0xf]
        %v629 = vld [vmem:[%s451 + $0x18] sm:$0xf]
        %v630 = vld [vmem:[%s451 + $0x1c] sm:$0xf]
        %v631 = vld [vmem:[%s451 + $0x20] sm:$0xf]
        %v632 = vld [vmem:[%s451 + $0x24] sm:$0xf]
        %v633 = vld [vmem:[%s451 + $0x28] sm:$0xf]
        %v634 = vld [vmem:[%s451 + $0x2c] sm:$0xf]
        %v635 = vld [vmem:[%s451 + $0x30] sm:$0xf]
        %v636 = vld [vmem:[%s451 + $0x34] sm:$0xf]
        %v637 = vld [vmem:[%s451 + $0x38] sm:$0xf]
        %v638 = vld [vmem:[%s451 + $0x3c] sm:$0xf]
        %v655 = vunpack.c.l.b16 %v623
        %v656 = vunpack.c.l.b16 %v624
        %v657 = vunpack.c.l.b16 %v625
        %v658 = vunpack.c.l.b16 %v626
        %v659 = vunpack.c.l.b16 %v627
        %v660 = vunpack.c.l.b16 %v628
        %v661 = vunpack.c.l.b16 %v629
        %v662 = vunpack.c.l.b16 %v630
        %v663 = vunpack.c.l.b16 %v631
        %v664 = vunpack.c.l.b16 %v632
        %v665 = vunpack.c.l.b16 %v633
        %v666 = vunpack.c.l.b16 %v634
        %v667 = vunpack.c.l.b16 %v635
        %v668 = vunpack.c.l.b16 %v636
        %v669 = vunpack.c.l.b16 %v637
        %v670 = vunpack.c.l.b16 %v638
        %v671 = vpack.c.b16 %v656, %v655
        %v672 = vpack.c.b16 %v658, %v657
        %v673 = vpack.c.b16 %v660, %v659
        %v674 = vpack.c.b16 %v662, %v661
        %v675 = vpack.c.b16 %v664, %v663
        %v676 = vpack.c.b16 %v666, %v665
        %v677 = vpack.c.b16 %v668, %v667
        %v678 = vpack.c.b16 %v670, %v669
        %687 = vmatprep.subr.bf16.mxu0 0
        %688 = vmatpush1.bf16.msra.mxu0 %v678
        %689 = vmatprep.subr.bf16.mxu0 0
        %690 = vmatpush1.bf16.msra.mxu0 %v677
        %691 = vmatprep.subr.bf16.mxu0 0
        %692 = vmatpush1.bf16.msra.mxu0 %v676
        %693 = vmatprep.subr.bf16.mxu0 0
        %694 = vmatpush1.bf16.msra.mxu0 %v675
        %695 = vmatprep.subr.bf16.mxu0 0
        %696 = vmatpush1.bf16.msra.mxu0 %v674
        %697 = vmatprep.subr.bf16.mxu0 0
        %698 = vmatpush1.bf16.msra.mxu0 %v673
        %699 = vmatprep.subr.bf16.mxu0 0
        %700 = vmatpush1.bf16.msra.mxu0 %v672
        %701 = vmatprep.subr.bf16.mxu0 0
        %702 = vmatpush1.bf16.msra.mxu0 %v671
        %703 = vmatprep.subr.bf16.mxu0 0
        %704 = vmatpush2.bf16.msra.mxu0 0
        %705 = vmatprep.subr.bf16.mxu0 0
        %706 = vmatpush2.bf16.msra.mxu0 0
        %707 = vmatprep.subr.bf16.mxu0 0
        %708 = vmatpush2.bf16.msra.mxu0 0
        %709 = vmatprep.subr.bf16.mxu0 0
        %710 = vmatpush2.bf16.msra.mxu0 0
        %711 = vmatprep.subr.bf16.mxu0 0
        %712 = vmatpush2.bf16.msra.mxu0 0
        %713 = vmatprep.subr.bf16.mxu0 0
        %714 = vmatpush2.bf16.msra.mxu0 0
        %715 = vmatprep.subr.bf16.mxu0 0
        %716 = vmatpush2.bf16.msra.mxu0 0
        %717 = vmatprep.subr.bf16.mxu0 0
        %718 = vmatpush2.bf16.msra.mxu0 0
        %719 = vmatprep.mubr.bf16.mxu0 0
        %720 = vmatmul.mubr.bf16.gmra.mxu0 %v622
        %v721 = vpop.f32.mrf.mxu0
        %v722 = vadd.f32 0.0, %v721
        %v723 = vpop.f32.mrf.mxu0
        %v724 = vpop.f32.mrf.mxu0
        %v725 = vadd.f32 0.0, %v724
        %v726 = vpop.f32.mrf.mxu0
        %727 = vdwg.mxu0
        %v728 = vadd.f32 %v620, %v722
        %v729 = vadd.f32 %v621, %v725
        %730 = vst.msk [vmem:[#allocation3] sm:$0xff] %vm557, %v728
        %731 = vst.msk [vmem:[#allocation3 + $0x8] sm:$0xff] %vm557, %v729
        %p732 = scmp.eq.s32.totalorder %s25, 1
        // Predicated region
        $region102: #{gptneo_model_forward.5} parent=92 // pred_check
          %p733 = pneg %p732
        $region103: #{gptneo_model_forward.5} parent=92 // pred_check_branch
          %735 = sbr.rel (%p733) target = $region105
        $region104: #{gptneo_model_forward.5} parent=92 // pred_region
          %v736 = vld [vmem:[%s442] sm:$0xf]
          %v737 = vld [vmem:[%s442 + $0x4] sm:$0xf]
          %v738 = vunpack.c.l.bf16 %v736
          %v739 = vunpack.c.l.bf16 %v737
          %v740 = vld [vmem:[#allocation3] sm:$0xff]
          %v741 = vld [vmem:[#allocation3 + $0x8] sm:$0xff]
          %v742 = vadd.f32 %v738, %v740
          %v743 = vadd.f32 %v739, %v741
          %v744 = vld [vmem:[%s6] sm:$0x1]
          %v746 = vlaneseq
          %v747 = vshrl.u32 %v746, 7
          %v748 = vsub.s32 0, %v747
          %v749 = vrot.slane %v744, %v748
          %v751 = vadd.f32 %v742, %v749
          %v752 = vadd.f32 %v743, %v749
          %v753 = vpack.c.bf16 %v752, %v751
          %v755 = vunpack.c.l.b16 %v753
          %v756 = vunpack.c.h.b16 %v753
          %v757 = vpack.c.b16 %v755, %v755
          %v758 = vpack.c.b16 %v756, %v756
          %vm761 = vcmask 257024
          %762 = vst.msk [vmem:[%s457] sm:$0xf] %vm761, %v757
          %763 = vst.msk [vmem:[%s457 + $0x4] sm:$0xf] %vm761, %v758
        $region105: #{gptneo_model_forward.5} parent=92 // pred_fallthru
          _
        %s764 = smul.u32 2, %s24
        %p765 = scmp.lt.s32.totalorder %s764, 3
        %s766 = scalar_select %p765, %s764, 3
        %s767 = smul.addr %s766, 4
        %s768 = scalar_lea.vmem %s9, %s767
        // Predicated region
        $region106: #{gptneo_model_forward.5} parent=92 // pred_check
          %p769 = pneg %p259
        $region107: #{gptneo_model_forward.5} parent=92 // pred_check_branch
          %771 = sbr.rel (%p769) target = $region109
        $region108: #{gptneo_model_forward.5} parent=92 // pred_region
          %s772 = smul.u32 2, %s24
        $region109: #{gptneo_model_forward.5} parent=92 // pred_fallthru
          _
      $region93: #{gptneo_model_forward.5} parent=5 // pred_fallthru
        _
      %p773 = scmp.le.s32.totalorder 2, %s15
      // Predicated region
      $region110: #{gptneo_model_forward.5} parent=5 // pred_check
        %p774 = pneg %p773
      $region111: #{gptneo_model_forward.5} parent=5 // pred_check_branch
        %776 = sbr.rel (%p774) target = $region113
      $region112: #{gptneo_model_forward.5} parent=5 // pred_region
        %s777 = ssub.s32 %s15, 2
        // Predicated region
        $region114: #{gptneo_model_forward.5} parent=112 // pred_check
          %p778 = pneg %p265
        $region115: #{gptneo_model_forward.5} parent=112 // pred_check_branch
          %780 = sbr.rel (%p778) target = $region117
        $region116: #{gptneo_model_forward.5} parent=112 // pred_region
          %s781 = smul.u32 2, %s26
          %p782 = scmp.lt.s32.totalorder %s781, 3
          %s783 = scalar_select %p782, %s781, 3
          %s784 = smul.addr %s783, 4
          %s785 = scalar_lea.vmem %s9, %s784
        $region117: #{gptneo_model_forward.5} parent=112 // pred_fallthru
          _
      $region113: #{gptneo_model_forward.5} parent=5 // pred_fallthru
        _
    $region6: #{gptneo_model_forward.5} parent=1 // loop_footer
      %s19 = sadd.s32 1, %s15
    $region7: #{gptneo_model_forward.5} parent=1 // loop_footer_branch
      %14 = sbr.rel target = $region3
    $region8: #{gptneo_model_forward.5} parent=1 // loop_exit
      _

// kernel: gptneo_model_forward.4
$region0: #{gptneo_model_forward.4}
  #allocation0 [shape = 'u32[]', space=smem, size = 0x4, offset = 0x4, fixed_abs, tag = 'smem constant byte address 0x4 - core index']
  #allocation1 [shape = 'u32[144,128]{1,0:T(1,128)}', space=vmem, size = 0x12000, scoped, tag = 'internal scratch']
  #allocation2 [shape = 'bf16[4,8,8]{2,1,0:T(8,128)(2,1)}', space=vmem, size = 0x2000, scoped, tag = 'scratch operand']
  #allocation3 [shape = 'f32[4,8]{1,0:T(4,128)}', space=vmem, size = 0x800, scoped, tag = 'scratch operand']
  #allocation4 [shape = 'f32[4,8]{1,0:T(4,128)}', space=vmem, size = 0x800, scoped, tag = 'scratch operand']
  #allocation5 [shape = 'f32[4,8,8]{2,1,0:T(8,128)}', space=vmem, size = 0x4000, scoped, tag = 'scratch operand']
  %s0 = inlined_call_operand.vmem [shape: bf16[32,32], index: 0, kind: input, shape index: {}, may-alias: {0,1}]
  %s1 = inlined_call_operand.vmem [shape: bf16[32,32], index: 1, kind: input, shape index: {}, may-alias: {0,1}]
  %s2 = inlined_call_operand.vmem [shape: s32[2,2,1,8], index: 2, kind: input, shape index: {}]
  %s3 = inlined_call_operand.vmem [shape: f32[1,32], index: 3, kind: input, shape index: {}]
  %s4 = inlined_call_operand.vmem [shape: f32[1,32], index: 4, kind: input, shape index: {}]
  %s5 = inlined_call_operand.vmem [shape: bf16[32,32], index: 5, kind: input, shape index: {}]
  %s6 = inlined_call_operand.vmem [shape: bf16[32,64], index: 6, kind: input, shape index: {}]
  %s7 = inlined_call_operand.vmem [shape: bf16[32,32], index: 7, kind: input, shape index: {}]
  %s8 = inlined_call_operand.vmem [shape: f32[1,32], index: 8, kind: input, shape index: {}]
  %s9 = inlined_call_operand.vmem [shape: bf16[32,32], index: 9, kind: output, shape index: {}]
  %s10 = sld [smem:[#allocation0]]
  $region81: #{gptneo_model_forward.4} parent=0
    _
  %s12 = ssub.s32 1, %s10
  %s13 = scalar_select 0, %s12, %s10
  loop: start=0, step=1, limit=10
  $region2: #{gptneo_model_forward.4} parent=0 // loop_pre_header
    _
  $region3: #{gptneo_model_forward.4} parent=0 // loop_header
    %s15 = sphi 0, %s19
    %p16 = scmp.ge.s32.totalorder %s15, 10
    %s22 = sphi 0, %s41
    %s23 = sphi 0, %s37
    %s24 = sphi 0, %s33
    %s25 = sphi 0, %s22
    %s26 = sphi 0, %s23
    %s27 = sphi 0, %s24
    %s28 = sphi 0, %s25
    %s29 = sphi 0, %s26
    %s30 = sphi 0, %s27
    %s48 = sphi 0, %s50
    %s51 = sphi 0, %s48
    %s52 = sphi 0, %s51
    %s68 = sphi 0, %s52
    %s78 = sphi 0, %s80
    %s81 = sphi 0, %s78
    %s82 = sphi 0, %s81
    %s98 = sphi 0, %s82
    %s106 = sphi 0, %s108
    %s109 = sphi 0, %s106
    %s110 = sphi 0, %s109
    %s126 = sphi 0, %s110
    %s130 = sphi 0, %s130
    %s132 = sphi 0, %s130
    %s133 = sphi 0, %s132
    %s147 = sphi 0, %s133
    %s151 = sphi 0, %s151
    %s153 = sphi 0, %s151
    %s154 = sphi 0, %s153
    %s168 = sphi 0, %s154
    %s172 = sphi 0, %s172
    %s174 = sphi 0, %s172
    %s175 = sphi 0, %s174
    %s189 = sphi 0, %s175
    %s193 = sphi 0, %s193
    %s195 = sphi 0, %s193
    %s196 = sphi 0, %s195
    %s210 = sphi 0, %s196
    %s214 = sphi 0, %s214
    %s216 = sphi 0, %s214
    %s217 = sphi 0, %s216
    %s231 = sphi 0, %s217
    %s235 = sphi 0, %s235
    %s237 = sphi 0, %s235
    %s238 = sphi 0, %s237
    %s252 = sphi 0, %s238
    %s262 = sphi 0, %s264
    %s265 = sphi 0, %s262
    %s266 = sphi 0, %s265
    %s282 = sphi 0, %s266
  $region4: #{gptneo_model_forward.4} parent=0 // loop_header_branch
    %18 = sbr.rel (%p16) target = $region8
  $region5: #{gptneo_model_forward.4} parent=0 // loop_body
    %s20 = ssub.s32 %s15, 1
    %s21 = ssub.s32 %s15, 2
    %s31 = sadd.s32 1, %s24
    %p32 = scmp.ge.s32.totalorder %s31, 2
    %s33 = scalar_select %p32, 0, %s31
    %s34 = sadd.s32 1, %s23
    %s35 = scalar_select %p32, %s34, %s23
    %p36 = scmp.ge.s32.totalorder %s35, 2
    %s37 = scalar_select %p36, 0, %s35
    %s38 = sadd.s32 1, %s22
    %s39 = scalar_select %p36, %s38, %s22
    %p40 = scmp.ge.s32.totalorder %s39, 2
    %s41 = scalar_select %p40, 0, %s39
    %s42 = smul.u32 %s22, 2
    %s43 = sadd.s32 %s42, %s23
    %s44 = smul.u32 %s41, 2
    %s45 = sadd.s32 %s44, %s37
    %s46 = ssub.s32 %s43, %s45
    %p47 = scmp.eq.s32.totalorder %s46, 0
    %s49 = sadd.s32 %s48, 1
    %s50 = scalar_select %p47, %s48, %s49
    %p53 = pneg %p47
    %p54 = scmp.eq.s32.totalorder %s15, 7
    %p55 = por %p53, %p54
    %p56 = scmp.ne.s32.totalorder %s48, %s51
    %p57 = scmp.eq.s32.totalorder %s15, 0
    %p58 = por %p56, %p57
    %p59 = scmp.ne.s32.totalorder %s48, %s51
    %p60 = scmp.eq.s32.totalorder %s20, 7
    %p61 = por %p59, %p60
    %p62 = scmp.ne.s32.totalorder %s51, %s52
    %p63 = scmp.eq.s32.totalorder %s20, 0
    %p64 = por %p62, %p63
    %p65 = scmp.ne.s32.totalorder %s51, %s52
    %p66 = scmp.eq.s32.totalorder %s21, 7
    %p67 = por %p65, %p66
    %p69 = scmp.ne.s32.totalorder %s52, %s68
    %p70 = scmp.eq.s32.totalorder %s21, 0
    %p71 = por %p69, %p70
    %s72 = smul.u32 %s22, 2
    %s73 = sadd.s32 %s72, %s24
    %s74 = smul.u32 %s41, 2
    %s75 = sadd.s32 %s74, %s33
    %s76 = ssub.s32 %s73, %s75
    %p77 = scmp.eq.s32.totalorder %s76, 0
    %s79 = sadd.s32 %s78, 1
    %s80 = scalar_select %p77, %s78, %s79
    %p83 = pneg %p77
    %p84 = scmp.eq.s32.totalorder %s15, 7
    %p85 = por %p83, %p84
    %p86 = scmp.ne.s32.totalorder %s78, %s81
    %p87 = scmp.eq.s32.totalorder %s15, 0
    %p88 = por %p86, %p87
    %p89 = scmp.ne.s32.totalorder %s78, %s81
    %p90 = scmp.eq.s32.totalorder %s20, 7
    %p91 = por %p89, %p90
    %p92 = scmp.ne.s32.totalorder %s81, %s82
    %p93 = scmp.eq.s32.totalorder %s20, 0
    %p94 = por %p92, %p93
    %p95 = scmp.ne.s32.totalorder %s81, %s82
    %p96 = scmp.eq.s32.totalorder %s21, 7
    %p97 = por %p95, %p96
    %p99 = scmp.ne.s32.totalorder %s82, %s98
    %p100 = scmp.eq.s32.totalorder %s21, 0
    %p101 = por %p99, %p100
    %s102 = ssub.s32 %s22, %s41
    %s103 = ssub.s32 %s24, %s33
    %s104 = sor.u32 %s102, %s103
    %p105 = scmp.eq.s32.totalorder %s104, 0
    %s107 = sadd.s32 %s106, 1
    %s108 = scalar_select %p105, %s106, %s107
    %p111 = pneg %p105
    %p112 = scmp.eq.s32.totalorder %s15, 7
    %p113 = por %p111, %p112
    %p114 = scmp.ne.s32.totalorder %s106, %s109
    %p115 = scmp.eq.s32.totalorder %s15, 0
    %p116 = por %p114, %p115
    %p117 = scmp.ne.s32.totalorder %s106, %s109
    %p118 = scmp.eq.s32.totalorder %s20, 7
    %p119 = por %p117, %p118
    %p120 = scmp.ne.s32.totalorder %s109, %s110
    %p121 = scmp.eq.s32.totalorder %s20, 0
    %p122 = por %p120, %p121
    %p123 = scmp.ne.s32.totalorder %s109, %s110
    %p124 = scmp.eq.s32.totalorder %s21, 7
    %p125 = por %p123, %p124
    %p127 = scmp.ne.s32.totalorder %s110, %s126
    %p128 = scmp.eq.s32.totalorder %s21, 0
    %p129 = por %p127, %p128
    %s131 = sadd.s32 %s130, 1
    %p134 = scmp.eq.s32.totalorder %s15, 7
    %p135 = scmp.ne.s32.totalorder %s130, %s132
    %p136 = scmp.eq.s32.totalorder %s15, 0
    %p137 = por %p135, %p136
    %p138 = scmp.ne.s32.totalorder %s130, %s132
    %p139 = scmp.eq.s32.totalorder %s20, 7
    %p140 = por %p138, %p139
    %p141 = scmp.ne.s32.totalorder %s132, %s133
    %p142 = scmp.eq.s32.totalorder %s20, 0
    %p143 = por %p141, %p142
    %p144 = scmp.ne.s32.totalorder %s132, %s133
    %p145 = scmp.eq.s32.totalorder %s21, 7
    %p146 = por %p144, %p145
    %p148 = scmp.ne.s32.totalorder %s133, %s147
    %p149 = scmp.eq.s32.totalorder %s21, 0
    %p150 = por %p148, %p149
    %s152 = sadd.s32 %s151, 1
    %p155 = scmp.eq.s32.totalorder %s15, 7
    %p156 = scmp.ne.s32.totalorder %s151, %s153
    %p157 = scmp.eq.s32.totalorder %s15, 0
    %p158 = por %p156, %p157
    %p159 = scmp.ne.s32.totalorder %s151, %s153
    %p160 = scmp.eq.s32.totalorder %s20, 7
    %p161 = por %p159, %p160
    %p162 = scmp.ne.s32.totalorder %s153, %s154
    %p163 = scmp.eq.s32.totalorder %s20, 0
    %p164 = por %p162, %p163
    %p165 = scmp.ne.s32.totalorder %s153, %s154
    %p166 = scmp.eq.s32.totalorder %s21, 7
    %p167 = por %p165, %p166
    %p169 = scmp.ne.s32.totalorder %s154, %s168
    %p170 = scmp.eq.s32.totalorder %s21, 0
    %p171 = por %p169, %p170
    %s173 = sadd.s32 %s172, 1
    %p176 = scmp.eq.s32.totalorder %s15, 7
    %p177 = scmp.ne.s32.totalorder %s172, %s174
    %p178 = scmp.eq.s32.totalorder %s15, 0
    %p179 = por %p177, %p178
    %p180 = scmp.ne.s32.totalorder %s172, %s174
    %p181 = scmp.eq.s32.totalorder %s20, 7
    %p182 = por %p180, %p181
    %p183 = scmp.ne.s32.totalorder %s174, %s175
    %p184 = scmp.eq.s32.totalorder %s20, 0
    %p185 = por %p183, %p184
    %p186 = scmp.ne.s32.totalorder %s174, %s175
    %p187 = scmp.eq.s32.totalorder %s21, 7
    %p188 = por %p186, %p187
    %p190 = scmp.ne.s32.totalorder %s175, %s189
    %p191 = scmp.eq.s32.totalorder %s21, 0
    %p192 = por %p190, %p191
    %s194 = sadd.s32 %s193, 1
    %p197 = scmp.eq.s32.totalorder %s15, 7
    %p198 = scmp.ne.s32.totalorder %s193, %s195
    %p199 = scmp.eq.s32.totalorder %s15, 0
    %p200 = por %p198, %p199
    %p201 = scmp.ne.s32.totalorder %s193, %s195
    %p202 = scmp.eq.s32.totalorder %s20, 7
    %p203 = por %p201, %p202
    %p204 = scmp.ne.s32.totalorder %s195, %s196
    %p205 = scmp.eq.s32.totalorder %s20, 0
    %p206 = por %p204, %p205
    %p207 = scmp.ne.s32.totalorder %s195, %s196
    %p208 = scmp.eq.s32.totalorder %s21, 7
    %p209 = por %p207, %p208
    %p211 = scmp.ne.s32.totalorder %s196, %s210
    %p212 = scmp.eq.s32.totalorder %s21, 0
    %p213 = por %p211, %p212
    %s215 = sadd.s32 %s214, 1
    %p218 = scmp.eq.s32.totalorder %s15, 7
    %p219 = scmp.ne.s32.totalorder %s214, %s216
    %p220 = scmp.eq.s32.totalorder %s15, 0
    %p221 = por %p219, %p220
    %p222 = scmp.ne.s32.totalorder %s214, %s216
    %p223 = scmp.eq.s32.totalorder %s20, 7
    %p224 = por %p222, %p223
    %p225 = scmp.ne.s32.totalorder %s216, %s217
    %p226 = scmp.eq.s32.totalorder %s20, 0
    %p227 = por %p225, %p226
    %p228 = scmp.ne.s32.totalorder %s216, %s217
    %p229 = scmp.eq.s32.totalorder %s21, 7
    %p230 = por %p228, %p229
    %p232 = scmp.ne.s32.totalorder %s217, %s231
    %p233 = scmp.eq.s32.totalorder %s21, 0
    %p234 = por %p232, %p233
    %s236 = sadd.s32 %s235, 1
    %p239 = scmp.eq.s32.totalorder %s15, 7
    %p240 = scmp.ne.s32.totalorder %s235, %s237
    %p241 = scmp.eq.s32.totalorder %s15, 0
    %p242 = por %p240, %p241
    %p243 = scmp.ne.s32.totalorder %s235, %s237
    %p244 = scmp.eq.s32.totalorder %s20, 7
    %p245 = por %p243, %p244
    %p246 = scmp.ne.s32.totalorder %s237, %s238
    %p247 = scmp.eq.s32.totalorder %s20, 0
    %p248 = por %p246, %p247
    %p249 = scmp.ne.s32.totalorder %s237, %s238
    %p250 = scmp.eq.s32.totalorder %s21, 7
    %p251 = por %p249, %p250
    %p253 = scmp.ne.s32.totalorder %s238, %s252
    %p254 = scmp.eq.s32.totalorder %s21, 0
    %p255 = por %p253, %p254
    %s256 = smul.u32 %s22, 2
    %s257 = sadd.s32 %s256, %s23
    %s258 = smul.u32 %s41, 2
    %s259 = sadd.s32 %s258, %s37
    %s260 = ssub.s32 %s257, %s259
    %p261 = scmp.eq.s32.totalorder %s260, 0
    %s263 = sadd.s32 %s262, 1
    %s264 = scalar_select %p261, %s262, %s263
    %p267 = pneg %p261
    %p268 = scmp.eq.s32.totalorder %s15, 7
    %p269 = por %p267, %p268
    %p270 = scmp.ne.s32.totalorder %s262, %s265
    %p271 = scmp.eq.s32.totalorder %s15, 0
    %p272 = por %p270, %p271
    %p273 = scmp.ne.s32.totalorder %s262, %s265
    %p274 = scmp.eq.s32.totalorder %s20, 7
    %p275 = por %p273, %p274
    %p276 = scmp.ne.s32.totalorder %s265, %s266
    %p277 = scmp.eq.s32.totalorder %s20, 0
    %p278 = por %p276, %p277
    %p279 = scmp.ne.s32.totalorder %s265, %s266
    %p280 = scmp.eq.s32.totalorder %s21, 7
    %p281 = por %p279, %p280
    %p283 = scmp.ne.s32.totalorder %s266, %s282
    %p284 = scmp.eq.s32.totalorder %s21, 0
    %p285 = por %p283, %p284
    %p286 = scmp.le.s32.totalorder 1, %s15
    %p287 = scmp.lt.s32.totalorder %s15, 9
    %p288 = pnand %p286, %p287
    %p289 = pneg %p288
    // Predicated region
    $region9: #{gptneo_model_forward.4} parent=5 // pred_check
      _
    $region10: #{gptneo_model_forward.4} parent=5 // pred_check_branch
      %291 = sbr.rel (%p288) target = $region12
    $region11: #{gptneo_model_forward.4} parent=5 // pred_region
      %s292 = ssub.s32 %s15, 1
      // Predicated region
      $region13: #{gptneo_model_forward.4} parent=11 // pred_check
        %p293 = pneg %p143
      $region14: #{gptneo_model_forward.4} parent=11 // pred_check_branch
        %295 = sbr.rel (%p293) target = $region16
      $region15: #{gptneo_model_forward.4} parent=11 // pred_region
        _
      $region16: #{gptneo_model_forward.4} parent=11 // pred_fallthru
        _
      // Predicated region
      $region17: #{gptneo_model_forward.4} parent=11 // pred_check
        %p296 = pneg %p164
      $region18: #{gptneo_model_forward.4} parent=11 // pred_check_branch
        %298 = sbr.rel (%p296) target = $region20
      $region19: #{gptneo_model_forward.4} parent=11 // pred_region
        _
      $region20: #{gptneo_model_forward.4} parent=11 // pred_fallthru
        _
      // Predicated region
      $region21: #{gptneo_model_forward.4} parent=11 // pred_check
        %p299 = pneg %p185
      $region22: #{gptneo_model_forward.4} parent=11 // pred_check_branch
        %301 = sbr.rel (%p299) target = $region24
      $region23: #{gptneo_model_forward.4} parent=11 // pred_region
        _
      $region24: #{gptneo_model_forward.4} parent=11 // pred_fallthru
        _
      // Predicated region
      $region25: #{gptneo_model_forward.4} parent=11 // pred_check
        %p302 = pneg %p206
      $region26: #{gptneo_model_forward.4} parent=11 // pred_check_branch
        %304 = sbr.rel (%p302) target = $region28
      $region27: #{gptneo_model_forward.4} parent=11 // pred_region
        _
      $region28: #{gptneo_model_forward.4} parent=11 // pred_fallthru
        _
      // Predicated region
      $region29: #{gptneo_model_forward.4} parent=11 // pred_check
        %p305 = pneg %p227
      $region30: #{gptneo_model_forward.4} parent=11 // pred_check_branch
        %307 = sbr.rel (%p305) target = $region32
      $region31: #{gptneo_model_forward.4} parent=11 // pred_region
        _
      $region32: #{gptneo_model_forward.4} parent=11 // pred_fallthru
        _
      // Predicated region
      $region33: #{gptneo_model_forward.4} parent=11 // pred_check
        %p308 = pneg %p248
      $region34: #{gptneo_model_forward.4} parent=11 // pred_check_branch
        %310 = sbr.rel (%p308) target = $region36
      $region35: #{gptneo_model_forward.4} parent=11 // pred_region
        _
      $region36: #{gptneo_model_forward.4} parent=11 // pred_fallthru
        _
    $region12: #{gptneo_model_forward.4} parent=5 // pred_fallthru
      _
    %p311 = scmp.lt.s32.totalorder %s15, 8
    // Predicated region
    $region37: #{gptneo_model_forward.4} parent=5 // pred_check
      %p312 = pneg %p311
    $region38: #{gptneo_model_forward.4} parent=5 // pred_check_branch
      %314 = sbr.rel (%p312) target = $region40
    $region39: #{gptneo_model_forward.4} parent=5 // pred_region
      // Predicated region
      $region41: #{gptneo_model_forward.4} parent=39 // pred_check
        %p315 = pneg %p58
      $region42: #{gptneo_model_forward.4} parent=39 // pred_check_branch
        %317 = sbr.rel (%p315) target = $region44
      $region43: #{gptneo_model_forward.4} parent=39 // pred_region
        %s318 = smul.u32 %s22, 2
        %s319 = sadd.s32 %s318, %s23
        %p320 = scmp.lt.s32.totalorder %s319, 3
        %s321 = scalar_select %p320, %s319, 3
        %s322 = smul.addr %s321, 4
        %s323 = scalar_lea.vmem %s0, %s322
        %s324 = smul.u32 %s22, 2
        %s325 = sadd.s32 %s324, %s23
      $region44: #{gptneo_model_forward.4} parent=39 // pred_fallthru
        _
      // Predicated region
      $region45: #{gptneo_model_forward.4} parent=39 // pred_check
        %p326 = pneg %p88
      $region46: #{gptneo_model_forward.4} parent=39 // pred_check_branch
        %328 = sbr.rel (%p326) target = $region48
      $region47: #{gptneo_model_forward.4} parent=39 // pred_region
        %s329 = smul.u32 %s22, 2
        %s330 = sadd.s32 %s329, %s24
        %p331 = scmp.lt.s32.totalorder %s330, 3
        %s332 = scalar_select %p331, %s330, 3
        %s333 = smul.addr %s332, 4
        %s334 = scalar_lea.vmem %s1, %s333
        %s335 = smul.u32 %s22, 2
        %s336 = sadd.s32 %s335, %s24
      $region48: #{gptneo_model_forward.4} parent=39 // pred_fallthru
        _
      // Predicated region
      $region49: #{gptneo_model_forward.4} parent=39 // pred_check
        %p337 = pneg %p116
      $region50: #{gptneo_model_forward.4} parent=39 // pred_check_branch
        %339 = sbr.rel (%p337) target = $region52
      $region51: #{gptneo_model_forward.4} parent=39 // pred_region
        %p340 = scmp.lt.s32.totalorder %s22, 1
        %s341 = scalar_select %p340, %s22, 1
        %p342 = scmp.lt.s32.totalorder %s24, 1
        %s343 = scalar_select %p342, %s24, 1
        %s344 = smul.addr %s341, 2
        %s345 = sadd.s32 %s343, %s344
        %s346 = scalar_lea.vmem %s2, %s345
      $region52: #{gptneo_model_forward.4} parent=39 // pred_fallthru
        _
    $region40: #{gptneo_model_forward.4} parent=5 // pred_fallthru
      _
    %p347 = scmp.le.s32.totalorder 1, %s15
    %p348 = scmp.lt.s32.totalorder %s15, 9
    %p349 = pnand %p347, %p348
    %p350 = pneg %p349
    // Predicated region
    $region53: #{gptneo_model_forward.4} parent=5 // pred_check
      _
    $region54: #{gptneo_model_forward.4} parent=5 // pred_check_branch
      %352 = sbr.rel (%p349) target = $region56
    $region55: #{gptneo_model_forward.4} parent=5 // pred_region
      %s353 = ssub.s32 %s15, 1
      %s354 = smul.u32 %s25, 2
      %s355 = sadd.s32 %s354, %s26
      %p356 = scmp.lt.s32.totalorder %s355, 3
      %s357 = scalar_select %p356, %s355, 3
      %s358 = smul.addr %s357, 4
      %s359 = scalar_lea.vmem %s0, %s358
      %p360 = pneg %p64
      %p361 = pneg %p61
      %s362 = smul.u32 %s25, 2
      %s363 = sadd.s32 %s362, %s27
      %p364 = scmp.lt.s32.totalorder %s363, 3
      %s365 = scalar_select %p364, %s363, 3
      %s366 = smul.addr %s365, 4
      %s367 = scalar_lea.vmem %s1, %s366
      %p368 = pneg %p94
      %p369 = pneg %p91
      %p370 = scmp.lt.s32.totalorder %s25, 1
      %s371 = scalar_select %p370, %s25, 1
      %p372 = scmp.lt.s32.totalorder %s27, 1
      %s373 = scalar_select %p372, %s27, 1
      %s374 = smul.addr %s371, 2
      %s375 = sadd.s32 %s373, %s374
      %s376 = scalar_lea.vmem %s2, %s375
      %p377 = pneg %p122
      %p378 = pneg %p119
      %p379 = pneg %p143
      %p380 = pneg %p140
      %p381 = pneg %p164
      %p382 = pneg %p161
      %p383 = pneg %p185
      %p384 = pneg %p182
      %p385 = pneg %p206
      %p386 = pneg %p203
      %p387 = pneg %p227
      %p388 = pneg %p224
      %p389 = pneg %p248
      %p390 = pneg %p245
      %p391 = pneg %p278
      %p392 = pneg %p275
      %s393 = smul.u32 %s25, 2
      %s394 = sadd.s32 %s393, %s26
      %p395 = scmp.lt.s32.totalorder %s394, 3
      %s396 = scalar_select %p395, %s394, 3
      %s397 = smul.addr %s396, 4
      %s398 = scalar_lea.vmem %s9, %s397
      %s399 = smul.u32 %s25, 2
      %s400 = sadd.s32 %s399, %s26
      %p401 = scmp.lt.s32.totalorder %s400, 3
      %s402 = scalar_select %p401, %s400, 3
      %s403 = smul.addr %s402, 4
      %s404 = scalar_lea.vmem %s0, %s403
      %s405 = smul.u32 %s25, 2
      %s406 = sadd.s32 %s405, %s26
      %s407 = smul.u32 %s25, 2
      %s408 = sadd.s32 %s407, %s27
      %p409 = scmp.lt.s32.totalorder %s408, 3
      %s410 = scalar_select %p409, %s408, 3
      %s411 = smul.addr %s410, 4
      %s412 = scalar_lea.vmem %s1, %s411
      %s413 = smul.u32 %s25, 2
      %s414 = sadd.s32 %s413, %s27
      %p415 = scmp.lt.s32.totalorder %s25, 1
      %s416 = scalar_select %p415, %s25, 1
      %p417 = scmp.lt.s32.totalorder %s27, 1
      %s418 = scalar_select %p417, %s27, 1
      %s419 = smul.addr %s416, 2
      %s420 = sadd.s32 %s418, %s419
      %s421 = scalar_lea.vmem %s2, %s420
      %s422 = smul.u32 %s25, 2
      %s423 = sadd.s32 %s422, %s26
      %p424 = scmp.lt.s32.totalorder %s423, 3
      %s425 = scalar_select %p424, %s423, 3
      %s426 = smul.addr %s425, 4
      %s427 = scalar_lea.vmem %s9, %s426
      %s428 = smul.u32 %s25, 2
      %s429 = sadd.s32 %s428, %s26
      %s431 = smul.u32 %s26, 8
      %s432 = smul.u32 %s27, 8
      %p433 = scmp.eq.s32.totalorder %s27, 0
      // Predicated region
      $region57: #{gptneo_model_forward.4} parent=55 // pred_check
        %p434 = pneg %p433
      $region58: #{gptneo_model_forward.4} parent=55 // pred_check_branch
        %436 = sbr.rel (%p434) target = $region60
      $region59: #{gptneo_model_forward.4} parent=55 // pred_region
        %v437 = vld [vmem:[%s404] sm:$0xf]
        %v438 = vunpack.c.l.bf16 %v437
        %v439 = vld [vmem:[%s3] sm:$0x1]
        %v440 = vld [vmem:[%s4] sm:$0x1]
        %vm441 = vcmask 261120
        %v442 = vsel %vm441, %v438, 0.0
        %443 = vadd.xlane.f32.xlu0 %v442
        %v444 = vpop.xlane.xlu0 %443
        %v445 = vrcp.pop 32.0
        %v446 = vmul.f32 %v444, %v445
        %v447 = vsub.f32 %v438, %v446
        %v448 = vmul.f32 %v447, %v447
        %v449 = vsel %vm441, %v448, 0.0
        %450 = vadd.xlane.f32.xlu0 %v449
        %v451 = vpop.xlane.xlu0 %450
        %v452 = vmul.f32 %v451, %v445
        %v453 = vadd.f32 %v452, 1e-05
        %v454 = vrsqrt.pop %v453
        %v455 = vmul.f32 %v447, %v454
        %v457 = vlaneseq
        %v458 = vshrl.u32 %v457, 7
        %v459 = vsub.s32 0, %v458
        %v460 = vrot.slane %v439, %v459
        %v462 = vmul.f32 %v455, %v460
        %v464 = vlaneseq
        %v465 = vshrl.u32 %v464, 7
        %v466 = vsub.s32 0, %v465
        %v467 = vrot.slane %v440, %v466
        %v469 = vadd.f32 %v462, %v467
        %v470 = vpack.c.bf16 %v469, %v469
        %v471 = vld [vmem:[%s5] sm:$0xf]
        %v472 = vld [vmem:[%s5 + $0x4] sm:$0xf]
        %v473 = vld [vmem:[%s5 + $0x8] sm:$0xf]
        %v474 = vld [vmem:[%s5 + $0xc] sm:$0xf]
        %v479 = vunpack.c.l.b16 %v471
        %v480 = vunpack.c.l.b16 %v472
        %v481 = vunpack.c.l.b16 %v473
        %v482 = vunpack.c.l.b16 %v474
        %v483 = vpack.c.b16 %v480, %v479
        %v484 = vpack.c.b16 %v482, %v481
        %v488 = vsel %vm441, %v470, 0
        %490 = vmatprep.subr.bf16.mxu0 0
        %491 = vmatpush1.bf16.msra.mxu0 0
        %492 = vmatprep.subr.bf16.mxu0 0
        %493 = vmatpush1.bf16.msra.mxu0 0
        %494 = vmatprep.subr.bf16.mxu0 0
        %495 = vmatpush1.bf16.msra.mxu0 0
        %496 = vmatprep.subr.bf16.mxu0 0
        %497 = vmatpush1.bf16.msra.mxu0 0
        %498 = vmatprep.subr.bf16.mxu0 0
        %499 = vmatpush1.bf16.msra.mxu0 0
        %500 = vmatprep.subr.bf16.mxu0 0
        %501 = vmatpush1.bf16.msra.mxu0 0
        %502 = vmatprep.subr.bf16.mxu0 0
        %503 = vmatpush1.bf16.msra.mxu0 %v484
        %504 = vmatprep.subr.bf16.mxu0 0
        %505 = vmatpush1.bf16.msra.mxu0 %v483
        %506 = vmatprep.subr.bf16.mxu0 0
        %507 = vmatpush2.bf16.msra.mxu0 0
        %508 = vmatprep.subr.bf16.mxu0 0
        %509 = vmatpush2.bf16.msra.mxu0 0
        %510 = vmatprep.subr.bf16.mxu0 0
        %511 = vmatpush2.bf16.msra.mxu0 0
        %512 = vmatprep.subr.bf16.mxu0 0
        %513 = vmatpush2.bf16.msra.mxu0 0
        %514 = vmatprep.subr.bf16.mxu0 0
        %515 = vmatpush2.bf16.msra.mxu0 0
        %516 = vmatprep.subr.bf16.mxu0 0
        %517 = vmatpush2.bf16.msra.mxu0 0
        %518 = vmatprep.subr.bf16.mxu0 0
        %519 = vmatpush2.bf16.msra.mxu0 0
        %520 = vmatprep.subr.bf16.mxu0 0
        %521 = vmatpush2.bf16.msra.mxu0 0
        %522 = vmatprep.mubr.bf16.mxu0 0
        %523 = vmatmul.mubr.bf16.gmra.mxu0 %v488
        %v524 = vpop.f32.mrf.mxu0
        %v525 = vadd.f32 0.0, %v524
        %v526 = vpop.f32.mrf.mxu0
        %v527 = vpop.f32.mrf.mxu0
        %v528 = vpop.f32.mrf.mxu0
        %529 = vdwg.mxu0
        %531 = vrot.lane.b32.xlu0 %v525, 120
        %v532 = vpop.permute.xlu0 %531
        %534 = vrot.lane.b32.xlu0 %v525, 112
        %v535 = vpop.permute.xlu0 %534
        %537 = vrot.lane.b32.xlu0 %v525, 104
        %v538 = vpop.permute.xlu0 %537
        %v540 = vcombine.low %v525, %v535
        %v541 = vcombine.high %v525, %v535
        %v543 = vunpack.c.l.s4 1983009808
        %v544 = vunpack.c.0.s8 %v543
        %v545 = vlaneseq
        %v546 = vshrl.u32 %v545, 7
        %v547 = vsub.s32 %v544, %v546
        %v548 = vrot.slane %v540, %v547
        %v550 = vunpack.c.l.s4 1983009808
        %v551 = vunpack.c.0.s8 %v550
        %v552 = vlaneseq
        %v553 = vshrl.u32 %v552, 7
        %v554 = vsub.s32 %v551, %v553
        %v555 = vrot.slane %v541, %v554
        %v556 = vcombine.low %v532, %v538
        %v557 = vcombine.high %v532, %v538
        %v559 = vunpack.c.l.s4 1983009808
        %v560 = vunpack.c.0.s8 %v559
        %v561 = vlaneseq
        %v562 = vshrl.u32 %v561, 7
        %v563 = vsub.s32 %v560, %v562
        %v564 = vrot.slane %v556, %v563
        %v566 = vunpack.c.l.s4 1983009808
        %v567 = vunpack.c.0.s8 %v566
        %v568 = vlaneseq
        %v569 = vshrl.u32 %v568, 7
        %v570 = vsub.s32 %v567, %v569
        %v571 = vrot.slane %v557, %v570
        %v572 = vcombine.low %v548, %v564
        %v573 = vcombine.high %v548, %v564
        %v575 = vunpack.c.l.s4 1934713408
        %v576 = vunpack.c.0.s8 %v575
        %v577 = vlaneseq
        %v578 = vshrl.u32 %v577, 7
        %v579 = vsub.s32 %v576, %v578
        %v580 = vrot.slane %v572, %v579
        %v582 = vunpack.c.l.s4 1934713408
        %v583 = vunpack.c.0.s8 %v582
        %v584 = vlaneseq
        %v585 = vshrl.u32 %v584, 7
        %v586 = vsub.s32 %v583, %v585
        %v587 = vrot.slane %v573, %v586
        %v588 = vcombine.low %v555, %v571
        %v589 = vcombine.high %v555, %v571
        %v591 = vunpack.c.l.s4 1934713408
        %v592 = vunpack.c.0.s8 %v591
        %v593 = vlaneseq
        %v594 = vshrl.u32 %v593, 7
        %v595 = vsub.s32 %v592, %v594
        %v596 = vrot.slane %v588, %v595
        %v598 = vunpack.c.l.s4 1934713408
        %v599 = vunpack.c.0.s8 %v598
        %v600 = vlaneseq
        %v601 = vshrl.u32 %v600, 7
        %v602 = vsub.s32 %v599, %v601
        %v603 = vrot.slane %v589, %v602
        %v604 = vcombine.high %v580, 0.0
        %v605 = vcombine.high %v587, 0.0
        %v606 = vcombine.high %v596, 0.0
        %v607 = vcombine.high %v603, 0.0
        %v608 = vcombine.low %v580, %v587
        %v610 = vunpack.c.l.s4 1983009808
        %v611 = vunpack.c.0.s8 %v610
        %v612 = vlaneseq
        %v613 = vshrl.u32 %v612, 7
        %v614 = vsub.s32 %v611, %v613
        %v615 = vrot.slane %v608, %v614
        %v616 = vcombine.low %v604, %v605
        %v618 = vunpack.c.l.s4 1983009808
        %v619 = vunpack.c.0.s8 %v618
        %v620 = vlaneseq
        %v621 = vshrl.u32 %v620, 7
        %v622 = vsub.s32 %v619, %v621
        %v623 = vrot.slane %v616, %v622
        %v624 = vcombine.low %v596, %v603
        %v626 = vunpack.c.l.s4 1983009808
        %v627 = vunpack.c.0.s8 %v626
        %v628 = vlaneseq
        %v629 = vshrl.u32 %v628, 7
        %v630 = vsub.s32 %v627, %v629
        %v631 = vrot.slane %v624, %v630
        %v632 = vcombine.low %v606, %v607
        %v634 = vunpack.c.l.s4 1983009808
        %v635 = vunpack.c.0.s8 %v634
        %v636 = vlaneseq
        %v637 = vshrl.u32 %v636, 7
        %v638 = vsub.s32 %v635, %v637
        %v639 = vrot.slane %v632, %v638
        %v640 = vcombine.low %v615, %v623
        %v641 = vcombine.high %v615, %v623
        %v643 = vunpack.c.l.s4 1934713408
        %v644 = vunpack.c.0.s8 %v643
        %v645 = vlaneseq
        %v646 = vshrl.u32 %v645, 7
        %v647 = vsub.s32 %v644, %v646
        %v648 = vrot.slane %v640, %v647
        %v650 = vunpack.c.l.s4 1934713408
        %v651 = vunpack.c.0.s8 %v650
        %v652 = vlaneseq
        %v653 = vshrl.u32 %v652, 7
        %v654 = vsub.s32 %v651, %v653
        %v655 = vrot.slane %v641, %v654
        %v656 = vcombine.low %v631, %v639
        %v657 = vcombine.high %v631, %v639
        %v659 = vunpack.c.l.s4 1934713408
        %v660 = vunpack.c.0.s8 %v659
        %v661 = vlaneseq
        %v662 = vshrl.u32 %v661, 7
        %v663 = vsub.s32 %v660, %v662
        %v664 = vrot.slane %v656, %v663
        %v666 = vunpack.c.l.s4 1934713408
        %v667 = vunpack.c.0.s8 %v666
        %v668 = vlaneseq
        %v669 = vshrl.u32 %v668, 7
        %v670 = vsub.s32 %v667, %v669
        %v671 = vrot.slane %v657, %v670
        %v672 = vcombine.low %v648, %v664
        %v673 = vcombine.high %v648, %v664
        %v674 = vcombine.low %v655, %v671
        %v675 = vcombine.high %v655, %v671
        %v676 = vpack.c.bf16 %v672, %v672
        %v677 = vpack.c.bf16 %v673, %v673
        %v678 = vpack.c.bf16 %v674, %v674
        %v679 = vpack.c.bf16 %v675, %v675
        %vm680 = vcmask 60416
        %681 = vst.msk [vmem:[#allocation2] sm:$0xf] %vm680, %v676
        %682 = vst.msk [vmem:[#allocation2 + $0x4] sm:$0xf] %vm680, %v677
        %683 = vst.msk [vmem:[#allocation2 + $0x8] sm:$0xf] %vm680, %v678
        %684 = vst.msk [vmem:[#allocation2 + $0xc] sm:$0xf] %vm680, %v679
        %685 = vst.msk [vmem:[#allocation3] sm:$0xf] %vm680, -inf
        %686 = vst.msk [vmem:[#allocation4] sm:$0xf] %vm680, 0.0
        %vm687 = vcmask 64512
        %688 = vst.msk [vmem:[#allocation5] sm:$0xff] %vm687, 0.0
        %689 = vst.msk [vmem:[#allocation5 + $0x8] sm:$0xff] %vm687, 0.0
        %690 = vst.msk [vmem:[#allocation5 + $0x10] sm:$0xff] %vm687, 0.0
        %691 = vst.msk [vmem:[#allocation5 + $0x18] sm:$0xff] %vm687, 0.0
      $region60: #{gptneo_model_forward.4} parent=55 // pred_fallthru
        _
      %s692 = sadd.s32 %s431, 7
      %p693 = scmp.le.s32.totalorder %s432, %s692
      // Predicated region
      $region61: #{gptneo_model_forward.4} parent=55 // pred_check
        %p694 = pneg %p693
      $region62: #{gptneo_model_forward.4} parent=55 // pred_check_branch
        %696 = sbr.rel (%p694) target = $region64
      $region63: #{gptneo_model_forward.4} parent=55 // pred_region
        %v697 = vld [vmem:[%s412] sm:$0xf]
        %v698 = vunpack.c.l.bf16 %v697
        %v699 = vld [vmem:[%s3] sm:$0x1]
        %v700 = vld [vmem:[%s4] sm:$0x1]
        %vm701 = vcmask 261120
        %v702 = vsel %vm701, %v698, 0.0
        %703 = vadd.xlane.f32.xlu0 %v702
        %v704 = vpop.xlane.xlu0 %703
        %v705 = vrcp.pop 32.0
        %v706 = vmul.f32 %v704, %v705
        %v707 = vsub.f32 %v698, %v706
        %v708 = vmul.f32 %v707, %v707
        %v709 = vsel %vm701, %v708, 0.0
        %710 = vadd.xlane.f32.xlu0 %v709
        %v711 = vpop.xlane.xlu0 %710
        %v712 = vmul.f32 %v711, %v705
        %v713 = vadd.f32 %v712, 1e-05
        %v714 = vrsqrt.pop %v713
        %v715 = vmul.f32 %v707, %v714
        %v717 = vlaneseq
        %v718 = vshrl.u32 %v717, 7
        %v719 = vsub.s32 0, %v718
        %v720 = vrot.slane %v699, %v719
        %v722 = vmul.f32 %v715, %v720
        %v724 = vlaneseq
        %v725 = vshrl.u32 %v724, 7
        %v726 = vsub.s32 0, %v725
        %v727 = vrot.slane %v700, %v726
        %v729 = vadd.f32 %v722, %v727
        %v730 = vpack.c.bf16 %v729, %v729
        %v731 = vld [vmem:[%s6] sm:$0xf]
        %v732 = vld [vmem:[%s6 + $0x4] sm:$0xf]
        %v733 = vld [vmem:[%s6 + $0x8] sm:$0xf]
        %v734 = vld [vmem:[%s6 + $0xc] sm:$0xf]
        %v739 = vunpack.c.l.b16 %v731
        %v740 = vunpack.c.l.b16 %v732
        %v741 = vunpack.c.l.b16 %v733
        %v742 = vunpack.c.l.b16 %v734
        %v743 = vpack.c.b16 %v740, %v739
        %v744 = vpack.c.b16 %v742, %v741
        %v748 = vsel %vm701, %v730, 0
        %750 = vmatprep.subr.bf16.mxu0 0
        %751 = vmatpush1.bf16.msra.mxu0 0
        %752 = vmatprep.subr.bf16.mxu0 0
        %753 = vmatpush1.bf16.msra.mxu0 0
        %754 = vmatprep.subr.bf16.mxu0 0
        %755 = vmatpush1.bf16.msra.mxu0 0
        %756 = vmatprep.subr.bf16.mxu0 0
        %757 = vmatpush1.bf16.msra.mxu0 0
        %758 = vmatprep.subr.bf16.mxu0 0
        %759 = vmatpush1.bf16.msra.mxu0 0
        %760 = vmatprep.subr.bf16.mxu0 0
        %761 = vmatpush1.bf16.msra.mxu0 0
        %762 = vmatprep.subr.bf16.mxu0 0
        %763 = vmatpush1.bf16.msra.mxu0 %v744
        %764 = vmatprep.subr.bf16.mxu0 0
        %765 = vmatpush1.bf16.msra.mxu0 %v743
        %766 = vmatprep.subr.bf16.mxu0 0
        %767 = vmatpush2.bf16.msra.mxu0 0
        %768 = vmatprep.subr.bf16.mxu0 0
        %769 = vmatpush2.bf16.msra.mxu0 0
        %770 = vmatprep.subr.bf16.mxu0 0
        %771 = vmatpush2.bf16.msra.mxu0 0
        %772 = vmatprep.subr.bf16.mxu0 0
        %773 = vmatpush2.bf16.msra.mxu0 0
        %774 = vmatprep.subr.bf16.mxu0 0
        %775 = vmatpush2.bf16.msra.mxu0 0
        %776 = vmatprep.subr.bf16.mxu0 0
        %777 = vmatpush2.bf16.msra.mxu0 0
        %778 = vmatprep.subr.bf16.mxu0 0
        %779 = vmatpush2.bf16.msra.mxu0 0
        %780 = vmatprep.subr.bf16.mxu0 0
        %781 = vmatpush2.bf16.msra.mxu0 0
        %782 = vmatprep.mubr.bf16.mxu0 0
        %783 = vmatmul.mubr.bf16.gmra.mxu0 %v748
        %v784 = vpop.f32.mrf.mxu0
        %v785 = vadd.f32 0.0, %v784
        %v786 = vpop.f32.mrf.mxu0
        %v787 = vpop.f32.mrf.mxu0
        %v788 = vpop.f32.mrf.mxu0
        %789 = vdwg.mxu0
        %791 = vrot.lane.b32.xlu0 %v785, 120
        %v792 = vpop.permute.xlu0 %791
        %794 = vrot.lane.b32.xlu0 %v785, 112
        %v795 = vpop.permute.xlu0 %794
        %797 = vrot.lane.b32.xlu0 %v785, 104
        %v798 = vpop.permute.xlu0 %797
        %v800 = vcombine.low %v785, %v795
        %v801 = vcombine.high %v785, %v795
        %v803 = vunpack.c.l.s4 1983009808
        %v804 = vunpack.c.0.s8 %v803
        %v805 = vlaneseq
        %v806 = vshrl.u32 %v805, 7
        %v807 = vsub.s32 %v804, %v806
        %v808 = vrot.slane %v800, %v807
        %v810 = vunpack.c.l.s4 1983009808
        %v811 = vunpack.c.0.s8 %v810
        %v812 = vlaneseq
        %v813 = vshrl.u32 %v812, 7
        %v814 = vsub.s32 %v811, %v813
        %v815 = vrot.slane %v801, %v814
        %v816 = vcombine.low %v792, %v798
        %v817 = vcombine.high %v792, %v798
        %v819 = vunpack.c.l.s4 1983009808
        %v820 = vunpack.c.0.s8 %v819
        %v821 = vlaneseq
        %v822 = vshrl.u32 %v821, 7
        %v823 = vsub.s32 %v820, %v822
        %v824 = vrot.slane %v816, %v823
        %v826 = vunpack.c.l.s4 1983009808
        %v827 = vunpack.c.0.s8 %v826
        %v828 = vlaneseq
        %v829 = vshrl.u32 %v828, 7
        %v830 = vsub.s32 %v827, %v829
        %v831 = vrot.slane %v817, %v830
        %v832 = vcombine.low %v808, %v824
        %v833 = vcombine.high %v808, %v824
        %v835 = vunpack.c.l.s4 1934713408
        %v836 = vunpack.c.0.s8 %v835
        %v837 = vlaneseq
        %v838 = vshrl.u32 %v837, 7
        %v839 = vsub.s32 %v836, %v838
        %v840 = vrot.slane %v832, %v839
        %v842 = vunpack.c.l.s4 1934713408
        %v843 = vunpack.c.0.s8 %v842
        %v844 = vlaneseq
        %v845 = vshrl.u32 %v844, 7
        %v846 = vsub.s32 %v843, %v845
        %v847 = vrot.slane %v833, %v846
        %v848 = vcombine.low %v815, %v831
        %v849 = vcombine.high %v815, %v831
        %v851 = vunpack.c.l.s4 1934713408
        %v852 = vunpack.c.0.s8 %v851
        %v853 = vlaneseq
        %v854 = vshrl.u32 %v853, 7
        %v855 = vsub.s32 %v852, %v854
        %v856 = vrot.slane %v848, %v855
        %v858 = vunpack.c.l.s4 1934713408
        %v859 = vunpack.c.0.s8 %v858
        %v860 = vlaneseq
        %v861 = vshrl.u32 %v860, 7
        %v862 = vsub.s32 %v859, %v861
        %v863 = vrot.slane %v849, %v862
        %v864 = vcombine.high %v840, 0.0
        %v865 = vcombine.high %v847, 0.0
        %v866 = vcombine.high %v856, 0.0
        %v867 = vcombine.high %v863, 0.0
        %v868 = vcombine.low %v840, %v847
        %v870 = vunpack.c.l.s4 1983009808
        %v871 = vunpack.c.0.s8 %v870
        %v872 = vlaneseq
        %v873 = vshrl.u32 %v872, 7
        %v874 = vsub.s32 %v871, %v873
        %v875 = vrot.slane %v868, %v874
        %v876 = vcombine.low %v864, %v865
        %v878 = vunpack.c.l.s4 1983009808
        %v879 = vunpack.c.0.s8 %v878
        %v880 = vlaneseq
        %v881 = vshrl.u32 %v880, 7
        %v882 = vsub.s32 %v879, %v881
        %v883 = vrot.slane %v876, %v882
        %v884 = vcombine.low %v856, %v863
        %v886 = vunpack.c.l.s4 1983009808
        %v887 = vunpack.c.0.s8 %v886
        %v888 = vlaneseq
        %v889 = vshrl.u32 %v888, 7
        %v890 = vsub.s32 %v887, %v889
        %v891 = vrot.slane %v884, %v890
        %v892 = vcombine.low %v866, %v867
        %v894 = vunpack.c.l.s4 1983009808
        %v895 = vunpack.c.0.s8 %v894
        %v896 = vlaneseq
        %v897 = vshrl.u32 %v896, 7
        %v898 = vsub.s32 %v895, %v897
        %v899 = vrot.slane %v892, %v898
        %v900 = vcombine.low %v875, %v883
        %v901 = vcombine.high %v875, %v883
        %v903 = vunpack.c.l.s4 1934713408
        %v904 = vunpack.c.0.s8 %v903
        %v905 = vlaneseq
        %v906 = vshrl.u32 %v905, 7
        %v907 = vsub.s32 %v904, %v906
        %v908 = vrot.slane %v900, %v907
        %v910 = vunpack.c.l.s4 1934713408
        %v911 = vunpack.c.0.s8 %v910
        %v912 = vlaneseq
        %v913 = vshrl.u32 %v912, 7
        %v914 = vsub.s32 %v911, %v913
        %v915 = vrot.slane %v901, %v914
        %v916 = vcombine.low %v891, %v899
        %v917 = vcombine.high %v891, %v899
        %v919 = vunpack.c.l.s4 1934713408
        %v920 = vunpack.c.0.s8 %v919
        %v921 = vlaneseq
        %v922 = vshrl.u32 %v921, 7
        %v923 = vsub.s32 %v920, %v922
        %v924 = vrot.slane %v916, %v923
        %v926 = vunpack.c.l.s4 1934713408
        %v927 = vunpack.c.0.s8 %v926
        %v928 = vlaneseq
        %v929 = vshrl.u32 %v928, 7
        %v930 = vsub.s32 %v927, %v929
        %v931 = vrot.slane %v917, %v930
        %v932 = vcombine.low %v908, %v924
        %v933 = vcombine.high %v908, %v924
        %v934 = vcombine.low %v915, %v931
        %v935 = vcombine.high %v915, %v931
        %v936 = vpack.c.bf16 %v932, %v932
        %v937 = vpack.c.bf16 %v933, %v933
        %v938 = vpack.c.bf16 %v934, %v934
        %v939 = vpack.c.bf16 %v935, %v935
        %940 = vrot.lane.b32.xlu0 %v785, 96
        %v941 = vpop.permute.xlu0 %940
        %942 = vrot.lane.b32.xlu0 %v792, 96
        %v943 = vpop.permute.xlu0 %942
        %944 = vrot.lane.b32.xlu0 %v795, 96
        %v945 = vpop.permute.xlu0 %944
        %946 = vrot.lane.b32.xlu0 %v798, 96
        %v947 = vpop.permute.xlu0 %946
        %v952 = vcombine.low %v941, %v945
        %v953 = vcombine.high %v941, %v945
        %v955 = vunpack.c.l.s4 1983009808
        %v956 = vunpack.c.0.s8 %v955
        %v957 = vlaneseq
        %v958 = vshrl.u32 %v957, 7
        %v959 = vsub.s32 %v956, %v958
        %v960 = vrot.slane %v952, %v959
        %v962 = vunpack.c.l.s4 1983009808
        %v963 = vunpack.c.0.s8 %v962
        %v964 = vlaneseq
        %v965 = vshrl.u32 %v964, 7
        %v966 = vsub.s32 %v963, %v965
        %v967 = vrot.slane %v953, %v966
        %v968 = vcombine.low %v943, %v947
        %v969 = vcombine.high %v943, %v947
        %v971 = vunpack.c.l.s4 1983009808
        %v972 = vunpack.c.0.s8 %v971
        %v973 = vlaneseq
        %v974 = vshrl.u32 %v973, 7
        %v975 = vsub.s32 %v972, %v974
        %v976 = vrot.slane %v968, %v975
        %v978 = vunpack.c.l.s4 1983009808
        %v979 = vunpack.c.0.s8 %v978
        %v980 = vlaneseq
        %v981 = vshrl.u32 %v980, 7
        %v982 = vsub.s32 %v979, %v981
        %v983 = vrot.slane %v969, %v982
        %v984 = vcombine.low %v960, %v976
        %v985 = vcombine.high %v960, %v976
        %v987 = vunpack.c.l.s4 1934713408
        %v988 = vunpack.c.0.s8 %v987
        %v989 = vlaneseq
        %v990 = vshrl.u32 %v989, 7
        %v991 = vsub.s32 %v988, %v990
        %v992 = vrot.slane %v984, %v991
        %v994 = vunpack.c.l.s4 1934713408
        %v995 = vunpack.c.0.s8 %v994
        %v996 = vlaneseq
        %v997 = vshrl.u32 %v996, 7
        %v998 = vsub.s32 %v995, %v997
        %v999 = vrot.slane %v985, %v998
        %v1000 = vcombine.low %v967, %v983
        %v1001 = vcombine.high %v967, %v983
        %v1003 = vunpack.c.l.s4 1934713408
        %v1004 = vunpack.c.0.s8 %v1003
        %v1005 = vlaneseq
        %v1006 = vshrl.u32 %v1005, 7
        %v1007 = vsub.s32 %v1004, %v1006
        %v1008 = vrot.slane %v1000, %v1007
        %v1010 = vunpack.c.l.s4 1934713408
        %v1011 = vunpack.c.0.s8 %v1010
        %v1012 = vlaneseq
        %v1013 = vshrl.u32 %v1012, 7
        %v1014 = vsub.s32 %v1011, %v1013
        %v1015 = vrot.slane %v1001, %v1014
        %v1016 = vcombine.high %v992, 0.0
        %v1017 = vcombine.high %v999, 0.0
        %v1018 = vcombine.high %v1008, 0.0
        %v1019 = vcombine.high %v1015, 0.0
        %v1020 = vcombine.low %v992, %v999
        %v1022 = vunpack.c.l.s4 1983009808
        %v1023 = vunpack.c.0.s8 %v1022
        %v1024 = vlaneseq
        %v1025 = vshrl.u32 %v1024, 7
        %v1026 = vsub.s32 %v1023, %v1025
        %v1027 = vrot.slane %v1020, %v1026
        %v1028 = vcombine.low %v1016, %v1017
        %v1030 = vunpack.c.l.s4 1983009808
        %v1031 = vunpack.c.0.s8 %v1030
        %v1032 = vlaneseq
        %v1033 = vshrl.u32 %v1032, 7
        %v1034 = vsub.s32 %v1031, %v1033
        %v1035 = vrot.slane %v1028, %v1034
        %v1036 = vcombine.low %v1008, %v1015
        %v1038 = vunpack.c.l.s4 1983009808
        %v1039 = vunpack.c.0.s8 %v1038
        %v1040 = vlaneseq
        %v1041 = vshrl.u32 %v1040, 7
        %v1042 = vsub.s32 %v1039, %v1041
        %v1043 = vrot.slane %v1036, %v1042
        %v1044 = vcombine.low %v1018, %v1019
        %v1046 = vunpack.c.l.s4 1983009808
        %v1047 = vunpack.c.0.s8 %v1046
        %v1048 = vlaneseq
        %v1049 = vshrl.u32 %v1048, 7
        %v1050 = vsub.s32 %v1047, %v1049
        %v1051 = vrot.slane %v1044, %v1050
        %v1052 = vcombine.low %v1027, %v1035
        %v1053 = vcombine.high %v1027, %v1035
        %v1055 = vunpack.c.l.s4 1934713408
        %v1056 = vunpack.c.0.s8 %v1055
        %v1057 = vlaneseq
        %v1058 = vshrl.u32 %v1057, 7
        %v1059 = vsub.s32 %v1056, %v1058
        %v1060 = vrot.slane %v1052, %v1059
        %v1062 = vunpack.c.l.s4 1934713408
        %v1063 = vunpack.c.0.s8 %v1062
        %v1064 = vlaneseq
        %v1065 = vshrl.u32 %v1064, 7
        %v1066 = vsub.s32 %v1063, %v1065
        %v1067 = vrot.slane %v1053, %v1066
        %v1068 = vcombine.low %v1043, %v1051
        %v1069 = vcombine.high %v1043, %v1051
        %v1071 = vunpack.c.l.s4 1934713408
        %v1072 = vunpack.c.0.s8 %v1071
        %v1073 = vlaneseq
        %v1074 = vshrl.u32 %v1073, 7
        %v1075 = vsub.s32 %v1072, %v1074
        %v1076 = vrot.slane %v1068, %v1075
        %v1078 = vunpack.c.l.s4 1934713408
        %v1079 = vunpack.c.0.s8 %v1078
        %v1080 = vlaneseq
        %v1081 = vshrl.u32 %v1080, 7
        %v1082 = vsub.s32 %v1079, %v1081
        %v1083 = vrot.slane %v1069, %v1082
        %v1084 = vcombine.low %v1060, %v1076
        %v1085 = vcombine.high %v1060, %v1076
        %v1086 = vcombine.low %v1067, %v1083
        %v1087 = vcombine.high %v1067, %v1083
        %v1088 = vpack.c.bf16 %v1084, %v1084
        %v1089 = vpack.c.bf16 %v1085, %v1085
        %v1090 = vpack.c.bf16 %v1086, %v1086
        %v1091 = vpack.c.bf16 %v1087, %v1087
        %v1092 = vlaneseq
        %v1093 = vshrl.u32 %v1092, 7
        %v1094 = vstv %s431
        %v1095 = vadd.s32 %v1094, %v1093
        %v1096 = vlaneseq
        %v1097 = vand.u32 %v1096, 127
        %v1098 = vstv %s432
        %v1099 = vadd.s32 %v1098, %v1097
        %v1100 = vld [vmem:[%s421] sm:$0x1]
        %vm1101 = vcmp.gt.s32.totalorder %v1100, 0
        %vm1102 = vcmp.ge.s32.totalorder %v1095, %v1099
        %v1103 = vsel %vm1101, 1, 0
        %v1104 = vlaneseq
        %v1105 = vshrl.u32 %v1104, 7
        %v1106 = vsub.s32 0, %v1105
        %v1107 = vrot.slane %v1103, %v1106
        %vm1108 = vcmp.eq.s32.totalorder %v1107, 1
        %vm1109 = vmand %vm1102, %vm1108
        %v1110 = vsel %vm1109, 0.0, -1e+09
        %v1111 = vld [vmem:[#allocation2] sm:$0xf]
        %v1112 = vld [vmem:[#allocation2 + $0x4] sm:$0xf]
        %v1113 = vld [vmem:[#allocation2 + $0x8] sm:$0xf]
        %v1114 = vld [vmem:[#allocation2 + $0xc] sm:$0xf]
        %vm1115 = vcmask 64512
        %v1117 = vsel %vm1115, %v1111, 0
        %v1120 = vsel %vm1115, %v936, 0
        %1122 = vmatprep.subr.bf16.mxu0 0
        %1123 = vmatpush1.bf16.xpose.msra.mxu0 0
        %1124 = vmatprep.subr.bf16.mxu0 0
        %1125 = vmatpush1.bf16.xpose.msra.mxu0 0
        %1126 = vmatprep.subr.bf16.mxu0 0
        %1127 = vmatpush1.bf16.xpose.msra.mxu0 0
        %1128 = vmatprep.subr.bf16.mxu0 0
        %1129 = vmatpush1.bf16.xpose.msra.mxu0 0
        %1130 = vmatprep.subr.bf16.mxu0 0
        %1131 = vmatpush1.bf16.xpose.msra.mxu0 0
        %1132 = vmatprep.subr.bf16.mxu0 0
        %1133 = vmatpush1.bf16.xpose.msra.mxu0 0
        %1134 = vmatprep.subr.bf16.mxu0 0
        %1135 = vmatpush1.bf16.xpose.msra.mxu0 0
        %1136 = vmatprep.subr.bf16.mxu0 0
        %1137 = vmatpush1.bf16.xpose.msra.mxu0 %v1120
        %1138 = vmatprep.subr.bf16.mxu0 0
        %1139 = vmatpush2.bf16.xpose.msra.mxu0 0
        %1140 = vmatprep.subr.bf16.mxu0 0
        %1141 = vmatpush2.bf16.xpose.msra.mxu0 0
        %1142 = vmatprep.subr.bf16.mxu0 0
        %1143 = vmatpush2.bf16.xpose.msra.mxu0 0
        %1144 = vmatprep.subr.bf16.mxu0 0
        %1145 = vmatpush2.bf16.xpose.msra.mxu0 0
        %1146 = vmatprep.subr.bf16.mxu0 0
        %1147 = vmatpush2.bf16.xpose.msra.mxu0 0
        %1148 = vmatprep.subr.bf16.mxu0 0
        %1149 = vmatpush2.bf16.xpose.msra.mxu0 0
        %1150 = vmatprep.subr.bf16.mxu0 0
        %1151 = vmatpush2.bf16.xpose.msra.mxu0 0
        %1152 = vmatprep.subr.bf16.mxu0 0
        %1153 = vmatpush2.bf16.xpose.msra.mxu0 0
        %1154 = vmatprep.mubr.bf16.mxu0 0
        %1155 = vmatmul.mubr.bf16.gmra.mxu0 %v1117
        %v1156 = vpop.f32.mrf.mxu0
        %v1157 = vadd.f32 %v1110, %v1156
        %v1158 = vpop.f32.mrf.mxu0
        %v1159 = vpop.f32.mrf.mxu0
        %v1160 = vpop.f32.mrf.mxu0
        %1161 = vdwg.mxu0
        %v1163 = vsel %vm1115, %v1112, 0
        %v1166 = vsel %vm1115, %v937, 0
        %1168 = vmatprep.subr.bf16.mxu0 0
        %1169 = vmatpush1.bf16.xpose.msra.mxu0 0
        %1170 = vmatprep.subr.bf16.mxu0 0
        %1171 = vmatpush1.bf16.xpose.msra.mxu0 0
        %1172 = vmatprep.subr.bf16.mxu0 0
        %1173 = vmatpush1.bf16.xpose.msra.mxu0 0
        %1174 = vmatprep.subr.bf16.mxu0 0
        %1175 = vmatpush1.bf16.xpose.msra.mxu0 0
        %1176 = vmatprep.subr.bf16.mxu0 0
        %1177 = vmatpush1.bf16.xpose.msra.mxu0 0
        %1178 = vmatprep.subr.bf16.mxu0 0
        %1179 = vmatpush1.bf16.xpose.msra.mxu0 0
        %1180 = vmatprep.subr.bf16.mxu0 0
        %1181 = vmatpush1.bf16.xpose.msra.mxu0 0
        %1182 = vmatprep.subr.bf16.mxu0 0
        %1183 = vmatpush1.bf16.xpose.msra.mxu0 %v1166
        %1184 = vmatprep.subr.bf16.mxu0 0
        %1185 = vmatpush2.bf16.xpose.msra.mxu0 0
        %1186 = vmatprep.subr.bf16.mxu0 0
        %1187 = vmatpush2.bf16.xpose.msra.mxu0 0
        %1188 = vmatprep.subr.bf16.mxu0 0
        %1189 = vmatpush2.bf16.xpose.msra.mxu0 0
        %1190 = vmatprep.subr.bf16.mxu0 0
        %1191 = vmatpush2.bf16.xpose.msra.mxu0 0
        %1192 = vmatprep.subr.bf16.mxu0 0
        %1193 = vmatpush2.bf16.xpose.msra.mxu0 0
        %1194 = vmatprep.subr.bf16.mxu0 0
        %1195 = vmatpush2.bf16.xpose.msra.mxu0 0
        %1196 = vmatprep.subr.bf16.mxu0 0
        %1197 = vmatpush2.bf16.xpose.msra.mxu0 0
        %1198 = vmatprep.subr.bf16.mxu0 0
        %1199 = vmatpush2.bf16.xpose.msra.mxu0 0
        %1200 = vmatprep.mubr.bf16.mxu0 0
        %1201 = vmatmul.mubr.bf16.gmra.mxu0 %v1163
        %v1202 = vpop.f32.mrf.mxu0
        %v1203 = vadd.f32 %v1110, %v1202
        %v1204 = vpop.f32.mrf.mxu0
        %v1205 = vpop.f32.mrf.mxu0
        %v1206 = vpop.f32.mrf.mxu0
        %1207 = vdwg.mxu0
        %v1209 = vsel %vm1115, %v1113, 0
        %v1212 = vsel %vm1115, %v938, 0
        %1214 = vmatprep.subr.bf16.mxu0 0
        %1215 = vmatpush1.bf16.xpose.msra.mxu0 0
        %1216 = vmatprep.subr.bf16.mxu0 0
        %1217 = vmatpush1.bf16.xpose.msra.mxu0 0
        %1218 = vmatprep.subr.bf16.mxu0 0
        %1219 = vmatpush1.bf16.xpose.msra.mxu0 0
        %1220 = vmatprep.subr.bf16.mxu0 0
        %1221 = vmatpush1.bf16.xpose.msra.mxu0 0
        %1222 = vmatprep.subr.bf16.mxu0 0
        %1223 = vmatpush1.bf16.xpose.msra.mxu0 0
        %1224 = vmatprep.subr.bf16.mxu0 0
        %1225 = vmatpush1.bf16.xpose.msra.mxu0 0
        %1226 = vmatprep.subr.bf16.mxu0 0
        %1227 = vmatpush1.bf16.xpose.msra.mxu0 0
        %1228 = vmatprep.subr.bf16.mxu0 0
        %1229 = vmatpush1.bf16.xpose.msra.mxu0 %v1212
        %1230 = vmatprep.subr.bf16.mxu0 0
        %1231 = vmatpush2.bf16.xpose.msra.mxu0 0
        %1232 = vmatprep.subr.bf16.mxu0 0
        %1233 = vmatpush2.bf16.xpose.msra.mxu0 0
        %1234 = vmatprep.subr.bf16.mxu0 0
        %1235 = vmatpush2.bf16.xpose.msra.mxu0 0
        %1236 = vmatprep.subr.bf16.mxu0 0
        %1237 = vmatpush2.bf16.xpose.msra.mxu0 0
        %1238 = vmatprep.subr.bf16.mxu0 0
        %1239 = vmatpush2.bf16.xpose.msra.mxu0 0
        %1240 = vmatprep.subr.bf16.mxu0 0
        %1241 = vmatpush2.bf16.xpose.msra.mxu0 0
        %1242 = vmatprep.subr.bf16.mxu0 0
        %1243 = vmatpush2.bf16.xpose.msra.mxu0 0
        %1244 = vmatprep.subr.bf16.mxu0 0
        %1245 = vmatpush2.bf16.xpose.msra.mxu0 0
        %1246 = vmatprep.mubr.bf16.mxu0 0
        %1247 = vmatmul.mubr.bf16.gmra.mxu0 %v1209
        %v1248 = vpop.f32.mrf.mxu0
        %v1249 = vadd.f32 %v1110, %v1248
        %v1250 = vpop.f32.mrf.mxu0
        %v1251 = vpop.f32.mrf.mxu0
        %v1252 = vpop.f32.mrf.mxu0
        %1253 = vdwg.mxu0
        %v1255 = vsel %vm1115, %v1114, 0
        %v1258 = vsel %vm1115, %v939, 0
        %1260 = vmatprep.subr.bf16.mxu0 0
        %1261 = vmatpush1.bf16.xpose.msra.mxu0 0
        %1262 = vmatprep.subr.bf16.mxu0 0
        %1263 = vmatpush1.bf16.xpose.msra.mxu0 0
        %1264 = vmatprep.subr.bf16.mxu0 0
        %1265 = vmatpush1.bf16.xpose.msra.mxu0 0
        %1266 = vmatprep.subr.bf16.mxu0 0
        %1267 = vmatpush1.bf16.xpose.msra.mxu0 0
        %1268 = vmatprep.subr.bf16.mxu0 0
        %1269 = vmatpush1.bf16.xpose.msra.mxu0 0
        %1270 = vmatprep.subr.bf16.mxu0 0
        %1271 = vmatpush1.bf16.xpose.msra.mxu0 0
        %1272 = vmatprep.subr.bf16.mxu0 0
        %1273 = vmatpush1.bf16.xpose.msra.mxu0 0
        %1274 = vmatprep.subr.bf16.mxu0 0
        %1275 = vmatpush1.bf16.xpose.msra.mxu0 %v1258
        %1276 = vmatprep.subr.bf16.mxu0 0
        %1277 = vmatpush2.bf16.xpose.msra.mxu0 0
        %1278 = vmatprep.subr.bf16.mxu0 0
        %1279 = vmatpush2.bf16.xpose.msra.mxu0 0
        %1280 = vmatprep.subr.bf16.mxu0 0
        %1281 = vmatpush2.bf16.xpose.msra.mxu0 0
        %1282 = vmatprep.subr.bf16.mxu0 0
        %1283 = vmatpush2.bf16.xpose.msra.mxu0 0
        %1284 = vmatprep.subr.bf16.mxu0 0
        %1285 = vmatpush2.bf16.xpose.msra.mxu0 0
        %1286 = vmatprep.subr.bf16.mxu0 0
        %1287 = vmatpush2.bf16.xpose.msra.mxu0 0
        %1288 = vmatprep.subr.bf16.mxu0 0
        %1289 = vmatpush2.bf16.xpose.msra.mxu0 0
        %1290 = vmatprep.subr.bf16.mxu0 0
        %1291 = vmatpush2.bf16.xpose.msra.mxu0 0
        %1292 = vmatprep.mubr.bf16.mxu0 0
        %1293 = vmatmul.mubr.bf16.gmra.mxu0 %v1255
        %v1294 = vpop.f32.mrf.mxu0
        %v1295 = vadd.f32 %v1110, %v1294
        %v1296 = vpop.f32.mrf.mxu0
        %v1297 = vpop.f32.mrf.mxu0
        %v1298 = vpop.f32.mrf.mxu0
        %1299 = vdwg.mxu0
        %v1300 = vld [vmem:[#allocation3] sm:$0xf]
        %v1301 = vsel %vm1115, %v1157, -inf
        %1302 = vmax.xlane.f32.xlu0 %v1301
        %v1303 = vpop.xlane.xlu0 %1302
        %v1304 = vsel %vm1115, %v1203, -inf
        %1305 = vmax.xlane.f32.xlu0 %v1304
        %v1306 = vpop.xlane.xlu0 %1305
        %v1307 = vsel %vm1115, %v1249, -inf
        %1308 = vmax.xlane.f32.xlu0 %v1307
        %v1309 = vpop.xlane.xlu0 %1308
        %v1310 = vsel %vm1115, %v1295, -inf
        %1311 = vmax.xlane.f32.xlu0 %v1310
        %v1312 = vpop.xlane.xlu0 %1311
        %v1317 = vlaneseq
        %v1318 = vshrl.u32 %v1317, 7
        %v1319 = vsub.s32 %v1097, %v1318
        %v1320 = vrot.slane %v1303, %v1319
        %v1321 = vlaneseq
        %v1322 = vshrl.u32 %v1321, 7
        %v1323 = vsub.s32 %v1097, %v1322
        %v1324 = vrot.slane %v1306, %v1323
        %v1325 = vlaneseq
        %v1326 = vshrl.u32 %v1325, 7
        %v1327 = vsub.s32 %v1097, %v1326
        %v1328 = vrot.slane %v1309, %v1327
        %v1329 = vlaneseq
        %v1330 = vshrl.u32 %v1329, 7
        %v1331 = vsub.s32 %v1097, %v1330
        %v1332 = vrot.slane %v1312, %v1331
        %vm1333 = vcmask 1041409
        %v1334 = vsel %vm1333, %v1324, %v1320
        %vm1335 = vcmask 1042434
        %v1336 = vsel %vm1335, %v1328, %v1334
        %vm1337 = vcmask 1043459
        %v1338 = vsel %vm1337, %v1332, %v1336
        %v1340 = vmax.f32 %v1300, %v1338
        %v1341 = vsub.f32 %v1300, %v1340
        %v1342 = vmul.f32 %v1341, 1.442695
        %v1343 = vpow.pop %v1342
        %v1344 = vlaneseq
        %v1345 = vshrl.u32 %v1344, 7
        %v1346 = vsub.s32 0, %v1345
        %v1347 = vrot.slane %v1340, %v1346
        %1349 = vbcast.lane.b32.xlu0 %v1347, 256
        %v1350 = vpop.permute.xlu0 %1349
        %v1351 = vlaneseq
        %v1352 = vshrl.u32 %v1351, 7
        %v1353 = vsub.s32 1, %v1352
        %v1354 = vrot.slane %v1340, %v1353
        %1356 = vbcast.lane.b32.xlu0 %v1354, 256
        %v1357 = vpop.permute.xlu0 %1356
        %v1358 = vlaneseq
        %v1359 = vshrl.u32 %v1358, 7
        %v1360 = vsub.s32 2, %v1359
        %v1361 = vrot.slane %v1340, %v1360
        %1363 = vbcast.lane.b32.xlu0 %v1361, 256
        %v1364 = vpop.permute.xlu0 %1363
        %v1365 = vlaneseq
        %v1366 = vshrl.u32 %v1365, 7
        %v1367 = vsub.s32 3, %v1366
        %v1368 = vrot.slane %v1340, %v1367
        %1370 = vbcast.lane.b32.xlu0 %v1368, 256
        %v1371 = vpop.permute.xlu0 %1370
        %v1372 = vsub.f32 %v1157, %v1350
        %v1373 = vsub.f32 %v1203, %v1357
        %v1374 = vsub.f32 %v1249, %v1364
        %v1375 = vsub.f32 %v1295, %v1371
        %v1376 = vmul.f32 %v1372, 1.442695
        %v1377 = vpow.pop %v1376
        %v1378 = vmul.f32 %v1373, 1.442695
        %v1379 = vpow.pop %v1378
        %v1380 = vmul.f32 %v1374, 1.442695
        %v1381 = vpow.pop %v1380
        %v1382 = vmul.f32 %v1375, 1.442695
        %v1383 = vpow.pop %v1382
        %v1384 = vld [vmem:[#allocation4] sm:$0xf]
        %v1385 = vmul.f32 %v1343, %v1384
        %v1386 = vsel %vm1115, %v1377, 0.0
        %1387 = vadd.xlane.f32.xlu0 %v1386
        %v1388 = vpop.xlane.xlu0 %1387
        %v1389 = vsel %vm1115, %v1379, 0.0
        %1390 = vadd.xlane.f32.xlu0 %v1389
        %v1391 = vpop.xlane.xlu0 %1390
        %v1392 = vsel %vm1115, %v1381, 0.0
        %1393 = vadd.xlane.f32.xlu0 %v1392
        %v1394 = vpop.xlane.xlu0 %1393
        %v1395 = vsel %vm1115, %v1383, 0.0
        %1396 = vadd.xlane.f32.xlu0 %v1395
        %v1397 = vpop.xlane.xlu0 %1396
        %v1402 = vlaneseq
        %v1403 = vshrl.u32 %v1402, 7
        %v1404 = vsub.s32 %v1097, %v1403
        %v1405 = vrot.slane %v1388, %v1404
        %v1406 = vlaneseq
        %v1407 = vshrl.u32 %v1406, 7
        %v1408 = vsub.s32 %v1097, %v1407
        %v1409 = vrot.slane %v1391, %v1408
        %v1410 = vlaneseq
        %v1411 = vshrl.u32 %v1410, 7
        %v1412 = vsub.s32 %v1097, %v1411
        %v1413 = vrot.slane %v1394, %v1412
        %v1414 = vlaneseq
        %v1415 = vshrl.u32 %v1414, 7
        %v1416 = vsub.s32 %v1097, %v1415
        %v1417 = vrot.slane %v1397, %v1416
        %v1418 = vsel %vm1333, %v1409, %v1405
        %v1419 = vsel %vm1335, %v1413, %v1418
        %v1420 = vsel %vm1337, %v1417, %v1419
        %v1422 = vadd.f32 %v1385, %v1420
        %vm1423 = vcmask 60416
        %1424 = vst.msk [vmem:[#allocation4] sm:$0xf] %vm1423, %v1422
        %v1425 = vlaneseq
        %v1426 = vshrl.u32 %v1425, 7
        %v1427 = vsub.s32 0, %v1426
        %v1428 = vrot.slane %v1343, %v1427
        %1430 = vbcast.lane.b32.xlu0 %v1428, 256
        %v1431 = vpop.permute.xlu0 %1430
        %v1432 = vlaneseq
        %v1433 = vshrl.u32 %v1432, 7
        %v1434 = vsub.s32 1, %v1433
        %v1435 = vrot.slane %v1343, %v1434
        %1437 = vbcast.lane.b32.xlu0 %v1435, 256
        %v1438 = vpop.permute.xlu0 %1437
        %v1439 = vlaneseq
        %v1440 = vshrl.u32 %v1439, 7
        %v1441 = vsub.s32 2, %v1440
        %v1442 = vrot.slane %v1343, %v1441
        %1444 = vbcast.lane.b32.xlu0 %v1442, 256
        %v1445 = vpop.permute.xlu0 %1444
        %v1446 = vlaneseq
        %v1447 = vshrl.u32 %v1446, 7
        %v1448 = vsub.s32 3, %v1447
        %v1449 = vrot.slane %v1343, %v1448
        %1451 = vbcast.lane.b32.xlu0 %v1449, 256
        %v1452 = vpop.permute.xlu0 %1451
        %v1453 = vld [vmem:[#allocation5] sm:$0xff]
        %v1454 = vld [vmem:[#allocation5 + $0x8] sm:$0xff]
        %v1455 = vld [vmem:[#allocation5 + $0x10] sm:$0xff]
        %v1456 = vld [vmem:[#allocation5 + $0x18] sm:$0xff]
        %v1457 = vmul.f32 %v1431, %v1453
        %v1458 = vmul.f32 %v1438, %v1454
        %v1459 = vmul.f32 %v1445, %v1455
        %v1460 = vmul.f32 %v1452, %v1456
        %v1461 = vpack.c.bf16 %v1377, %v1377
        %v1462 = vpack.c.bf16 %v1379, %v1379
        %v1463 = vpack.c.bf16 %v1381, %v1381
        %v1464 = vpack.c.bf16 %v1383, %v1383
        %v1466 = vsel %vm1115, %v1461, 0
        %vm1468 = vcmask 1043456
        %v1470 = vsel %vm1468, %v1088, 0
        %1472 = vmatprep.subr.bf16.mxu0 0
        %1473 = vmatpush1.bf16.msra.mxu0 0
        %1474 = vmatprep.subr.bf16.mxu0 0
        %1475 = vmatpush1.bf16.msra.mxu0 0
        %1476 = vmatprep.subr.bf16.mxu0 0
        %1477 = vmatpush1.bf16.msra.mxu0 0
        %1478 = vmatprep.subr.bf16.mxu0 0
        %1479 = vmatpush1.bf16.msra.mxu0 0
        %1480 = vmatprep.subr.bf16.mxu0 0
        %1481 = vmatpush1.bf16.msra.mxu0 0
        %1482 = vmatprep.subr.bf16.mxu0 0
        %1483 = vmatpush1.bf16.msra.mxu0 0
        %1484 = vmatprep.subr.bf16.mxu0 0
        %1485 = vmatpush1.bf16.msra.mxu0 0
        %1486 = vmatprep.subr.bf16.mxu0 0
        %1487 = vmatpush1.bf16.msra.mxu0 %v1470
        %1488 = vmatprep.subr.bf16.mxu0 0
        %1489 = vmatpush2.bf16.msra.mxu0 0
        %1490 = vmatprep.subr.bf16.mxu0 0
        %1491 = vmatpush2.bf16.msra.mxu0 0
        %1492 = vmatprep.subr.bf16.mxu0 0
        %1493 = vmatpush2.bf16.msra.mxu0 0
        %1494 = vmatprep.subr.bf16.mxu0 0
        %1495 = vmatpush2.bf16.msra.mxu0 0
        %1496 = vmatprep.subr.bf16.mxu0 0
        %1497 = vmatpush2.bf16.msra.mxu0 0
        %1498 = vmatprep.subr.bf16.mxu0 0
        %1499 = vmatpush2.bf16.msra.mxu0 0
        %1500 = vmatprep.subr.bf16.mxu0 0
        %1501 = vmatpush2.bf16.msra.mxu0 0
        %1502 = vmatprep.subr.bf16.mxu0 0
        %1503 = vmatpush2.bf16.msra.mxu0 0
        %1504 = vmatprep.mubr.bf16.mxu0 0
        %1505 = vmatmul.mubr.bf16.gmra.mxu0 %v1466
        %v1506 = vpop.f32.mrf.mxu0
        %v1507 = vadd.f32 0.0, %v1506
        %v1508 = vpop.f32.mrf.mxu0
        %v1509 = vpop.f32.mrf.mxu0
        %v1510 = vpop.f32.mrf.mxu0
        %1511 = vdwg.mxu0
        %v1513 = vsel %vm1115, %v1462, 0
        %v1516 = vsel %vm1468, %v1089, 0
        %1518 = vmatprep.subr.bf16.mxu0 0
        %1519 = vmatpush1.bf16.msra.mxu0 0
        %1520 = vmatprep.subr.bf16.mxu0 0
        %1521 = vmatpush1.bf16.msra.mxu0 0
        %1522 = vmatprep.subr.bf16.mxu0 0
        %1523 = vmatpush1.bf16.msra.mxu0 0
        %1524 = vmatprep.subr.bf16.mxu0 0
        %1525 = vmatpush1.bf16.msra.mxu0 0
        %1526 = vmatprep.subr.bf16.mxu0 0
        %1527 = vmatpush1.bf16.msra.mxu0 0
        %1528 = vmatprep.subr.bf16.mxu0 0
        %1529 = vmatpush1.bf16.msra.mxu0 0
        %1530 = vmatprep.subr.bf16.mxu0 0
        %1531 = vmatpush1.bf16.msra.mxu0 0
        %1532 = vmatprep.subr.bf16.mxu0 0
        %1533 = vmatpush1.bf16.msra.mxu0 %v1516
        %1534 = vmatprep.subr.bf16.mxu0 0
        %1535 = vmatpush2.bf16.msra.mxu0 0
        %1536 = vmatprep.subr.bf16.mxu0 0
        %1537 = vmatpush2.bf16.msra.mxu0 0
        %1538 = vmatprep.subr.bf16.mxu0 0
        %1539 = vmatpush2.bf16.msra.mxu0 0
        %1540 = vmatprep.subr.bf16.mxu0 0
        %1541 = vmatpush2.bf16.msra.mxu0 0
        %1542 = vmatprep.subr.bf16.mxu0 0
        %1543 = vmatpush2.bf16.msra.mxu0 0
        %1544 = vmatprep.subr.bf16.mxu0 0
        %1545 = vmatpush2.bf16.msra.mxu0 0
        %1546 = vmatprep.subr.bf16.mxu0 0
        %1547 = vmatpush2.bf16.msra.mxu0 0
        %1548 = vmatprep.subr.bf16.mxu0 0
        %1549 = vmatpush2.bf16.msra.mxu0 0
        %1550 = vmatprep.mubr.bf16.mxu0 0
        %1551 = vmatmul.mubr.bf16.gmra.mxu0 %v1513
        %v1552 = vpop.f32.mrf.mxu0
        %v1553 = vadd.f32 0.0, %v1552
        %v1554 = vpop.f32.mrf.mxu0
        %v1555 = vpop.f32.mrf.mxu0
        %v1556 = vpop.f32.mrf.mxu0
        %1557 = vdwg.mxu0
        %v1559 = vsel %vm1115, %v1463, 0
        %v1562 = vsel %vm1468, %v1090, 0
        %1564 = vmatprep.subr.bf16.mxu0 0
        %1565 = vmatpush1.bf16.msra.mxu0 0
        %1566 = vmatprep.subr.bf16.mxu0 0
        %1567 = vmatpush1.bf16.msra.mxu0 0
        %1568 = vmatprep.subr.bf16.mxu0 0
        %1569 = vmatpush1.bf16.msra.mxu0 0
        %1570 = vmatprep.subr.bf16.mxu0 0
        %1571 = vmatpush1.bf16.msra.mxu0 0
        %1572 = vmatprep.subr.bf16.mxu0 0
        %1573 = vmatpush1.bf16.msra.mxu0 0
        %1574 = vmatprep.subr.bf16.mxu0 0
        %1575 = vmatpush1.bf16.msra.mxu0 0
        %1576 = vmatprep.subr.bf16.mxu0 0
        %1577 = vmatpush1.bf16.msra.mxu0 0
        %1578 = vmatprep.subr.bf16.mxu0 0
        %1579 = vmatpush1.bf16.msra.mxu0 %v1562
        %1580 = vmatprep.subr.bf16.mxu0 0
        %1581 = vmatpush2.bf16.msra.mxu0 0
        %1582 = vmatprep.subr.bf16.mxu0 0
        %1583 = vmatpush2.bf16.msra.mxu0 0
        %1584 = vmatprep.subr.bf16.mxu0 0
        %1585 = vmatpush2.bf16.msra.mxu0 0
        %1586 = vmatprep.subr.bf16.mxu0 0
        %1587 = vmatpush2.bf16.msra.mxu0 0
        %1588 = vmatprep.subr.bf16.mxu0 0
        %1589 = vmatpush2.bf16.msra.mxu0 0
        %1590 = vmatprep.subr.bf16.mxu0 0
        %1591 = vmatpush2.bf16.msra.mxu0 0
        %1592 = vmatprep.subr.bf16.mxu0 0
        %1593 = vmatpush2.bf16.msra.mxu0 0
        %1594 = vmatprep.subr.bf16.mxu0 0
        %1595 = vmatpush2.bf16.msra.mxu0 0
        %1596 = vmatprep.mubr.bf16.mxu0 0
        %1597 = vmatmul.mubr.bf16.gmra.mxu0 %v1559
        %v1598 = vpop.f32.mrf.mxu0
        %v1599 = vadd.f32 0.0, %v1598
        %v1600 = vpop.f32.mrf.mxu0
        %v1601 = vpop.f32.mrf.mxu0
        %v1602 = vpop.f32.mrf.mxu0
        %1603 = vdwg.mxu0
        %v1605 = vsel %vm1115, %v1464, 0
        %v1608 = vsel %vm1468, %v1091, 0
        %1610 = vmatprep.subr.bf16.mxu0 0
        %1611 = vmatpush1.bf16.msra.mxu0 0
        %1612 = vmatprep.subr.bf16.mxu0 0
        %1613 = vmatpush1.bf16.msra.mxu0 0
        %1614 = vmatprep.subr.bf16.mxu0 0
        %1615 = vmatpush1.bf16.msra.mxu0 0
        %1616 = vmatprep.subr.bf16.mxu0 0
        %1617 = vmatpush1.bf16.msra.mxu0 0
        %1618 = vmatprep.subr.bf16.mxu0 0
        %1619 = vmatpush1.bf16.msra.mxu0 0
        %1620 = vmatprep.subr.bf16.mxu0 0
        %1621 = vmatpush1.bf16.msra.mxu0 0
        %1622 = vmatprep.subr.bf16.mxu0 0
        %1623 = vmatpush1.bf16.msra.mxu0 0
        %1624 = vmatprep.subr.bf16.mxu0 0
        %1625 = vmatpush1.bf16.msra.mxu0 %v1608
        %1626 = vmatprep.subr.bf16.mxu0 0
        %1627 = vmatpush2.bf16.msra.mxu0 0
        %1628 = vmatprep.subr.bf16.mxu0 0
        %1629 = vmatpush2.bf16.msra.mxu0 0
        %1630 = vmatprep.subr.bf16.mxu0 0
        %1631 = vmatpush2.bf16.msra.mxu0 0
        %1632 = vmatprep.subr.bf16.mxu0 0
        %1633 = vmatpush2.bf16.msra.mxu0 0
        %1634 = vmatprep.subr.bf16.mxu0 0
        %1635 = vmatpush2.bf16.msra.mxu0 0
        %1636 = vmatprep.subr.bf16.mxu0 0
        %1637 = vmatpush2.bf16.msra.mxu0 0
        %1638 = vmatprep.subr.bf16.mxu0 0
        %1639 = vmatpush2.bf16.msra.mxu0 0
        %1640 = vmatprep.subr.bf16.mxu0 0
        %1641 = vmatpush2.bf16.msra.mxu0 0
        %1642 = vmatprep.mubr.bf16.mxu0 0
        %1643 = vmatmul.mubr.bf16.gmra.mxu0 %v1605
        %v1644 = vpop.f32.mrf.mxu0
        %v1645 = vadd.f32 0.0, %v1644
        %v1646 = vpop.f32.mrf.mxu0
        %v1647 = vpop.f32.mrf.mxu0
        %v1648 = vpop.f32.mrf.mxu0
        %1649 = vdwg.mxu0
        %v1650 = vadd.f32 %v1457, %v1507
        %v1651 = vadd.f32 %v1458, %v1553
        %v1652 = vadd.f32 %v1459, %v1599
        %v1653 = vadd.f32 %v1460, %v1645
        %1654 = vst.msk [vmem:[#allocation5] sm:$0xff] %vm1115, %v1650
        %1655 = vst.msk [vmem:[#allocation5 + $0x8] sm:$0xff] %vm1115, %v1651
        %1656 = vst.msk [vmem:[#allocation5 + $0x10] sm:$0xff] %vm1115, %v1652
        %1657 = vst.msk [vmem:[#allocation5 + $0x18] sm:$0xff] %vm1115, %v1653
        %1658 = vst.msk [vmem:[#allocation3] sm:$0xf] %vm1423, %v1340
      $region64: #{gptneo_model_forward.4} parent=55 // pred_fallthru
        _
      %p1659 = scmp.eq.s32.totalorder %s27, 1
      // Predicated region
      $region65: #{gptneo_model_forward.4} parent=55 // pred_check
        %p1660 = pneg %p1659
      $region66: #{gptneo_model_forward.4} parent=55 // pred_check_branch
        %1662 = sbr.rel (%p1660) target = $region68
      $region67: #{gptneo_model_forward.4} parent=55 // pred_region
        %v1663 = vld [vmem:[#allocation4] sm:$0xf]
        %v1664 = vrcp.pop %v1663
        %v1665 = vld [vmem:[#allocation5] sm:$0xff]
        %v1666 = vld [vmem:[#allocation5 + $0x8] sm:$0xff]
        %v1667 = vld [vmem:[#allocation5 + $0x10] sm:$0xff]
        %v1668 = vld [vmem:[#allocation5 + $0x18] sm:$0xff]
        %v1669 = vlaneseq
        %v1670 = vshrl.u32 %v1669, 7
        %v1671 = vsub.s32 0, %v1670
        %v1672 = vrot.slane %v1664, %v1671
        %1674 = vbcast.lane.b32.xlu0 %v1672, 256
        %v1675 = vpop.permute.xlu0 %1674
        %v1676 = vlaneseq
        %v1677 = vshrl.u32 %v1676, 7
        %v1678 = vsub.s32 1, %v1677
        %v1679 = vrot.slane %v1664, %v1678
        %1681 = vbcast.lane.b32.xlu0 %v1679, 256
        %v1682 = vpop.permute.xlu0 %1681
        %v1683 = vlaneseq
        %v1684 = vshrl.u32 %v1683, 7
        %v1685 = vsub.s32 2, %v1684
        %v1686 = vrot.slane %v1664, %v1685
        %1688 = vbcast.lane.b32.xlu0 %v1686, 256
        %v1689 = vpop.permute.xlu0 %1688
        %v1690 = vlaneseq
        %v1691 = vshrl.u32 %v1690, 7
        %v1692 = vsub.s32 3, %v1691
        %v1693 = vrot.slane %v1664, %v1692
        %1695 = vbcast.lane.b32.xlu0 %v1693, 256
        %v1696 = vpop.permute.xlu0 %1695
        %v1697 = vmul.f32 %v1665, %v1675
        %v1698 = vmul.f32 %v1666, %v1682
        %v1699 = vmul.f32 %v1667, %v1689
        %v1700 = vmul.f32 %v1668, %v1696
        %v1701 = vcombine.low %v1697, %v1699
        %v1702 = vcombine.high %v1697, %v1699
        %v1704 = vunpack.c.l.s4 1983009808
        %v1705 = vunpack.c.0.s8 %v1704
        %v1706 = vlaneseq
        %v1707 = vshrl.u32 %v1706, 7
        %v1708 = vsub.s32 %v1705, %v1707
        %v1709 = vrot.slane %v1701, %v1708
        %v1711 = vunpack.c.l.s4 1983009808
        %v1712 = vunpack.c.0.s8 %v1711
        %v1713 = vlaneseq
        %v1714 = vshrl.u32 %v1713, 7
        %v1715 = vsub.s32 %v1712, %v1714
        %v1716 = vrot.slane %v1702, %v1715
        %v1717 = vcombine.low %v1698, %v1700
        %v1718 = vcombine.high %v1698, %v1700
        %v1720 = vunpack.c.l.s4 1983009808
        %v1721 = vunpack.c.0.s8 %v1720
        %v1722 = vlaneseq
        %v1723 = vshrl.u32 %v1722, 7
        %v1724 = vsub.s32 %v1721, %v1723
        %v1725 = vrot.slane %v1717, %v1724
        %v1727 = vunpack.c.l.s4 1983009808
        %v1728 = vunpack.c.0.s8 %v1727
        %v1729 = vlaneseq
        %v1730 = vshrl.u32 %v1729, 7
        %v1731 = vsub.s32 %v1728, %v1730
        %v1732 = vrot.slane %v1718, %v1731
        %v1733 = vcombine.low %v1709, %v1725
        %v1734 = vcombine.high %v1709, %v1725
        %v1736 = vunpack.c.l.s4 1934713408
        %v1737 = vunpack.c.0.s8 %v1736
        %v1738 = vlaneseq
        %v1739 = vshrl.u32 %v1738, 7
        %v1740 = vsub.s32 %v1737, %v1739
        %v1741 = vrot.slane %v1733, %v1740
        %v1743 = vunpack.c.l.s4 1934713408
        %v1744 = vunpack.c.0.s8 %v1743
        %v1745 = vlaneseq
        %v1746 = vshrl.u32 %v1745, 7
        %v1747 = vsub.s32 %v1744, %v1746
        %v1748 = vrot.slane %v1734, %v1747
        %v1749 = vcombine.low %v1716, %v1732
        %v1750 = vcombine.high %v1716, %v1732
        %v1752 = vunpack.c.l.s4 1934713408
        %v1753 = vunpack.c.0.s8 %v1752
        %v1754 = vlaneseq
        %v1755 = vshrl.u32 %v1754, 7
        %v1756 = vsub.s32 %v1753, %v1755
        %v1757 = vrot.slane %v1749, %v1756
        %v1759 = vunpack.c.l.s4 1934713408
        %v1760 = vunpack.c.0.s8 %v1759
        %v1761 = vlaneseq
        %v1762 = vshrl.u32 %v1761, 7
        %v1763 = vsub.s32 %v1760, %v1762
        %v1764 = vrot.slane %v1750, %v1763
        %v1765 = vcombine.high %v1741, 0.0
        %v1766 = vcombine.high %v1748, 0.0
        %v1767 = vcombine.high %v1757, 0.0
        %v1768 = vcombine.high %v1764, 0.0
        %v1769 = vcombine.low %v1741, %v1748
        %v1771 = vunpack.c.l.s4 1983009808
        %v1772 = vunpack.c.0.s8 %v1771
        %v1773 = vlaneseq
        %v1774 = vshrl.u32 %v1773, 7
        %v1775 = vsub.s32 %v1772, %v1774
        %v1776 = vrot.slane %v1769, %v1775
        %v1777 = vcombine.low %v1765, %v1766
        %v1779 = vunpack.c.l.s4 1983009808
        %v1780 = vunpack.c.0.s8 %v1779
        %v1781 = vlaneseq
        %v1782 = vshrl.u32 %v1781, 7
        %v1783 = vsub.s32 %v1780, %v1782
        %v1784 = vrot.slane %v1777, %v1783
        %v1785 = vcombine.low %v1757, %v1764
        %v1787 = vunpack.c.l.s4 1983009808
        %v1788 = vunpack.c.0.s8 %v1787
        %v1789 = vlaneseq
        %v1790 = vshrl.u32 %v1789, 7
        %v1791 = vsub.s32 %v1788, %v1790
        %v1792 = vrot.slane %v1785, %v1791
        %v1793 = vcombine.low %v1767, %v1768
        %v1795 = vunpack.c.l.s4 1983009808
        %v1796 = vunpack.c.0.s8 %v1795
        %v1797 = vlaneseq
        %v1798 = vshrl.u32 %v1797, 7
        %v1799 = vsub.s32 %v1796, %v1798
        %v1800 = vrot.slane %v1793, %v1799
        %v1801 = vcombine.low %v1776, %v1784
        %v1802 = vcombine.high %v1776, %v1784
        %v1804 = vunpack.c.l.s4 1934713408
        %v1805 = vunpack.c.0.s8 %v1804
        %v1806 = vlaneseq
        %v1807 = vshrl.u32 %v1806, 7
        %v1808 = vsub.s32 %v1805, %v1807
        %v1809 = vrot.slane %v1801, %v1808
        %v1811 = vunpack.c.l.s4 1934713408
        %v1812 = vunpack.c.0.s8 %v1811
        %v1813 = vlaneseq
        %v1814 = vshrl.u32 %v1813, 7
        %v1815 = vsub.s32 %v1812, %v1814
        %v1816 = vrot.slane %v1802, %v1815
        %v1817 = vcombine.low %v1792, %v1800
        %v1818 = vcombine.high %v1792, %v1800
        %v1820 = vunpack.c.l.s4 1934713408
        %v1821 = vunpack.c.0.s8 %v1820
        %v1822 = vlaneseq
        %v1823 = vshrl.u32 %v1822, 7
        %v1824 = vsub.s32 %v1821, %v1823
        %v1825 = vrot.slane %v1817, %v1824
        %v1827 = vunpack.c.l.s4 1934713408
        %v1828 = vunpack.c.0.s8 %v1827
        %v1829 = vlaneseq
        %v1830 = vshrl.u32 %v1829, 7
        %v1831 = vsub.s32 %v1828, %v1830
        %v1832 = vrot.slane %v1818, %v1831
        %v1833 = vcombine.low %v1809, %v1825
        %v1834 = vcombine.high %v1809, %v1825
        %v1835 = vcombine.low %v1816, %v1832
        %v1836 = vcombine.high %v1816, %v1832
        %1838 = vrot.lane.b32.xlu0 %v1834, 8
        %v1839 = vpop.permute.xlu0 %1838
        %1842 = vrot.lane.b32.xlu0 %v1835, 16
        %v1843 = vpop.permute.xlu0 %1842
        %1846 = vrot.lane.b32.xlu0 %v1836, 24
        %v1847 = vpop.permute.xlu0 %1846
        %vm1849 = vcmask 64512
        %v1850 = vsel %vm1849, %v1833, %v1839
        %vm1851 = vcmask 130048
        %v1852 = vsel %vm1851, %v1850, %v1843
        %vm1853 = vcmask 195584
        %v1854 = vsel %vm1853, %v1852, %v1847
        %v1855 = vpack.c.bf16 %v1854, %v1854
        %v1856 = vld [vmem:[%s7] sm:$0xf]
        %v1857 = vld [vmem:[%s7 + $0x4] sm:$0xf]
        %v1858 = vld [vmem:[%s7 + $0x8] sm:$0xf]
        %v1859 = vld [vmem:[%s7 + $0xc] sm:$0xf]
        %v1860 = vld [vmem:[%s8] sm:$0x1]
        %v1862 = vlaneseq
        %v1863 = vshrl.u32 %v1862, 7
        %v1864 = vsub.s32 0, %v1863
        %v1865 = vrot.slane %v1860, %v1864
        %v1871 = vunpack.c.l.b16 %v1856
        %v1872 = vunpack.c.l.b16 %v1857
        %v1873 = vunpack.c.l.b16 %v1858
        %v1874 = vunpack.c.l.b16 %v1859
        %v1875 = vpack.c.b16 %v1872, %v1871
        %v1876 = vpack.c.b16 %v1874, %v1873
        %vm1879 = vcmask 261120
        %v1881 = vsel %vm1879, %v1855, 0
        %1883 = vmatprep.subr.bf16.mxu0 0
        %1884 = vmatpush1.bf16.msra.mxu0 0
        %1885 = vmatprep.subr.bf16.mxu0 0
        %1886 = vmatpush1.bf16.msra.mxu0 0
        %1887 = vmatprep.subr.bf16.mxu0 0
        %1888 = vmatpush1.bf16.msra.mxu0 0
        %1889 = vmatprep.subr.bf16.mxu0 0
        %1890 = vmatpush1.bf16.msra.mxu0 0
        %1891 = vmatprep.subr.bf16.mxu0 0
        %1892 = vmatpush1.bf16.msra.mxu0 0
        %1893 = vmatprep.subr.bf16.mxu0 0
        %1894 = vmatpush1.bf16.msra.mxu0 0
        %1895 = vmatprep.subr.bf16.mxu0 0
        %1896 = vmatpush1.bf16.msra.mxu0 %v1876
        %1897 = vmatprep.subr.bf16.mxu0 0
        %1898 = vmatpush1.bf16.msra.mxu0 %v1875
        %1899 = vmatprep.subr.bf16.mxu0 0
        %1900 = vmatpush2.bf16.msra.mxu0 0
        %1901 = vmatprep.subr.bf16.mxu0 0
        %1902 = vmatpush2.bf16.msra.mxu0 0
        %1903 = vmatprep.subr.bf16.mxu0 0
        %1904 = vmatpush2.bf16.msra.mxu0 0
        %1905 = vmatprep.subr.bf16.mxu0 0
        %1906 = vmatpush2.bf16.msra.mxu0 0
        %1907 = vmatprep.subr.bf16.mxu0 0
        %1908 = vmatpush2.bf16.msra.mxu0 0
        %1909 = vmatprep.subr.bf16.mxu0 0
        %1910 = vmatpush2.bf16.msra.mxu0 0
        %1911 = vmatprep.subr.bf16.mxu0 0
        %1912 = vmatpush2.bf16.msra.mxu0 0
        %1913 = vmatprep.subr.bf16.mxu0 0
        %1914 = vmatpush2.bf16.msra.mxu0 0
        %1915 = vmatprep.mubr.bf16.mxu0 0
        %1916 = vmatmul.mubr.bf16.gmra.mxu0 %v1881
        %v1917 = vpop.f32.mrf.mxu0
        %v1918 = vadd.f32 %v1865, %v1917
        %v1919 = vpop.f32.mrf.mxu0
        %v1920 = vpop.f32.mrf.mxu0
        %v1921 = vpop.f32.mrf.mxu0
        %1922 = vdwg.mxu0
        %v1923 = vld [vmem:[%s404] sm:$0xf]
        %v1924 = vunpack.c.l.bf16 %v1923
        %v1925 = vadd.f32 %v1924, %v1918
        %v1926 = vpack.c.bf16 %v1925, %v1925
        %vm1927 = vcmask 257024
        %1928 = vst.msk [vmem:[%s427] sm:$0xf] %vm1927, %v1926
      $region68: #{gptneo_model_forward.4} parent=55 // pred_fallthru
        _
      %s1929 = smul.u32 %s25, 2
      %s1930 = sadd.s32 %s1929, %s26
      %p1931 = scmp.lt.s32.totalorder %s1930, 3
      %s1932 = scalar_select %p1931, %s1930, 3
      %s1933 = smul.addr %s1932, 4
      %s1934 = scalar_lea.vmem %s9, %s1933
      // Predicated region
      $region69: #{gptneo_model_forward.4} parent=55 // pred_check
        %p1935 = pneg %p275
      $region70: #{gptneo_model_forward.4} parent=55 // pred_check_branch
        %1937 = sbr.rel (%p1935) target = $region72
      $region71: #{gptneo_model_forward.4} parent=55 // pred_region
        %s1938 = smul.u32 %s25, 2
        %s1939 = sadd.s32 %s1938, %s26
      $region72: #{gptneo_model_forward.4} parent=55 // pred_fallthru
        _
    $region56: #{gptneo_model_forward.4} parent=5 // pred_fallthru
      _
    %p1940 = scmp.le.s32.totalorder 2, %s15
    // Predicated region
    $region73: #{gptneo_model_forward.4} parent=5 // pred_check
      %p1941 = pneg %p1940
    $region74: #{gptneo_model_forward.4} parent=5 // pred_check_branch
      %1943 = sbr.rel (%p1941) target = $region76
    $region75: #{gptneo_model_forward.4} parent=5 // pred_region
      %s1944 = ssub.s32 %s15, 2
      // Predicated region
      $region77: #{gptneo_model_forward.4} parent=75 // pred_check
        %p1945 = pneg %p281
      $region78: #{gptneo_model_forward.4} parent=75 // pred_check_branch
        %1947 = sbr.rel (%p1945) target = $region80
      $region79: #{gptneo_model_forward.4} parent=75 // pred_region
        %s1948 = smul.u32 %s28, 2
        %s1949 = sadd.s32 %s1948, %s29
        %p1950 = scmp.lt.s32.totalorder %s1949, 3
        %s1951 = scalar_select %p1950, %s1949, 3
        %s1952 = smul.addr %s1951, 4
        %s1953 = scalar_lea.vmem %s9, %s1952
      $region80: #{gptneo_model_forward.4} parent=75 // pred_fallthru
        _
    $region76: #{gptneo_model_forward.4} parent=5 // pred_fallthru
      _
  $region6: #{gptneo_model_forward.4} parent=0 // loop_footer
    %s19 = sadd.s32 1, %s15
  $region7: #{gptneo_model_forward.4} parent=0 // loop_footer_branch
    %14 = sbr.rel target = $region3
  $region8: #{gptneo_model_forward.4} parent=0 // loop_exit
    _

</llo_original>
